<compile_context>
chip_gen: v5e
topology: v5e:2x2
jax: 0.10.0
libtpu: 0.0.40
codegen_flags: <defaults>
</compile_context>

<pallas_src>
import math
import functools

import jax
import jax.numpy as jnp
from jax.experimental import pallas as pl
from jax.experimental.pallas import tpu as pltpu

D_MODEL = 512
NUM_HEADS = 4
HEAD_DIM = D_MODEL // NUM_HEADS


def classifier_kernel(x_ref, mbias_ref,
                      w_in_ref, b_in_ref,
                      w_out_ref, b_out_ref,
                      w_fused_ref, b_fused_ref,
                      w_a1_ref, b_a1_ref,
                      w_a2_ref, b_a2_ref,
                      w_cls_ref, b_cls_ref,
                      logits_ref, fsa_ref, fdown_ref, pooled_ref, wattn_ref):
    Bb, N = mbias_ref.shape          # batch rows in this block, sequence length
    R, D = x_ref.shape               # R == Bb * N (flattened slab)
    Hd = w_fused_ref.shape[1]

    x2d = x_ref[...]                                  # (R, D) bf16
    bias3 = mbias_ref[...][:, None, :]                # (Bb, 1, N) additive key-pad bias

    # ---- MHA in_proj: ONE (R,512)@(512,1536) bf16 matmul, f32 accumulation ----
    qkv = jnp.dot(x2d, w_in_ref[...],
                  preferred_element_type=jnp.float32) + b_in_ref[...]        # (R, 3D) f32
    scale = 1.0 / math.sqrt(HEAD_DIM)

    fdown_acc = None   # (R, Hd) f32 : concat_h(oh_h) @ (w_out @ w_down)
    fsa_acc = None     # (Bb, D) f32 : mean_N(concat_h(oh_h)) @ w_out
    for h in range(NUM_HEADS):
        lo = h * HEAD_DIM
        # Per-head, lane-aligned slices of qkv (no full q/k/v slabs).  Reshapes are
        # done on f32 values (layout-preserving for N % 8 == 0), bf16 cast after.
        qh = (qkv[:, lo:lo + HEAD_DIM] * scale).reshape(Bb, N, HEAD_DIM).astype(jnp.bfloat16)
        kh = qkv[:, D_MODEL + lo:D_MODEL + lo + HEAD_DIM].reshape(Bb, N, HEAD_DIM).astype(jnp.bfloat16)
        vh = qkv[:, 2 * D_MODEL + lo:2 * D_MODEL + lo + HEAD_DIM].reshape(Bb, N, HEAD_DIM).astype(jnp.bfloat16)

        scores = jnp.einsum('bqd,bkd->bqk', qh, kh,
                            preferred_element_type=jnp.float32) + bias3      # (Bb,N,N) f32
        smax = jnp.max(scores, axis=-1, keepdims=True)
        p = jnp.exp(scores - smax)
        p = p * pl.reciprocal(jnp.sum(p, axis=-1, keepdims=True), approx=True)
        oh = jnp.einsum('bqk,bkd->bqd', p.astype(jnp.bfloat16), vh,
                        preferred_element_type=jnp.float32)                  # (Bb,N,HD) f32

        # f_down contribution (out_proj folded into down): (R,HD)@(HD,Hd)
        part = jnp.dot(oh.reshape(R, HEAD_DIM).astype(jnp.bfloat16),
                       w_fused_ref[lo:lo + HEAD_DIM, :],
                       preferred_element_type=jnp.float32)
        fdown_acc = part if fdown_acc is None else fdown_acc + part

        # f_selfattn.mean(1) contribution: mean_N(oh_h) @ w_out[head slice]
        fsa_part = jnp.dot(jnp.mean(oh, axis=1).astype(jnp.bfloat16),
                           w_out_ref[lo:lo + HEAD_DIM, :],
                           preferred_element_type=jnp.float32)               # (Bb, D)
        fsa_acc = fsa_part if fsa_acc is None else fsa_acc + fsa_part

    fsa_ref[...] = fsa_acc + b_out_ref[...]                                  # f_selfattn.mean(1)

    # ---- self.down (already fused with out_proj) ----
    f_down = fdown_acc + b_fused_ref[...]                                    # (R, Hd) f32
    f_down3 = f_down.reshape(Bb, N, Hd)
    fdown_ref[...] = jnp.mean(f_down3, axis=1)                               # f_down.mean(1)

    # ---- Attention pooling: Linear -> ReLU -> Linear(->1), softmax over N ----
    # (the mask argument is ignored by Attention.forward in the reference module)
    h1 = jnp.maximum(jnp.dot(f_down.astype(jnp.bfloat16), w_a1_ref[...],
                             preferred_element_type=jnp.float32) + b_a1_ref[...], 0.0)
    # score via VPU reduce instead of a lane-1 (R,Hd)@(Hd,1) matmul
    s = jnp.sum(h1.reshape(Bb, N, Hd) * w_a2_ref[...][None], axis=-1) + b_a2_ref[...]
    smax = jnp.max(s, axis=-1, keepdims=True)
    e = jnp.exp(s - smax)
    w_soft = e * pl.reciprocal(jnp.sum(e, axis=-1, keepdims=True), approx=True)  # (Bb, N)
    wattn_ref[...] = w_soft
    pooled = jnp.sum(f_down3 * w_soft[:, :, None], axis=1)                   # (Bb, Hd) f32
    pooled_ref[...] = pooled

    # ---- self.classifier (tiny; kept in f32) ----
    logits_ref[...] = jnp.dot(pooled, w_cls_ref[...],
                              preferred_element_type=jnp.float32) + b_cls_ref[...]


def _choose_block_batch(B, N, hidden_dim):
    """Batch rows per grid step: ~1024 MXU rows, VMEM-aware in N, v7x dual-TC aware."""
    # Conservative per-batch-row VMEM estimate (bytes) for the in-kernel intermediates.
    per_row = (2 * N * D_MODEL * 2          # x block (bf16, double-buffered)
               + N * 3 * D_MODEL * 4        # qkv (f32)
               + 3 * N * N * 4              # per-head scores / probs (f32, with slack)
               + N * D_MODEL * 4            # per-head context staging (f32)
               + 2 * N * hidden_dim * 4)    # f_down + attention-MLP hidden (f32)
    block_budget = 18 * 1024 * 1024         # intermediates; weights/outputs fit the rest
    bb = min(max(1, 1024 // max(N, 1)),     # target ~1024 MXU rows per grid step
             max(1, block_budget // per_row),
             B)
    if bb >= B:
        # Whole batch fits in one step.  Split in two so v7x's second TensorCore gets
        # work, but only when each half still feeds the MXU >= 512 rows (8-row blocks:
        # the 2D mask/output blocks carry the batch on the sublane axis).
        if B >= 16 and (B // 2) * N >= 512:
            bb = -(-(B // 2) // 8) * 8
        else:
            bb = B
    else:
        # Multi-step blocks must be sublane-aligned (batch is the sublane dim of the
        # 2D mask/output blocks).
        # TODO(synk): for N >~ 512 this 8-row floor can exceed the v7x VMEM budget;
        # a flash-style KV-blocked inner loop would be needed there.
        bb = max(8, (bb // 8) * 8)
    return bb


def make_params(key, hidden_dim, num_classes):
    """Deterministic parameter init (weights stored already transposed: (fan_in, fan_out))."""
    def linear(k, fan_in, fan_out):
        kw, kb = jax.random.split(k)
        bound = 1.0 / math.sqrt(fan_in)
        w = jax.random.uniform(kw, (fan_in, fan_out), jnp.float32, -bound, bound)
        b = jax.random.uniform(kb, (1, fan_out), jnp.float32, -bound, bound)
        return w, b

    keys = jax.random.split(key, 6)
    w_in, b_in = linear(keys[0], D_MODEL, 3 * D_MODEL)        # MHA in_proj
    w_out, b_out = linear(keys[1], D_MODEL, D_MODEL)          # MHA out_proj
    w_down, b_down = linear(keys[2], D_MODEL, hidden_dim)     # self.down
    w_a1, b_a1 = linear(keys[3], hidden_dim, hidden_dim)      # attn MLP layer 1
    w_a2, b_a2 = linear(keys[4], hidden_dim, 1)               # attn MLP layer 2
    w_cls, b_cls = linear(keys[5], hidden_dim, num_classes)   # classifier
    return (w_in, b_in, w_out, b_out, w_down, b_down,
            w_a1, b_a1, w_a2, b_a2, w_cls, b_cls)


@functools.partial(jax.jit, static_argnames=("num_classes", "hidden_dim"))
def classifier_forward(outputs_nbd, size, params, *, num_classes, hidden_dim):
    """outputs_nbd: (N, B, 512) seq-first (like the PyTorch module). size: (B,) int lengths."""
    N, B, D = outputs_nbd.shape

    # Transpose to batch-first fused with the bf16 cast (single pass; the MXU is
    # bf16-native so x is shipped to the kernel at half the bytes), then flatten to
    # a (B*N, D) slab so the kernel needs no layout-changing bf16 reshape.
    x = jnp.transpose(outputs_nbd, (1, 0, 2)).astype(jnp.bfloat16)           # (B, N, D)
    valid = jnp.arange(N)[None, :] < size[:, None]                           # (B, N)
    mbias = jnp.where(valid, 0.0, -1e30).astype(jnp.float32)                 # (B, N)

    (w_in, b_in, w_out, b_out, w_down, b_down,
     w_a1, b_a1, w_a2, b_a2, w_cls, b_cls) = params

    # bf16 weights for the MXU operands (accumulation stays f32 inside the kernel).
    bf = jnp.bfloat16
    w_in_b, w_out_b, w_a1_b = w_in.astype(bf), w_out.astype(bf), w_a1.astype(bf)
    # Fold out_proj into down: f_down = concat_h(oh_h) @ (w_out @ w_down) + b_fused
    w_fused = jnp.dot(w_out, w_down).astype(bf)                              # (512, Hd)
    b_fused = jnp.dot(b_out, w_down) + b_down                                # (1, Hd) f32
    w_a2_t = w_a2.T                                                          # (1, Hd) f32 (VPU reduce)

    Bb = _choose_block_batch(B, N, hidden_dim)
    pad_B = -(-B // Bb) * Bb
    if pad_B != B:
        x = jnp.pad(x, ((0, pad_B - B), (0, 0), (0, 0)))
        mbias = jnp.pad(mbias, ((0, pad_B - B), (0, 0)))   # 0 == "valid" -> no NaNs in pad rows
    x2 = x.reshape(pad_B * N, D)                           # free reshape in HBM

    def full(arr):
        nd = arr.ndim
        return pl.BlockSpec(arr.shape, lambda b, _nd=nd: (0,) * _nd)

    grid_spec = pltpu.PrefetchScalarGridSpec(
        num_scalar_prefetch=0,
        grid=(pad_B // Bb,),
        in_specs=[
            pl.BlockSpec((Bb * N, D), lambda b: (b, 0)),          # x slab (bf16)
            pl.BlockSpec((Bb, N), lambda b: (b, 0)),              # key-padding bias (f32)
            full(w_in_b), full(b_in), full(w_out_b), full(b_out),
            full(w_fused), full(b_fused), full(w_a1_b), full(b_a1),
            full(w_a2_t), full(b_a2), full(w_cls), full(b_cls),
        ],
        out_specs=[
            pl.BlockSpec((Bb, num_classes), lambda b: (b, 0)),    # logits
            pl.BlockSpec((Bb, D), lambda b: (b, 0)),              # f_selfattn.mean(1)
            pl.BlockSpec((Bb, hidden_dim), lambda b: (b, 0)),     # f_down.mean(1)
            pl.BlockSpec((Bb, hidden_dim), lambda b: (b, 0)),     # pooled
            pl.BlockSpec((Bb, N), lambda b: (b, 0)),              # attn weights (lane-dense)
        ],
    )
    out_shape = (
        jax.ShapeDtypeStruct((pad_B, num_classes), jnp.float32),
        jax.ShapeDtypeStruct((pad_B, D), jnp.float32),
        jax.ShapeDtypeStruct((pad_B, hidden_dim), jnp.float32),
        jax.ShapeDtypeStruct((pad_B, hidden_dim), jnp.float32),
        jax.ShapeDtypeStruct((pad_B, N), jnp.float32),
    )

    logits, fsa, fdown, pooled, wattn = pl.pallas_call(
        classifier_kernel,
        grid_spec=grid_spec,
        out_shape=out_shape,
        compiler_params=pltpu.CompilerParams(
            dimension_semantics=("parallel",),
            vmem_limit_bytes=32 * 1024 * 1024),
    )(x2, mbias, w_in_b, b_in, w_out_b, b_out, w_fused, b_fused,
      w_a1_b, b_a1, w_a2_t, b_a2, w_cls, b_cls)

    return (logits[:B],
            (fsa[:B], fdown[:B], (pooled[:B], wattn[:B])))


def reference_forward(outputs_nbd, size, params):
    """Pure-JAX f32 reference of the same math, for numerical validation."""
    (w_in, b_in, w_out, b_out, w_down, b_down,
     w_a1, b_a1, w_a2, b_a2, w_cls, b_cls) = params
    N, B, D = outputs_nbd.shape
    x = jnp.transpose(outputs_nbd, (1, 0, 2)).astype(jnp.float32)
    valid = jnp.arange(N)[None, :] < size[:, None]
    bias = jnp.where(valid, 0.0, -1e30)[:, None, None, :]                  # (B,1,1,N)

    qkv = x @ w_in + b_in
    q, k, v = qkv[..., :D], qkv[..., D:2 * D], qkv[..., 2 * D:]

    def split_heads(t):
        return t.reshape(B, N, NUM_HEADS, HEAD_DIM).transpose(0, 2, 1, 3)

    qh = split_heads(q) / math.sqrt(HEAD_DIM)
    kh = split_heads(k)
    vh = split_heads(v)
    scores = jnp.einsum("bhqd,bhkd->bhqk", qh, kh) + bias
    p = jax.nn.softmax(scores, axis=-1)
    attn = jnp.einsum("bhqk,bhkd->bhqd", p, vh).transpose(0, 2, 1, 3).reshape(B, N, D)

    f_selfattn = attn @ w_out + b_out
    f_down = f_selfattn @ w_down + b_down
    h1 = jnp.maximum(f_down @ w_a1 + b_a1, 0.0)
    s = (h1 @ w_a2 + b_a2)[..., 0]
    w_soft = jax.nn.softmax(s, axis=-1)
    pooled = jnp.sum(f_down * w_soft[..., None], axis=1)
    logits = pooled @ w_cls + b_cls
    return logits, (f_selfattn.mean(axis=1), f_down.mean(axis=1), (pooled, w_soft))


if __name__ == "__main__":
    key = jax.random.PRNGKey(0)
    k_x, k_p, k_age, k_gender = jax.random.split(key, 4)

    B, N = 2, 8
    num_classes, hidden_dim = 10, 128

    outputs = jax.random.normal(k_x, (N, B, D_MODEL), jnp.float32)   # seq-first, as PyTorch
    age = jax.random.normal(k_age, (B,), jnp.float32)                # unused by forward
    gender = jax.random.normal(k_gender, (B,), jnp.float32)          # unused by forward
    size = jnp.array([8, 5], dtype=jnp.int32)                        # max(size) == N

    params = make_params(k_p, hidden_dim, num_classes)

    logits, (fsa, fdown, (pooled, wattn)) = classifier_forward(
        outputs, size, params, num_classes=num_classes, hidden_dim=hidden_dim)
    jax.block_until_ready((logits, fsa, fdown, pooled, wattn))

    ref_logits, (ref_fsa, ref_fdown, (ref_pooled, ref_w)) = reference_forward(
        outputs, size, params)

    # bf16 matmul operands (f32 accumulation) -> compare against the f32 reference
    # with a tolerance sized for bf16 rounding.
    for got, ref in ((logits, ref_logits), (fsa, ref_fsa), (fdown, ref_fdown),
                     (pooled, ref_pooled), (wattn, ref_w)):
        assert jnp.allclose(got, ref, atol=5e-2, rtol=5e-2), (
            f"mismatch: max abs err {jnp.max(jnp.abs(got - ref))}")

    print("KERNEL_OK")
</pallas_src>

<mosaic_0001>
module attributes {stable_mosaic.version = 11 : i64} {
  func.func @classifier_kernel(%arg0: i32, %arg1: memref<16x512xbf16, #tpu.memory_space<vmem>>, %arg2: memref<2x8xf32, #tpu.memory_space<vmem>>, %arg3: memref<512x1536xbf16, #tpu.memory_space<vmem>>, %arg4: memref<1x1536xf32, #tpu.memory_space<vmem>>, %arg5: memref<512x512xbf16, #tpu.memory_space<vmem>>, %arg6: memref<1x512xf32, #tpu.memory_space<vmem>>, %arg7: memref<512x128xbf16, #tpu.memory_space<vmem>>, %arg8: memref<1x128xf32, #tpu.memory_space<vmem>>, %arg9: memref<128x128xbf16, #tpu.memory_space<vmem>>, %arg10: memref<1x128xf32, #tpu.memory_space<vmem>>, %arg11: memref<1x128xf32, #tpu.memory_space<vmem>>, %arg12: memref<1x1xf32, #tpu.memory_space<vmem>>, %arg13: memref<128x10xf32, #tpu.memory_space<vmem>>, %arg14: memref<1x10xf32, #tpu.memory_space<vmem>>, %arg15: memref<2x10xf32, #tpu.memory_space<vmem>>, %arg16: memref<2x512xf32, #tpu.memory_space<vmem>>, %arg17: memref<2x128xf32, #tpu.memory_space<vmem>>, %arg18: memref<2x128xf32, #tpu.memory_space<vmem>>, %arg19: memref<2x8xf32, #tpu.memory_space<vmem>>) attributes {dimension_semantics = [#tpu.dimension_semantics<parallel>], iteration_bounds = array<i64: 1>, scalar_prefetch = 0 : i64, scratch_operands = 0 : i64, tpu.core_type = #tpu.core_type<tc>, window_params = [{transform_indices = @transform_0, window_bounds = array<i64: 16, 512>}, {transform_indices = @transform_1, window_bounds = array<i64: 2, 8>}, {pipeline_mode = #tpu.pipeline_mode<synchronous>, transform_indices = @transform_2, window_bounds = array<i64: 512, 1536>}, {pipeline_mode = #tpu.pipeline_mode<synchronous>, transform_indices = @transform_3, window_bounds = array<i64: 1, 1536>}, {pipeline_mode = #tpu.pipeline_mode<synchronous>, transform_indices = @transform_4, window_bounds = array<i64: 512, 512>}, {pipeline_mode = #tpu.pipeline_mode<synchronous>, transform_indices = @transform_5, window_bounds = array<i64: 1, 512>}, {pipeline_mode = #tpu.pipeline_mode<synchronous>, transform_indices = @transform_6, window_bounds = array<i64: 512, 128>}, {pipeline_mode = #tpu.pipeline_mode<synchronous>, transform_indices = @transform_7, window_bounds = array<i64: 1, 128>}, {pipeline_mode = #tpu.pipeline_mode<synchronous>, transform_indices = @transform_8, window_bounds = array<i64: 128, 128>}, {pipeline_mode = #tpu.pipeline_mode<synchronous>, transform_indices = @transform_9, window_bounds = array<i64: 1, 128>}, {pipeline_mode = #tpu.pipeline_mode<synchronous>, transform_indices = @transform_10, window_bounds = array<i64: 1, 128>}, {pipeline_mode = #tpu.pipeline_mode<synchronous>, transform_indices = @transform_11, window_bounds = array<i64: 1, 1>}, {pipeline_mode = #tpu.pipeline_mode<synchronous>, transform_indices = @transform_12, window_bounds = array<i64: 128, 10>}, {pipeline_mode = #tpu.pipeline_mode<synchronous>, transform_indices = @transform_13, window_bounds = array<i64: 1, 10>}, {transform_indices = @transform_14, window_bounds = array<i64: 2, 10>}, {transform_indices = @transform_15, window_bounds = array<i64: 2, 512>}, {transform_indices = @transform_16, window_bounds = array<i64: 2, 128>}, {transform_indices = @transform_17, window_bounds = array<i64: 2, 128>}, {transform_indices = @transform_18, window_bounds = array<i64: 2, 8>}]} {
    %c0 = arith.constant 0 : index
    %c0_0 = arith.constant 0 : index
    %0 = vector.load %arg1[%c0, %c0_0] : memref<16x512xbf16, #tpu.memory_space<vmem>>, vector<16x512xbf16>
    %c0_1 = arith.constant 0 : index
    %c0_2 = arith.constant 0 : index
    %1 = vector.load %arg2[%c0_1, %c0_2] : memref<2x8xf32, #tpu.memory_space<vmem>>, vector<2x8xf32>
    %2 = vector.shape_cast %1 : vector<2x8xf32> to vector<2x1x8xf32>
    %c0_3 = arith.constant 0 : index
    %c0_4 = arith.constant 0 : index
    %3 = vector.load %arg3[%c0_3, %c0_4] : memref<512x1536xbf16, #tpu.memory_space<vmem>>, vector<512x1536xbf16>
    %cst = arith.constant dense<0.000000e+00> : vector<16x1536xf32>
    %4 = tpu.matmul %0, %3, %cst {dimension_numbers = #tpu.dot_dimension_numbers<[1], [0], [0], [1], [0, 0, 1, 1], [], []>} : vector<16x512xbf16>, vector<512x1536xbf16>, vector<16x1536xf32> -> vector<16x1536xf32>
    %c0_5 = arith.constant 0 : index
    %c0_6 = arith.constant 0 : index
    %5 = vector.load %arg4[%c0_5, %c0_6] : memref<1x1536xf32, #tpu.memory_space<vmem>>, vector<1x1536xf32>
    %6 = vector.broadcast %5 : vector<1x1536xf32> to vector<16x1536xf32>
    %7 = arith.addf %4, %6 : vector<16x1536xf32>
    %8 = vector.extract_strided_slice %7 {offsets = [0, 0], sizes = [16, 128], strides = [1, 1]} : vector<16x1536xf32> to vector<16x128xf32>
    %cst_7 = arith.constant 0.0883883461 : f32
    %9 = vector.broadcast %cst_7 : f32 to vector<16x128xf32>
    %10 = arith.mulf %8, %9 : vector<16x128xf32>
    %11 = vector.shape_cast %10 : vector<16x128xf32> to vector<2x8x128xf32>
    %12 = arith.truncf %11 : vector<2x8x128xf32> to vector<2x8x128xbf16>
    %13 = vector.extract_strided_slice %7 {offsets = [0, 512], sizes = [16, 128], strides = [1, 1]} : vector<16x1536xf32> to vector<16x128xf32>
    %14 = vector.shape_cast %13 : vector<16x128xf32> to vector<2x8x128xf32>
    %15 = arith.truncf %14 : vector<2x8x128xf32> to vector<2x8x128xbf16>
    %16 = vector.extract_strided_slice %7 {offsets = [0, 1024], sizes = [16, 128], strides = [1, 1]} : vector<16x1536xf32> to vector<16x128xf32>
    %17 = vector.shape_cast %16 : vector<16x128xf32> to vector<2x8x128xf32>
    %18 = arith.truncf %17 : vector<2x8x128xf32> to vector<2x8x128xbf16>
    "tpu.trace_start"() <{level = 10 : i32, message = "bqd,bkd->bqk"}> : () -> ()
    %cst_8 = arith.constant dense<0.000000e+00> : vector<2x8x8xf32>
    %19 = tpu.matmul %12, %15, %cst_8 {dimension_numbers = #tpu.dot_dimension_numbers<[2], [2], [1], [1], [0, 0, 0, 1, 1, 1], [0], [0]>} : vector<2x8x128xbf16>, vector<2x8x128xbf16>, vector<2x8x8xf32> -> vector<2x8x8xf32>
    "tpu.trace_stop"() : () -> ()
    %20 = vector.broadcast %2 : vector<2x1x8xf32> to vector<2x8x8xf32>
    %21 = arith.addf %19, %20 : vector<2x8x8xf32>
    %cst_9 = arith.constant dense<0xFF800000> : vector<2x8xf32>
    %22 = vector.multi_reduction <maximumf>, %21, %cst_9 [2] : vector<2x8x8xf32> to vector<2x8xf32>
    %23 = vector.shape_cast %22 : vector<2x8xf32> to vector<2x8x1xf32>
    %24 = vector.broadcast %23 : vector<2x8x1xf32> to vector<2x8x8xf32>
    %25 = arith.subf %21, %24 : vector<2x8x8xf32>
    %26 = math.exp %25 : vector<2x8x8xf32>
    %cst_10 = arith.constant dense<0.000000e+00> : vector<2x8xf32>
    %27 = vector.multi_reduction <add>, %26, %cst_10 [2] : vector<2x8x8xf32> to vector<2x8xf32>
    %28 = vector.shape_cast %27 : vector<2x8xf32> to vector<2x8x1xf32>
    %29 = tpu.reciprocal %28 {approx = true} : vector<2x8x1xf32> -> vector<2x8x1xf32>
    %30 = vector.broadcast %29 : vector<2x8x1xf32> to vector<2x8x8xf32>
    %31 = arith.mulf %26, %30 : vector<2x8x8xf32>
    %32 = arith.truncf %31 : vector<2x8x8xf32> to vector<2x8x8xbf16>
    "tpu.trace_start"() <{level = 10 : i32, message = "bqk,bkd->bqd"}> : () -> ()
    %cst_11 = arith.constant dense<0.000000e+00> : vector<2x8x128xf32>
    %33 = tpu.matmul %32, %18, %cst_11 {dimension_numbers = #tpu.dot_dimension_numbers<[2], [1], [1], [2], [0, 0, 0, 1, 1, 2], [0], [0]>} : vector<2x8x8xbf16>, vector<2x8x128xbf16>, vector<2x8x128xf32> -> vector<2x8x128xf32>
    "tpu.trace_stop"() : () -> ()
    %34 = vector.shape_cast %33 : vector<2x8x128xf32> to vector<16x128xf32>
    %35 = arith.truncf %34 : vector<16x128xf32> to vector<16x128xbf16>
    %c0_12 = arith.constant 0 : index
    %c0_13 = arith.constant 0 : index
    %36 = vector.load %arg7[%c0_12, %c0_13] : memref<512x128xbf16, #tpu.memory_space<vmem>>, vector<128x128xbf16>
    %cst_14 = arith.constant dense<0.000000e+00> : vector<16x128xf32>
    %37 = tpu.matmul %35, %36, %cst_14 {dimension_numbers = #tpu.dot_dimension_numbers<[1], [0], [0], [1], [0, 0, 1, 1], [], []>} : vector<16x128xbf16>, vector<128x128xbf16>, vector<16x128xf32> -> vector<16x128xf32>
    %cst_15 = arith.constant dense<0.000000e+00> : vector<2x128xf32>
    %38 = vector.multi_reduction <add>, %33, %cst_15 [1] : vector<2x8x128xf32> to vector<2x128xf32>
    %cst_16 = arith.constant 8.000000e+00 : f32
    %39 = vector.broadcast %cst_16 : f32 to vector<2x128xf32>
    %40 = arith.divf %38, %39 : vector<2x128xf32>
    %41 = arith.truncf %40 : vector<2x128xf32> to vector<2x128xbf16>
    %c0_17 = arith.constant 0 : index
    %c0_18 = arith.constant 0 : index
    %42 = vector.load %arg5[%c0_17, %c0_18] : memref<512x512xbf16, #tpu.memory_space<vmem>>, vector<128x512xbf16>
    %cst_19 = arith.constant dense<0.000000e+00> : vector<2x512xf32>
    %43 = tpu.matmul %41, %42, %cst_19 {dimension_numbers = #tpu.dot_dimension_numbers<[1], [0], [0], [1], [0, 0, 1, 1], [], []>} : vector<2x128xbf16>, vector<128x512xbf16>, vector<2x512xf32> -> vector<2x512xf32>
    %44 = vector.extract_strided_slice %7 {offsets = [0, 128], sizes = [16, 128], strides = [1, 1]} : vector<16x1536xf32> to vector<16x128xf32>
    %cst_20 = arith.constant 0.0883883461 : f32
    %45 = vector.broadcast %cst_20 : f32 to vector<16x128xf32>
    %46 = arith.mulf %44, %45 : vector<16x128xf32>
    %47 = vector.shape_cast %46 : vector<16x128xf32> to vector<2x8x128xf32>
    %48 = arith.truncf %47 : vector<2x8x128xf32> to vector<2x8x128xbf16>
    %49 = vector.extract_strided_slice %7 {offsets = [0, 640], sizes = [16, 128], strides = [1, 1]} : vector<16x1536xf32> to vector<16x128xf32>
    %50 = vector.shape_cast %49 : vector<16x128xf32> to vector<2x8x128xf32>
    %51 = arith.truncf %50 : vector<2x8x128xf32> to vector<2x8x128xbf16>
    %52 = vector.extract_strided_slice %7 {offsets = [0, 1152], sizes = [16, 128], strides = [1, 1]} : vector<16x1536xf32> to vector<16x128xf32>
    %53 = vector.shape_cast %52 : vector<16x128xf32> to vector<2x8x128xf32>
    %54 = arith.truncf %53 : vector<2x8x128xf32> to vector<2x8x128xbf16>
    "tpu.trace_start"() <{level = 10 : i32, message = "bqd,bkd->bqk"}> : () -> ()
    %cst_21 = arith.constant dense<0.000000e+00> : vector<2x8x8xf32>
    %55 = tpu.matmul %48, %51, %cst_21 {dimension_numbers = #tpu.dot_dimension_numbers<[2], [2], [1], [1], [0, 0, 0, 1, 1, 1], [0], [0]>} : vector<2x8x128xbf16>, vector<2x8x128xbf16>, vector<2x8x8xf32> -> vector<2x8x8xf32>
    "tpu.trace_stop"() : () -> ()
    %56 = vector.broadcast %2 : vector<2x1x8xf32> to vector<2x8x8xf32>
    %57 = arith.addf %55, %56 : vector<2x8x8xf32>
    %cst_22 = arith.constant dense<0xFF800000> : vector<2x8xf32>
    %58 = vector.multi_reduction <maximumf>, %57, %cst_22 [2] : vector<2x8x8xf32> to vector<2x8xf32>
    %59 = vector.shape_cast %58 : vector<2x8xf32> to vector<2x8x1xf32>
    %60 = vector.broadcast %59 : vector<2x8x1xf32> to vector<2x8x8xf32>
    %61 = arith.subf %57, %60 : vector<2x8x8xf32>
    %62 = math.exp %61 : vector<2x8x8xf32>
    %cst_23 = arith.constant dense<0.000000e+00> : vector<2x8xf32>
    %63 = vector.multi_reduction <add>, %62, %cst_23 [2] : vector<2x8x8xf32> to vector<2x8xf32>
    %64 = vector.shape_cast %63 : vector<2x8xf32> to vector<2x8x1xf32>
    %65 = tpu.reciprocal %64 {approx = true} : vector<2x8x1xf32> -> vector<2x8x1xf32>
    %66 = vector.broadcast %65 : vector<2x8x1xf32> to vector<2x8x8xf32>
    %67 = arith.mulf %62, %66 : vector<2x8x8xf32>
    %68 = arith.truncf %67 : vector<2x8x8xf32> to vector<2x8x8xbf16>
    "tpu.trace_start"() <{level = 10 : i32, message = "bqk,bkd->bqd"}> : () -> ()
    %cst_24 = arith.constant dense<0.000000e+00> : vector<2x8x128xf32>
    %69 = tpu.matmul %68, %54, %cst_24 {dimension_numbers = #tpu.dot_dimension_numbers<[2], [1], [1], [2], [0, 0, 0, 1, 1, 2], [0], [0]>} : vector<2x8x8xbf16>, vector<2x8x128xbf16>, vector<2x8x128xf32> -> vector<2x8x128xf32>
    "tpu.trace_stop"() : () -> ()
    %70 = vector.shape_cast %69 : vector<2x8x128xf32> to vector<16x128xf32>
    %71 = arith.truncf %70 : vector<16x128xf32> to vector<16x128xbf16>
    %c128 = arith.constant 128 : index
    %c0_25 = arith.constant 0 : index
    %72 = vector.load %arg7[%c128, %c0_25] : memref<512x128xbf16, #tpu.memory_space<vmem>>, vector<128x128xbf16>
    %cst_26 = arith.constant dense<0.000000e+00> : vector<16x128xf32>
    %73 = tpu.matmul %71, %72, %cst_26 {dimension_numbers = #tpu.dot_dimension_numbers<[1], [0], [0], [1], [0, 0, 1, 1], [], []>} : vector<16x128xbf16>, vector<128x128xbf16>, vector<16x128xf32> -> vector<16x128xf32>
    %74 = arith.addf %37, %73 : vector<16x128xf32>
    %cst_27 = arith.constant dense<0.000000e+00> : vector<2x128xf32>
    %75 = vector.multi_reduction <add>, %69, %cst_27 [1] : vector<2x8x128xf32> to vector<2x128xf32>
    %cst_28 = arith.constant 8.000000e+00 : f32
    %76 = vector.broadcast %cst_28 : f32 to vector<2x128xf32>
    %77 = arith.divf %75, %76 : vector<2x128xf32>
    %78 = arith.truncf %77 : vector<2x128xf32> to vector<2x128xbf16>
    %c128_29 = arith.constant 128 : index
    %c0_30 = arith.constant 0 : index
    %79 = vector.load %arg5[%c128_29, %c0_30] : memref<512x512xbf16, #tpu.memory_space<vmem>>, vector<128x512xbf16>
    %cst_31 = arith.constant dense<0.000000e+00> : vector<2x512xf32>
    %80 = tpu.matmul %78, %79, %cst_31 {dimension_numbers = #tpu.dot_dimension_numbers<[1], [0], [0], [1], [0, 0, 1, 1], [], []>} : vector<2x128xbf16>, vector<128x512xbf16>, vector<2x512xf32> -> vector<2x512xf32>
    %81 = arith.addf %43, %80 : vector<2x512xf32>
    %82 = vector.extract_strided_slice %7 {offsets = [0, 256], sizes = [16, 128], strides = [1, 1]} : vector<16x1536xf32> to vector<16x128xf32>
    %cst_32 = arith.constant 0.0883883461 : f32
    %83 = vector.broadcast %cst_32 : f32 to vector<16x128xf32>
    %84 = arith.mulf %82, %83 : vector<16x128xf32>
    %85 = vector.shape_cast %84 : vector<16x128xf32> to vector<2x8x128xf32>
    %86 = arith.truncf %85 : vector<2x8x128xf32> to vector<2x8x128xbf16>
    %87 = vector.extract_strided_slice %7 {offsets = [0, 768], sizes = [16, 128], strides = [1, 1]} : vector<16x1536xf32> to vector<16x128xf32>
    %88 = vector.shape_cast %87 : vector<16x128xf32> to vector<2x8x128xf32>
    %89 = arith.truncf %88 : vector<2x8x128xf32> to vector<2x8x128xbf16>
    %90 = vector.extract_strided_slice %7 {offsets = [0, 1280], sizes = [16, 128], strides = [1, 1]} : vector<16x1536xf32> to vector<16x128xf32>
    %91 = vector.shape_cast %90 : vector<16x128xf32> to vector<2x8x128xf32>
    %92 = arith.truncf %91 : vector<2x8x128xf32> to vector<2x8x128xbf16>
    "tpu.trace_start"() <{level = 10 : i32, message = "bqd,bkd->bqk"}> : () -> ()
    %cst_33 = arith.constant dense<0.000000e+00> : vector<2x8x8xf32>
    %93 = tpu.matmul %86, %89, %cst_33 {dimension_numbers = #tpu.dot_dimension_numbers<[2], [2], [1], [1], [0, 0, 0, 1, 1, 1], [0], [0]>} : vector<2x8x128xbf16>, vector<2x8x128xbf16>, vector<2x8x8xf32> -> vector<2x8x8xf32>
    "tpu.trace_stop"() : () -> ()
    %94 = vector.broadcast %2 : vector<2x1x8xf32> to vector<2x8x8xf32>
    %95 = arith.addf %93, %94 : vector<2x8x8xf32>
    %cst_34 = arith.constant dense<0xFF800000> : vector<2x8xf32>
    %96 = vector.multi_reduction <maximumf>, %95, %cst_34 [2] : vector<2x8x8xf32> to vector<2x8xf32>
    %97 = vector.shape_cast %96 : vector<2x8xf32> to vector<2x8x1xf32>
    %98 = vector.broadcast %97 : vector<2x8x1xf32> to vector<2x8x8xf32>
    %99 = arith.subf %95, %98 : vector<2x8x8xf32>
    %100 = math.exp %99 : vector<2x8x8xf32>
    %cst_35 = arith.constant dense<0.000000e+00> : vector<2x8xf32>
    %101 = vector.multi_reduction <add>, %100, %cst_35 [2] : vector<2x8x8xf32> to vector<2x8xf32>
    %102 = vector.shape_cast %101 : vector<2x8xf32> to vector<2x8x1xf32>
    %103 = tpu.reciprocal %102 {approx = true} : vector<2x8x1xf32> -> vector<2x8x1xf32>
    %104 = vector.broadcast %103 : vector<2x8x1xf32> to vector<2x8x8xf32>
    %105 = arith.mulf %100, %104 : vector<2x8x8xf32>
    %106 = arith.truncf %105 : vector<2x8x8xf32> to vector<2x8x8xbf16>
    "tpu.trace_start"() <{level = 10 : i32, message = "bqk,bkd->bqd"}> : () -> ()
    %cst_36 = arith.constant dense<0.000000e+00> : vector<2x8x128xf32>
    %107 = tpu.matmul %106, %92, %cst_36 {dimension_numbers = #tpu.dot_dimension_numbers<[2], [1], [1], [2], [0, 0, 0, 1, 1, 2], [0], [0]>} : vector<2x8x8xbf16>, vector<2x8x128xbf16>, vector<2x8x128xf32> -> vector<2x8x128xf32>
    "tpu.trace_stop"() : () -> ()
    %108 = vector.shape_cast %107 : vector<2x8x128xf32> to vector<16x128xf32>
    %109 = arith.truncf %108 : vector<16x128xf32> to vector<16x128xbf16>
    %c256 = arith.constant 256 : index
    %c0_37 = arith.constant 0 : index
    %110 = vector.load %arg7[%c256, %c0_37] : memref<512x128xbf16, #tpu.memory_space<vmem>>, vector<128x128xbf16>
    %cst_38 = arith.constant dense<0.000000e+00> : vector<16x128xf32>
    %111 = tpu.matmul %109, %110, %cst_38 {dimension_numbers = #tpu.dot_dimension_numbers<[1], [0], [0], [1], [0, 0, 1, 1], [], []>} : vector<16x128xbf16>, vector<128x128xbf16>, vector<16x128xf32> -> vector<16x128xf32>
    %112 = arith.addf %74, %111 : vector<16x128xf32>
    %cst_39 = arith.constant dense<0.000000e+00> : vector<2x128xf32>
    %113 = vector.multi_reduction <add>, %107, %cst_39 [1] : vector<2x8x128xf32> to vector<2x128xf32>
    %cst_40 = arith.constant 8.000000e+00 : f32
    %114 = vector.broadcast %cst_40 : f32 to vector<2x128xf32>
    %115 = arith.divf %113, %114 : vector<2x128xf32>
    %116 = arith.truncf %115 : vector<2x128xf32> to vector<2x128xbf16>
    %c256_41 = arith.constant 256 : index
    %c0_42 = arith.constant 0 : index
    %117 = vector.load %arg5[%c256_41, %c0_42] : memref<512x512xbf16, #tpu.memory_space<vmem>>, vector<128x512xbf16>
    %cst_43 = arith.constant dense<0.000000e+00> : vector<2x512xf32>
    %118 = tpu.matmul %116, %117, %cst_43 {dimension_numbers = #tpu.dot_dimension_numbers<[1], [0], [0], [1], [0, 0, 1, 1], [], []>} : vector<2x128xbf16>, vector<128x512xbf16>, vector<2x512xf32> -> vector<2x512xf32>
    %119 = arith.addf %81, %118 : vector<2x512xf32>
    %120 = vector.extract_strided_slice %7 {offsets = [0, 384], sizes = [16, 128], strides = [1, 1]} : vector<16x1536xf32> to vector<16x128xf32>
    %cst_44 = arith.constant 0.0883883461 : f32
    %121 = vector.broadcast %cst_44 : f32 to vector<16x128xf32>
    %122 = arith.mulf %120, %121 : vector<16x128xf32>
    %123 = vector.shape_cast %122 : vector<16x128xf32> to vector<2x8x128xf32>
    %124 = arith.truncf %123 : vector<2x8x128xf32> to vector<2x8x128xbf16>
    %125 = vector.extract_strided_slice %7 {offsets = [0, 896], sizes = [16, 128], strides = [1, 1]} : vector<16x1536xf32> to vector<16x128xf32>
    %126 = vector.shape_cast %125 : vector<16x128xf32> to vector<2x8x128xf32>
    %127 = arith.truncf %126 : vector<2x8x128xf32> to vector<2x8x128xbf16>
    %128 = vector.extract_strided_slice %7 {offsets = [0, 1408], sizes = [16, 128], strides = [1, 1]} : vector<16x1536xf32> to vector<16x128xf32>
    %129 = vector.shape_cast %128 : vector<16x128xf32> to vector<2x8x128xf32>
    %130 = arith.truncf %129 : vector<2x8x128xf32> to vector<2x8x128xbf16>
    "tpu.trace_start"() <{level = 10 : i32, message = "bqd,bkd->bqk"}> : () -> ()
    %cst_45 = arith.constant dense<0.000000e+00> : vector<2x8x8xf32>
    %131 = tpu.matmul %124, %127, %cst_45 {dimension_numbers = #tpu.dot_dimension_numbers<[2], [2], [1], [1], [0, 0, 0, 1, 1, 1], [0], [0]>} : vector<2x8x128xbf16>, vector<2x8x128xbf16>, vector<2x8x8xf32> -> vector<2x8x8xf32>
    "tpu.trace_stop"() : () -> ()
    %132 = vector.broadcast %2 : vector<2x1x8xf32> to vector<2x8x8xf32>
    %133 = arith.addf %131, %132 : vector<2x8x8xf32>
    %cst_46 = arith.constant dense<0xFF800000> : vector<2x8xf32>
    %134 = vector.multi_reduction <maximumf>, %133, %cst_46 [2] : vector<2x8x8xf32> to vector<2x8xf32>
    %135 = vector.shape_cast %134 : vector<2x8xf32> to vector<2x8x1xf32>
    %136 = vector.broadcast %135 : vector<2x8x1xf32> to vector<2x8x8xf32>
    %137 = arith.subf %133, %136 : vector<2x8x8xf32>
    %138 = math.exp %137 : vector<2x8x8xf32>
    %cst_47 = arith.constant dense<0.000000e+00> : vector<2x8xf32>
    %139 = vector.multi_reduction <add>, %138, %cst_47 [2] : vector<2x8x8xf32> to vector<2x8xf32>
    %140 = vector.shape_cast %139 : vector<2x8xf32> to vector<2x8x1xf32>
    %141 = tpu.reciprocal %140 {approx = true} : vector<2x8x1xf32> -> vector<2x8x1xf32>
    %142 = vector.broadcast %141 : vector<2x8x1xf32> to vector<2x8x8xf32>
    %143 = arith.mulf %138, %142 : vector<2x8x8xf32>
    %144 = arith.truncf %143 : vector<2x8x8xf32> to vector<2x8x8xbf16>
    "tpu.trace_start"() <{level = 10 : i32, message = "bqk,bkd->bqd"}> : () -> ()
    %cst_48 = arith.constant dense<0.000000e+00> : vector<2x8x128xf32>
    %145 = tpu.matmul %144, %130, %cst_48 {dimension_numbers = #tpu.dot_dimension_numbers<[2], [1], [1], [2], [0, 0, 0, 1, 1, 2], [0], [0]>} : vector<2x8x8xbf16>, vector<2x8x128xbf16>, vector<2x8x128xf32> -> vector<2x8x128xf32>
    "tpu.trace_stop"() : () -> ()
    %146 = vector.shape_cast %145 : vector<2x8x128xf32> to vector<16x128xf32>
    %147 = arith.truncf %146 : vector<16x128xf32> to vector<16x128xbf16>
    %c384 = arith.constant 384 : index
    %c0_49 = arith.constant 0 : index
    %148 = vector.load %arg7[%c384, %c0_49] : memref<512x128xbf16, #tpu.memory_space<vmem>>, vector<128x128xbf16>
    %cst_50 = arith.constant dense<0.000000e+00> : vector<16x128xf32>
    %149 = tpu.matmul %147, %148, %cst_50 {dimension_numbers = #tpu.dot_dimension_numbers<[1], [0], [0], [1], [0, 0, 1, 1], [], []>} : vector<16x128xbf16>, vector<128x128xbf16>, vector<16x128xf32> -> vector<16x128xf32>
    %150 = arith.addf %112, %149 : vector<16x128xf32>
    %cst_51 = arith.constant dense<0.000000e+00> : vector<2x128xf32>
    %151 = vector.multi_reduction <add>, %145, %cst_51 [1] : vector<2x8x128xf32> to vector<2x128xf32>
    %cst_52 = arith.constant 8.000000e+00 : f32
    %152 = vector.broadcast %cst_52 : f32 to vector<2x128xf32>
    %153 = arith.divf %151, %152 : vector<2x128xf32>
    %154 = arith.truncf %153 : vector<2x128xf32> to vector<2x128xbf16>
    %c384_53 = arith.constant 384 : index
    %c0_54 = arith.constant 0 : index
    %155 = vector.load %arg5[%c384_53, %c0_54] : memref<512x512xbf16, #tpu.memory_space<vmem>>, vector<128x512xbf16>
    %cst_55 = arith.constant dense<0.000000e+00> : vector<2x512xf32>
    %156 = tpu.matmul %154, %155, %cst_55 {dimension_numbers = #tpu.dot_dimension_numbers<[1], [0], [0], [1], [0, 0, 1, 1], [], []>} : vector<2x128xbf16>, vector<128x512xbf16>, vector<2x512xf32> -> vector<2x512xf32>
    %157 = arith.addf %119, %156 : vector<2x512xf32>
    %c0_56 = arith.constant 0 : index
    %c0_57 = arith.constant 0 : index
    %158 = vector.load %arg6[%c0_56, %c0_57] : memref<1x512xf32, #tpu.memory_space<vmem>>, vector<1x512xf32>
    %159 = vector.broadcast %158 : vector<1x512xf32> to vector<2x512xf32>
    %160 = arith.addf %157, %159 : vector<2x512xf32>
    %c0_58 = arith.constant 0 : index
    %c0_59 = arith.constant 0 : index
    %161 = vector.load %arg16[%c0_58, %c0_59] : memref<2x512xf32, #tpu.memory_space<vmem>>, vector<2x512xf32>
    tpu.vector_store %arg16[%c0_58, %c0_59], %160 {strides = array<i32>} : memref<2x512xf32, #tpu.memory_space<vmem>>, vector<2x512xf32>,
    %c0_60 = arith.constant 0 : index
    %c0_61 = arith.constant 0 : index
    %162 = vector.load %arg8[%c0_60, %c0_61] : memref<1x128xf32, #tpu.memory_space<vmem>>, vector<1x128xf32>
    %163 = vector.broadcast %162 : vector<1x128xf32> to vector<16x128xf32>
    %164 = arith.addf %150, %163 : vector<16x128xf32>
    %165 = vector.shape_cast %164 : vector<16x128xf32> to vector<2x8x128xf32>
    %cst_62 = arith.constant dense<0.000000e+00> : vector<2x128xf32>
    %166 = vector.multi_reduction <add>, %165, %cst_62 [1] : vector<2x8x128xf32> to vector<2x128xf32>
    %cst_63 = arith.constant 8.000000e+00 : f32
    %167 = vector.broadcast %cst_63 : f32 to vector<2x128xf32>
    %168 = arith.divf %166, %167 : vector<2x128xf32>
    %c0_64 = arith.constant 0 : index
    %c0_65 = arith.constant 0 : index
    %169 = vector.load %arg17[%c0_64, %c0_65] : memref<2x128xf32, #tpu.memory_space<vmem>>, vector<2x128xf32>
    tpu.vector_store %arg17[%c0_64, %c0_65], %168 {strides = array<i32>} : memref<2x128xf32, #tpu.memory_space<vmem>>, vector<2x128xf32>,
    %170 = arith.truncf %164 : vector<16x128xf32> to vector<16x128xbf16>
    %c0_66 = arith.constant 0 : index
    %c0_67 = arith.constant 0 : index
    %171 = vector.load %arg9[%c0_66, %c0_67] : memref<128x128xbf16, #tpu.memory_space<vmem>>, vector<128x128xbf16>
    %cst_68 = arith.constant dense<0.000000e+00> : vector<16x128xf32>
    %172 = tpu.matmul %170, %171, %cst_68 {dimension_numbers = #tpu.dot_dimension_numbers<[1], [0], [0], [1], [0, 0, 1, 1], [], []>} : vector<16x128xbf16>, vector<128x128xbf16>, vector<16x128xf32> -> vector<16x128xf32>
    %c0_69 = arith.constant 0 : index
    %c0_70 = arith.constant 0 : index
    %173 = vector.load %arg10[%c0_69, %c0_70] : memref<1x128xf32, #tpu.memory_space<vmem>>, vector<1x128xf32>
    %174 = vector.broadcast %173 : vector<1x128xf32> to vector<16x128xf32>
    %175 = arith.addf %172, %174 : vector<16x128xf32>
    %cst_71 = arith.constant 0.000000e+00 : f32
    %176 = vector.broadcast %cst_71 : f32 to vector<16x128xf32>
    %177 = arith.maximumf %175, %176 : vector<16x128xf32>
    %178 = vector.shape_cast %177 : vector<16x128xf32> to vector<2x8x128xf32>
    %c0_72 = arith.constant 0 : index
    %c0_73 = arith.constant 0 : index
    %179 = vector.load %arg11[%c0_72, %c0_73] : memref<1x128xf32, #tpu.memory_space<vmem>>, vector<1x128xf32>
    %180 = vector.shape_cast %179 : vector<1x128xf32> to vector<1x1x128xf32>
    %181 = vector.broadcast %180 : vector<1x1x128xf32> to vector<2x8x128xf32>
    %182 = arith.mulf %178, %181 : vector<2x8x128xf32>
    %cst_74 = arith.constant dense<0.000000e+00> : vector<2x8xf32>
    %183 = vector.multi_reduction <add>, %182, %cst_74 [2] : vector<2x8x128xf32> to vector<2x8xf32>
    %c0_75 = arith.constant 0 : index
    %c0_76 = arith.constant 0 : index
    %184 = vector.load %arg12[%c0_75, %c0_76] : memref<1x1xf32, #tpu.memory_space<vmem>>, vector<1x1xf32>
    %185 = vector.broadcast %184 : vector<1x1xf32> to vector<2x8xf32>
    %186 = arith.addf %183, %185 : vector<2x8xf32>
    %cst_77 = arith.constant dense<0xFF800000> : vector<2xf32>
    %187 = vector.multi_reduction <maximumf>, %186, %cst_77 [1] : vector<2x8xf32> to vector<2xf32>
    %188 = vector.shape_cast %187 : vector<2xf32> to vector<2x1xf32>
    %189 = vector.broadcast %188 : vector<2x1xf32> to vector<2x8xf32>
    %190 = arith.subf %186, %189 : vector<2x8xf32>
    %191 = math.exp %190 : vector<2x8xf32>
    %cst_78 = arith.constant dense<0.000000e+00> : vector<2xf32>
    %192 = vector.multi_reduction <add>, %191, %cst_78 [1] : vector<2x8xf32> to vector<2xf32>
    %193 = vector.shape_cast %192 : vector<2xf32> to vector<2x1xf32>
    %194 = tpu.reciprocal %193 {approx = true} : vector<2x1xf32> -> vector<2x1xf32>
    %195 = vector.broadcast %194 : vector<2x1xf32> to vector<2x8xf32>
    %196 = arith.mulf %191, %195 : vector<2x8xf32>
    %c0_79 = arith.constant 0 : index
    %c0_80 = arith.constant 0 : index
    %197 = vector.load %arg19[%c0_79, %c0_80] : memref<2x8xf32, #tpu.memory_space<vmem>>, vector<2x8xf32>
    tpu.vector_store %arg19[%c0_79, %c0_80], %196 {strides = array<i32>} : memref<2x8xf32, #tpu.memory_space<vmem>>, vector<2x8xf32>,
    %198 = vector.shape_cast %196 : vector<2x8xf32> to vector<2x8x1xf32>
    %199 = vector.broadcast %198 : vector<2x8x1xf32> to vector<2x8x128xf32>
    %200 = arith.mulf %165, %199 : vector<2x8x128xf32>
    %cst_81 = arith.constant dense<0.000000e+00> : vector<2x128xf32>
    %201 = vector.multi_reduction <add>, %200, %cst_81 [1] : vector<2x8x128xf32> to vector<2x128xf32>
    %c0_82 = arith.constant 0 : index
    %c0_83 = arith.constant 0 : index
    %202 = vector.load %arg18[%c0_82, %c0_83] : memref<2x128xf32, #tpu.memory_space<vmem>>, vector<2x128xf32>
    tpu.vector_store %arg18[%c0_82, %c0_83], %201 {strides = array<i32>} : memref<2x128xf32, #tpu.memory_space<vmem>>, vector<2x128xf32>,
    %c0_84 = arith.constant 0 : index
    %c0_85 = arith.constant 0 : index
    %203 = vector.load %arg13[%c0_84, %c0_85] : memref<128x10xf32, #tpu.memory_space<vmem>>, vector<128x10xf32>
    %cst_86 = arith.constant dense<0.000000e+00> : vector<2x10xf32>
    %204 = tpu.matmul %201, %203, %cst_86 {dimension_numbers = #tpu.dot_dimension_numbers<[1], [0], [0], [1], [0, 0, 1, 1], [], []>} : vector<2x128xf32>, vector<128x10xf32>, vector<2x10xf32> -> vector<2x10xf32>
    %c0_87 = arith.constant 0 : index
    %c0_88 = arith.constant 0 : index
    %205 = vector.load %arg14[%c0_87, %c0_88] : memref<1x10xf32, #tpu.memory_space<vmem>>, vector<1x10xf32>
    %206 = vector.broadcast %205 : vector<1x10xf32> to vector<2x10xf32>
    %207 = arith.addf %204, %206 : vector<2x10xf32>
    %c0_89 = arith.constant 0 : index
    %c0_90 = arith.constant 0 : index
    %208 = vector.load %arg15[%c0_89, %c0_90] : memref<2x10xf32, #tpu.memory_space<vmem>>, vector<2x10xf32>
    tpu.vector_store %arg15[%c0_89, %c0_90], %207 {strides = array<i32>} : memref<2x10xf32, #tpu.memory_space<vmem>>, vector<2x10xf32>,
    return
  }
  func.func @transform_0(%arg0: i32) -> (i32, i32) {
    %c0_i32 = arith.constant 0 : i32
    %c0_i32_0 = arith.constant 0 : i32
    return %arg0, %c0_i32 : i32, i32
  }
  func.func @transform_1(%arg0: i32) -> (i32, i32) {
    %c0_i32 = arith.constant 0 : i32
    %c0_i32_0 = arith.constant 0 : i32
    return %arg0, %c0_i32 : i32, i32
  }
  func.func @transform_2(%arg0: i32) -> (i32, i32) {
    %c0_i32 = arith.constant 0 : i32
    %c0_i32_0 = arith.constant 0 : i32
    %c0_i32_1 = arith.constant 0 : i32
    return %c0_i32, %c0_i32_0 : i32, i32
  }
  func.func @transform_3(%arg0: i32) -> (i32, i32) {
    %c0_i32 = arith.constant 0 : i32
    %c0_i32_0 = arith.constant 0 : i32
    %c0_i32_1 = arith.constant 0 : i32
    return %c0_i32, %c0_i32_0 : i32, i32
  }
  func.func @transform_4(%arg0: i32) -> (i32, i32) {
    %c0_i32 = arith.constant 0 : i32
    %c0_i32_0 = arith.constant 0 : i32
    %c0_i32_1 = arith.constant 0 : i32
    return %c0_i32, %c0_i32_0 : i32, i32
  }
  func.func @transform_5(%arg0: i32) -> (i32, i32) {
    %c0_i32 = arith.constant 0 : i32
    %c0_i32_0 = arith.constant 0 : i32
    %c0_i32_1 = arith.constant 0 : i32
    return %c0_i32, %c0_i32_0 : i32, i32
  }
  func.func @transform_6(%arg0: i32) -> (i32, i32) {
    %c0_i32 = arith.constant 0 : i32
    %c0_i32_0 = arith.constant 0 : i32
    %c0_i32_1 = arith.constant 0 : i32
    return %c0_i32, %c0_i32_0 : i32, i32
  }
  func.func @transform_7(%arg0: i32) -> (i32, i32) {
    %c0_i32 = arith.constant 0 : i32
    %c0_i32_0 = arith.constant 0 : i32
    %c0_i32_1 = arith.constant 0 : i32
    return %c0_i32, %c0_i32_0 : i32, i32
  }
  func.func @transform_8(%arg0: i32) -> (i32, i32) {
    %c0_i32 = arith.constant 0 : i32
    %c0_i32_0 = arith.constant 0 : i32
    %c0_i32_1 = arith.constant 0 : i32
    return %c0_i32, %c0_i32_0 : i32, i32
  }
  func.func @transform_9(%arg0: i32) -> (i32, i32) {
    %c0_i32 = arith.constant 0 : i32
    %c0_i32_0 = arith.constant 0 : i32
    %c0_i32_1 = arith.constant 0 : i32
    return %c0_i32, %c0_i32_0 : i32, i32
  }
  func.func @transform_10(%arg0: i32) -> (i32, i32) {
    %c0_i32 = arith.constant 0 : i32
    %c0_i32_0 = arith.constant 0 : i32
    %c0_i32_1 = arith.constant 0 : i32
    return %c0_i32, %c0_i32_0 : i32, i32
  }
  func.func @transform_11(%arg0: i32) -> (i32, i32) {
    %c0_i32 = arith.constant 0 : i32
    %c0_i32_0 = arith.constant 0 : i32
    %c0_i32_1 = arith.constant 0 : i32
    return %c0_i32, %c0_i32_0 : i32, i32
  }
  func.func @transform_12(%arg0: i32) -> (i32, i32) {
    %c0_i32 = arith.constant 0 : i32
    %c0_i32_0 = arith.constant 0 : i32
    %c0_i32_1 = arith.constant 0 : i32
    return %c0_i32, %c0_i32_0 : i32, i32
  }
  func.func @transform_13(%arg0: i32) -> (i32, i32) {
    %c0_i32 = arith.constant 0 : i32
    %c0_i32_0 = arith.constant 0 : i32
    %c0_i32_1 = arith.constant 0 : i32
    return %c0_i32, %c0_i32_0 : i32, i32
  }
  func.func @transform_14(%arg0: i32) -> (i32, i32) {
    %c0_i32 = arith.constant 0 : i32
    %c0_i32_0 = arith.constant 0 : i32
    return %arg0, %c0_i32 : i32, i32
  }
  func.func @transform_15(%arg0: i32) -> (i32, i32) {
    %c0_i32 = arith.constant 0 : i32
    %c0_i32_0 = arith.constant 0 : i32
    return %arg0, %c0_i32 : i32, i32
  }
  func.func @transform_16(%arg0: i32) -> (i32, i32) {
    %c0_i32 = arith.constant 0 : i32
    %c0_i32_0 = arith.constant 0 : i32
    return %arg0, %c0_i32 : i32, i32
  }
  func.func @transform_17(%arg0: i32) -> (i32, i32) {
    %c0_i32 = arith.constant 0 : i32
    %c0_i32_0 = arith.constant 0 : i32
    return %arg0, %c0_i32 : i32, i32
  }
  func.func @transform_18(%arg0: i32) -> (i32, i32) {
    %c0_i32 = arith.constant 0 : i32
    %c0_i32_0 = arith.constant 0 : i32
    return %arg0, %c0_i32 : i32, i32
  }
}

</mosaic_0001>

<llo_original>
// kernel: classifier_forward.1
$region0: #{classifier_forward.1}
  #allocation0 [shape = 'u32[]', space=smem, size = 0x4, offset = 0x4, fixed_abs, tag = 'smem constant byte address 0x4 - core index']
  #allocation1 [shape = 'u32[72,128]{1,0:T(1,128)}', space=vmem, size = 0x9000, scoped, tag = 'internal scratch']
  #allocation2 [shape = 'f32[1,1]{1,0:T(1,128)S(1)}', space=vmem, size = 0x200, scoped, tag = 'scoped memory for classifier_forward.1']
  %s0 = inlined_call_operand.vmem [shape: bf16[16,512], index: 0, kind: input, shape index: {}]
  %s1 = inlined_call_operand.vmem [shape: f32[2,8], index: 1, kind: input, shape index: {}]
  %s2 = inlined_call_operand.vmem [shape: bf16[512,1536], index: 2, kind: input, shape index: {}]
  %s3 = inlined_call_operand.vmem [shape: f32[1,1536], index: 3, kind: input, shape index: {}]
  %s4 = inlined_call_operand.vmem [shape: bf16[512,512], index: 4, kind: input, shape index: {}]
  %s5 = inlined_call_operand.vmem [shape: f32[1,512], index: 5, kind: input, shape index: {}]
  %s6 = inlined_call_operand.vmem [shape: bf16[512,128], index: 6, kind: input, shape index: {}]
  %s7 = inlined_call_operand.vmem [shape: f32[1,128], index: 7, kind: input, shape index: {}]
  %s8 = inlined_call_operand.vmem [shape: bf16[128,128], index: 8, kind: input, shape index: {}]
  %s9 = inlined_call_operand.vmem [shape: f32[1,128], index: 9, kind: input, shape index: {}]
  %s10 = inlined_call_operand.vmem [shape: f32[1,128], index: 10, kind: input, shape index: {}]
  %s11 = inlined_call_operand.<no memory space> [shape: f32[1,1], index: 11, kind: input, shape index: {}]
  %s12 = inlined_call_operand.vmem [shape: f32[128,10], index: 12, kind: input, shape index: {}]
  %s13 = inlined_call_operand.vmem [shape: f32[1,10], index: 13, kind: input, shape index: {}]
  %s14 = inlined_call_operand.hbm [shape: f32[2,10], index: 14, kind: output, shape index: {0}]
  %s15 = inlined_call_operand.hbm [shape: f32[2,512], index: 15, kind: output, shape index: {1}]
  %s16 = inlined_call_operand.hbm [shape: f32[2,128], index: 16, kind: output, shape index: {2}]
  %s17 = inlined_call_operand.hbm [shape: f32[2,128], index: 17, kind: output, shape index: {3}]
  %s18 = inlined_call_operand.hbm [shape: f32[2,8], index: 18, kind: output, shape index: {4}]
  %19 = xla_tuple %s14, %s15, %s16, %s17, %s18
  %s20 = sld [smem:[#allocation0]]
  $region98: #{classifier_forward.1} parent=0
    _
  %s22 = ssub.s32 1, %s20
  %s23 = scalar_select 0, %s22, %s20
  %v24 = vstv %s11
  %25 = vst [vmem:[#allocation2] sm:$0x1] %v24
  $region1: #{classifier_forward.1} parent=0
    #allocation3 [shape = 'u8[1024]{0}', space=vmem, size = 0x400, scoped, tag = 'output window, operand 0, single buffered']
    #allocation4 [shape = 's32[1]{0}', space=sflag, size = 0x4, scoped, tag = 'scoped memory for classifier_forward.1']
    #allocation5 [shape = 'u8[4096]{0}', space=vmem, size = 0x1000, scoped, tag = 'output window, operand 1, single buffered']
    #allocation6 [shape = 's32[1]{0}', space=sflag, size = 0x4, scoped, tag = 'scoped memory for classifier_forward.1']
    #allocation7 [shape = 'u8[1024]{0}', space=vmem, size = 0x400, scoped, tag = 'output window, operand 2, single buffered']
    #allocation8 [shape = 'u8[1024]{0}', space=vmem, size = 0x400, scoped, tag = 'output window, operand 3, single buffered']
    #allocation9 [shape = 's32[1]{0}', space=sflag, size = 0x4, scoped, tag = 'scoped memory for classifier_forward.1']
    #allocation10 [shape = 'u8[1024]{0}', space=vmem, size = 0x400, scoped, tag = 'output window, operand 4, single buffered']
    %26 = vsyncpa [#allocation4], 0
    %27 = vsyncpa [#allocation6], 0
    %28 = vsyncpa [#allocation9], 0
    // Predicated region
    $region2: #{classifier_forward.1} parent=1 // pred_check
      _
    $region3: #{classifier_forward.1} parent=1 // pred_check_branch
      %30 = sbr.rel (0) target = $region5
    $region4: #{classifier_forward.1} parent=1 // pred_region
      _
    $region5: #{classifier_forward.1} parent=1 // pred_fallthru
      _
    // Predicated region
    $region6: #{classifier_forward.1} parent=1 // pred_check
      _
    $region7: #{classifier_forward.1} parent=1 // pred_check_branch
      %32 = sbr.rel (0) target = $region9
    $region8: #{classifier_forward.1} parent=1 // pred_region
      _
    $region9: #{classifier_forward.1} parent=1 // pred_fallthru
      _
    // Predicated region
    $region10: #{classifier_forward.1} parent=1 // pred_check
      _
    $region11: #{classifier_forward.1} parent=1 // pred_check_branch
      %34 = sbr.rel (0) target = $region13
    $region12: #{classifier_forward.1} parent=1 // pred_region
      _
    $region13: #{classifier_forward.1} parent=1 // pred_fallthru
      _
    // Predicated region
    $region14: #{classifier_forward.1} parent=1 // pred_check
      _
    $region15: #{classifier_forward.1} parent=1 // pred_check_branch
      %36 = sbr.rel (0) target = $region17
    $region16: #{classifier_forward.1} parent=1 // pred_region
      _
    $region17: #{classifier_forward.1} parent=1 // pred_fallthru
      _
    // Predicated region
    $region18: #{classifier_forward.1} parent=1 // pred_check
      _
    $region19: #{classifier_forward.1} parent=1 // pred_check_branch
      %38 = sbr.rel (0) target = $region21
    $region20: #{classifier_forward.1} parent=1 // pred_region
      _
    $region21: #{classifier_forward.1} parent=1 // pred_fallthru
      _
    // Predicated region
    $region22: #{classifier_forward.1} parent=1 // pred_check
      _
    $region23: #{classifier_forward.1} parent=1 // pred_check_branch
      %40 = sbr.rel (0) target = $region25
    $region24: #{classifier_forward.1} parent=1 // pred_region
      _
    $region25: #{classifier_forward.1} parent=1 // pred_fallthru
      _
    // Predicated region
    $region26: #{classifier_forward.1} parent=1 // pred_check
      _
    $region27: #{classifier_forward.1} parent=1 // pred_check_branch
      %42 = sbr.rel (0) target = $region29
    $region28: #{classifier_forward.1} parent=1 // pred_region
      _
    $region29: #{classifier_forward.1} parent=1 // pred_fallthru
      _
    // Predicated region
    $region30: #{classifier_forward.1} parent=1 // pred_check
      _
    $region31: #{classifier_forward.1} parent=1 // pred_check_branch
      %44 = sbr.rel (0) target = $region33
    $region32: #{classifier_forward.1} parent=1 // pred_region
      _
    $region33: #{classifier_forward.1} parent=1 // pred_fallthru
      _
    // Predicated region
    $region34: #{classifier_forward.1} parent=1 // pred_check
      _
    $region35: #{classifier_forward.1} parent=1 // pred_check_branch
      %46 = sbr.rel (0) target = $region37
    $region36: #{classifier_forward.1} parent=1 // pred_region
      _
    $region37: #{classifier_forward.1} parent=1 // pred_fallthru
      _
    // Predicated region
    $region38: #{classifier_forward.1} parent=1 // pred_check
      _
    $region39: #{classifier_forward.1} parent=1 // pred_check_branch
      %48 = sbr.rel (0) target = $region41
    $region40: #{classifier_forward.1} parent=1 // pred_region
      _
    $region41: #{classifier_forward.1} parent=1 // pred_fallthru
      _
    // Predicated region
    $region42: #{classifier_forward.1} parent=1 // pred_check
      _
    $region43: #{classifier_forward.1} parent=1 // pred_check_branch
      %50 = sbr.rel (0) target = $region45
    $region44: #{classifier_forward.1} parent=1 // pred_region
      _
    $region45: #{classifier_forward.1} parent=1 // pred_fallthru
      _
    // Predicated region
    $region46: #{classifier_forward.1} parent=1 // pred_check
      _
    $region47: #{classifier_forward.1} parent=1 // pred_check_branch
      %52 = sbr.rel (0) target = $region49
    $region48: #{classifier_forward.1} parent=1 // pred_region
      _
    $region49: #{classifier_forward.1} parent=1 // pred_fallthru
      _
    // Predicated region
    $region50: #{classifier_forward.1} parent=1 // pred_check
      _
    $region51: #{classifier_forward.1} parent=1 // pred_check_branch
      %54 = sbr.rel (0) target = $region53
    $region52: #{classifier_forward.1} parent=1 // pred_region
      _
    $region53: #{classifier_forward.1} parent=1 // pred_fallthru
      _
    // Predicated region
    $region54: #{classifier_forward.1} parent=1 // pred_check
      _
    $region55: #{classifier_forward.1} parent=1 // pred_check_branch
      %56 = sbr.rel (0) target = $region57
    $region56: #{classifier_forward.1} parent=1 // pred_region
      _
    $region57: #{classifier_forward.1} parent=1 // pred_fallthru
      _
    %v58 = vld [vmem:[%s0] sm:$0xff]
    %v59 = vld [vmem:[%s0 + $0x8] sm:$0xff]
    %v60 = vld [vmem:[%s0 + $0x10] sm:$0xff]
    %v61 = vld [vmem:[%s0 + $0x18] sm:$0xff]
    %v62 = vld [vmem:[%s1] sm:$0x3]
    %v64 = vrot.slane %v62, 1
    %v65 = vld [vmem:[%s2] sm:$0xff]
    %v66 = vld [vmem:[%s2 + $0x8] sm:$0xff]
    %v67 = vld [vmem:[%s2 + $0x10] sm:$0xff]
    %v68 = vld [vmem:[%s2 + $0x18] sm:$0xff]
    %v69 = vld [vmem:[%s2 + $0x20] sm:$0xff]
    %v70 = vld [vmem:[%s2 + $0x28] sm:$0xff]
    %v71 = vld [vmem:[%s2 + $0x30] sm:$0xff]
    %v72 = vld [vmem:[%s2 + $0x38] sm:$0xff]
    %v73 = vld [vmem:[%s2 + $0x40] sm:$0xff]
    %v74 = vld [vmem:[%s2 + $0x48] sm:$0xff]
    %v75 = vld [vmem:[%s2 + $0x50] sm:$0xff]
    %v76 = vld [vmem:[%s2 + $0x58] sm:$0xff]
    %v77 = vld [vmem:[%s2 + $0x60] sm:$0xff]
    %v78 = vld [vmem:[%s2 + $0x68] sm:$0xff]
    %v79 = vld [vmem:[%s2 + $0x70] sm:$0xff]
    %v80 = vld [vmem:[%s2 + $0x78] sm:$0xff]
    %v81 = vld [vmem:[%s2 + $0x80] sm:$0xff]
    %v82 = vld [vmem:[%s2 + $0x88] sm:$0xff]
    %v83 = vld [vmem:[%s2 + $0x90] sm:$0xff]
    %v84 = vld [vmem:[%s2 + $0x98] sm:$0xff]
    %v85 = vld [vmem:[%s2 + $0xa0] sm:$0xff]
    %v86 = vld [vmem:[%s2 + $0xa8] sm:$0xff]
    %v87 = vld [vmem:[%s2 + $0xb0] sm:$0xff]
    %v88 = vld [vmem:[%s2 + $0xb8] sm:$0xff]
    %v89 = vld [vmem:[%s2 + $0xc0] sm:$0xff]
    %v90 = vld [vmem:[%s2 + $0xc8] sm:$0xff]
    %v91 = vld [vmem:[%s2 + $0xd0] sm:$0xff]
    %v92 = vld [vmem:[%s2 + $0xd8] sm:$0xff]
    %v93 = vld [vmem:[%s2 + $0xe0] sm:$0xff]
    %v94 = vld [vmem:[%s2 + $0xe8] sm:$0xff]
    %v95 = vld [vmem:[%s2 + $0xf0] sm:$0xff]
    %v96 = vld [vmem:[%s2 + $0xf8] sm:$0xff]
    %v97 = vld [vmem:[%s2 + $0x100] sm:$0xff]
    %v98 = vld [vmem:[%s2 + $0x108] sm:$0xff]
    %v99 = vld [vmem:[%s2 + $0x110] sm:$0xff]
    %v100 = vld [vmem:[%s2 + $0x118] sm:$0xff]
    %v101 = vld [vmem:[%s2 + $0x120] sm:$0xff]
    %v102 = vld [vmem:[%s2 + $0x128] sm:$0xff]
    %v103 = vld [vmem:[%s2 + $0x130] sm:$0xff]
    %v104 = vld [vmem:[%s2 + $0x138] sm:$0xff]
    %v105 = vld [vmem:[%s2 + $0x140] sm:$0xff]
    %v106 = vld [vmem:[%s2 + $0x148] sm:$0xff]
    %v107 = vld [vmem:[%s2 + $0x150] sm:$0xff]
    %v108 = vld [vmem:[%s2 + $0x158] sm:$0xff]
    %v109 = vld [vmem:[%s2 + $0x160] sm:$0xff]
    %v110 = vld [vmem:[%s2 + $0x168] sm:$0xff]
    %v111 = vld [vmem:[%s2 + $0x170] sm:$0xff]
    %v112 = vld [vmem:[%s2 + $0x178] sm:$0xff]
    %v113 = vld [vmem:[%s2 + $0x180] sm:$0xff]
    %v114 = vld [vmem:[%s2 + $0x188] sm:$0xff]
    %v115 = vld [vmem:[%s2 + $0x190] sm:$0xff]
    %v116 = vld [vmem:[%s2 + $0x198] sm:$0xff]
    %v117 = vld [vmem:[%s2 + $0x1a0] sm:$0xff]
    %v118 = vld [vmem:[%s2 + $0x1a8] sm:$0xff]
    %v119 = vld [vmem:[%s2 + $0x1b0] sm:$0xff]
    %v120 = vld [vmem:[%s2 + $0x1b8] sm:$0xff]
    %v121 = vld [vmem:[%s2 + $0x1c0] sm:$0xff]
    %v122 = vld [vmem:[%s2 + $0x1c8] sm:$0xff]
    %v123 = vld [vmem:[%s2 + $0x1d0] sm:$0xff]
    %v124 = vld [vmem:[%s2 + $0x1d8] sm:$0xff]
    %v125 = vld [vmem:[%s2 + $0x1e0] sm:$0xff]
    %v126 = vld [vmem:[%s2 + $0x1e8] sm:$0xff]
    %v127 = vld [vmem:[%s2 + $0x1f0] sm:$0xff]
    %v128 = vld [vmem:[%s2 + $0x1f8] sm:$0xff]
    %v129 = vld [vmem:[%s2 + $0x200] sm:$0xff]
    %v130 = vld [vmem:[%s2 + $0x208] sm:$0xff]
    %v131 = vld [vmem:[%s2 + $0x210] sm:$0xff]
    %v132 = vld [vmem:[%s2 + $0x218] sm:$0xff]
    %v133 = vld [vmem:[%s2 + $0x220] sm:$0xff]
    %v134 = vld [vmem:[%s2 + $0x228] sm:$0xff]
    %v135 = vld [vmem:[%s2 + $0x230] sm:$0xff]
    %v136 = vld [vmem:[%s2 + $0x238] sm:$0xff]
    %v137 = vld [vmem:[%s2 + $0x240] sm:$0xff]
    %v138 = vld [vmem:[%s2 + $0x248] sm:$0xff]
    %v139 = vld [vmem:[%s2 + $0x250] sm:$0xff]
    %v140 = vld [vmem:[%s2 + $0x258] sm:$0xff]
    %v141 = vld [vmem:[%s2 + $0x260] sm:$0xff]
    %v142 = vld [vmem:[%s2 + $0x268] sm:$0xff]
    %v143 = vld [vmem:[%s2 + $0x270] sm:$0xff]
    %v144 = vld [vmem:[%s2 + $0x278] sm:$0xff]
    %v145 = vld [vmem:[%s2 + $0x280] sm:$0xff]
    %v146 = vld [vmem:[%s2 + $0x288] sm:$0xff]
    %v147 = vld [vmem:[%s2 + $0x290] sm:$0xff]
    %v148 = vld [vmem:[%s2 + $0x298] sm:$0xff]
    %v149 = vld [vmem:[%s2 + $0x2a0] sm:$0xff]
    %v150 = vld [vmem:[%s2 + $0x2a8] sm:$0xff]
    %v151 = vld [vmem:[%s2 + $0x2b0] sm:$0xff]
    %v152 = vld [vmem:[%s2 + $0x2b8] sm:$0xff]
    %v153 = vld [vmem:[%s2 + $0x2c0] sm:$0xff]
    %v154 = vld [vmem:[%s2 + $0x2c8] sm:$0xff]
    %v155 = vld [vmem:[%s2 + $0x2d0] sm:$0xff]
    %v156 = vld [vmem:[%s2 + $0x2d8] sm:$0xff]
    %v157 = vld [vmem:[%s2 + $0x2e0] sm:$0xff]
    %v158 = vld [vmem:[%s2 + $0x2e8] sm:$0xff]
    %v159 = vld [vmem:[%s2 + $0x2f0] sm:$0xff]
    %v160 = vld [vmem:[%s2 + $0x2f8] sm:$0xff]
    %v161 = vld [vmem:[%s2 + $0x300] sm:$0xff]
    %v162 = vld [vmem:[%s2 + $0x308] sm:$0xff]
    %v163 = vld [vmem:[%s2 + $0x310] sm:$0xff]
    %v164 = vld [vmem:[%s2 + $0x318] sm:$0xff]
    %v165 = vld [vmem:[%s2 + $0x320] sm:$0xff]
    %v166 = vld [vmem:[%s2 + $0x328] sm:$0xff]
    %v167 = vld [vmem:[%s2 + $0x330] sm:$0xff]
    %v168 = vld [vmem:[%s2 + $0x338] sm:$0xff]
    %v169 = vld [vmem:[%s2 + $0x340] sm:$0xff]
    %v170 = vld [vmem:[%s2 + $0x348] sm:$0xff]
    %v171 = vld [vmem:[%s2 + $0x350] sm:$0xff]
    %v172 = vld [vmem:[%s2 + $0x358] sm:$0xff]
    %v173 = vld [vmem:[%s2 + $0x360] sm:$0xff]
    %v174 = vld [vmem:[%s2 + $0x368] sm:$0xff]
    %v175 = vld [vmem:[%s2 + $0x370] sm:$0xff]
    %v176 = vld [vmem:[%s2 + $0x378] sm:$0xff]
    %v177 = vld [vmem:[%s2 + $0x380] sm:$0xff]
    %v178 = vld [vmem:[%s2 + $0x388] sm:$0xff]
    %v179 = vld [vmem:[%s2 + $0x390] sm:$0xff]
    %v180 = vld [vmem:[%s2 + $0x398] sm:$0xff]
    %v181 = vld [vmem:[%s2 + $0x3a0] sm:$0xff]
    %v182 = vld [vmem:[%s2 + $0x3a8] sm:$0xff]
    %v183 = vld [vmem:[%s2 + $0x3b0] sm:$0xff]
    %v184 = vld [vmem:[%s2 + $0x3b8] sm:$0xff]
    %v185 = vld [vmem:[%s2 + $0x3c0] sm:$0xff]
    %v186 = vld [vmem:[%s2 + $0x3c8] sm:$0xff]
    %v187 = vld [vmem:[%s2 + $0x3d0] sm:$0xff]
    %v188 = vld [vmem:[%s2 + $0x3d8] sm:$0xff]
    %v189 = vld [vmem:[%s2 + $0x3e0] sm:$0xff]
    %v190 = vld [vmem:[%s2 + $0x3e8] sm:$0xff]
    %v191 = vld [vmem:[%s2 + $0x3f0] sm:$0xff]
    %v192 = vld [vmem:[%s2 + $0x3f8] sm:$0xff]
    %v193 = vld [vmem:[%s2 + $0x400] sm:$0xff]
    %v194 = vld [vmem:[%s2 + $0x408] sm:$0xff]
    %v195 = vld [vmem:[%s2 + $0x410] sm:$0xff]
    %v196 = vld [vmem:[%s2 + $0x418] sm:$0xff]
    %v197 = vld [vmem:[%s2 + $0x420] sm:$0xff]
    %v198 = vld [vmem:[%s2 + $0x428] sm:$0xff]
    %v199 = vld [vmem:[%s2 + $0x430] sm:$0xff]
    %v200 = vld [vmem:[%s2 + $0x438] sm:$0xff]
    %v201 = vld [vmem:[%s2 + $0x440] sm:$0xff]
    %v202 = vld [vmem:[%s2 + $0x448] sm:$0xff]
    %v203 = vld [vmem:[%s2 + $0x450] sm:$0xff]
    %v204 = vld [vmem:[%s2 + $0x458] sm:$0xff]
    %v205 = vld [vmem:[%s2 + $0x460] sm:$0xff]
    %v206 = vld [vmem:[%s2 + $0x468] sm:$0xff]
    %v207 = vld [vmem:[%s2 + $0x470] sm:$0xff]
    %v208 = vld [vmem:[%s2 + $0x478] sm:$0xff]
    %v209 = vld [vmem:[%s2 + $0x480] sm:$0xff]
    %v210 = vld [vmem:[%s2 + $0x488] sm:$0xff]
    %v211 = vld [vmem:[%s2 + $0x490] sm:$0xff]
    %v212 = vld [vmem:[%s2 + $0x498] sm:$0xff]
    %v213 = vld [vmem:[%s2 + $0x4a0] sm:$0xff]
    %v214 = vld [vmem:[%s2 + $0x4a8] sm:$0xff]
    %v215 = vld [vmem:[%s2 + $0x4b0] sm:$0xff]
    %v216 = vld [vmem:[%s2 + $0x4b8] sm:$0xff]
    %v217 = vld [vmem:[%s2 + $0x4c0] sm:$0xff]
    %v218 = vld [vmem:[%s2 + $0x4c8] sm:$0xff]
    %v219 = vld [vmem:[%s2 + $0x4d0] sm:$0xff]
    %v220 = vld [vmem:[%s2 + $0x4d8] sm:$0xff]
    %v221 = vld [vmem:[%s2 + $0x4e0] sm:$0xff]
    %v222 = vld [vmem:[%s2 + $0x4e8] sm:$0xff]
    %v223 = vld [vmem:[%s2 + $0x4f0] sm:$0xff]
    %v224 = vld [vmem:[%s2 + $0x4f8] sm:$0xff]
    %v225 = vld [vmem:[%s2 + $0x500] sm:$0xff]
    %v226 = vld [vmem:[%s2 + $0x508] sm:$0xff]
    %v227 = vld [vmem:[%s2 + $0x510] sm:$0xff]
    %v228 = vld [vmem:[%s2 + $0x518] sm:$0xff]
    %v229 = vld [vmem:[%s2 + $0x520] sm:$0xff]
    %v230 = vld [vmem:[%s2 + $0x528] sm:$0xff]
    %v231 = vld [vmem:[%s2 + $0x530] sm:$0xff]
    %v232 = vld [vmem:[%s2 + $0x538] sm:$0xff]
    %v233 = vld [vmem:[%s2 + $0x540] sm:$0xff]
    %v234 = vld [vmem:[%s2 + $0x548] sm:$0xff]
    %v235 = vld [vmem:[%s2 + $0x550] sm:$0xff]
    %v236 = vld [vmem:[%s2 + $0x558] sm:$0xff]
    %v237 = vld [vmem:[%s2 + $0x560] sm:$0xff]
    %v238 = vld [vmem:[%s2 + $0x568] sm:$0xff]
    %v239 = vld [vmem:[%s2 + $0x570] sm:$0xff]
    %v240 = vld [vmem:[%s2 + $0x578] sm:$0xff]
    %v241 = vld [vmem:[%s2 + $0x580] sm:$0xff]
    %v242 = vld [vmem:[%s2 + $0x588] sm:$0xff]
    %v243 = vld [vmem:[%s2 + $0x590] sm:$0xff]
    %v244 = vld [vmem:[%s2 + $0x598] sm:$0xff]
    %v245 = vld [vmem:[%s2 + $0x5a0] sm:$0xff]
    %v246 = vld [vmem:[%s2 + $0x5a8] sm:$0xff]
    %v247 = vld [vmem:[%s2 + $0x5b0] sm:$0xff]
    %v248 = vld [vmem:[%s2 + $0x5b8] sm:$0xff]
    %v249 = vld [vmem:[%s2 + $0x5c0] sm:$0xff]
    %v250 = vld [vmem:[%s2 + $0x5c8] sm:$0xff]
    %v251 = vld [vmem:[%s2 + $0x5d0] sm:$0xff]
    %v252 = vld [vmem:[%s2 + $0x5d8] sm:$0xff]
    %v253 = vld [vmem:[%s2 + $0x5e0] sm:$0xff]
    %v254 = vld [vmem:[%s2 + $0x5e8] sm:$0xff]
    %v255 = vld [vmem:[%s2 + $0x5f0] sm:$0xff]
    %v256 = vld [vmem:[%s2 + $0x5f8] sm:$0xff]
    %v257 = vld [vmem:[%s2 + $0x600] sm:$0xff]
    %v258 = vld [vmem:[%s2 + $0x608] sm:$0xff]
    %v259 = vld [vmem:[%s2 + $0x610] sm:$0xff]
    %v260 = vld [vmem:[%s2 + $0x618] sm:$0xff]
    %v261 = vld [vmem:[%s2 + $0x620] sm:$0xff]
    %v262 = vld [vmem:[%s2 + $0x628] sm:$0xff]
    %v263 = vld [vmem:[%s2 + $0x630] sm:$0xff]
    %v264 = vld [vmem:[%s2 + $0x638] sm:$0xff]
    %v265 = vld [vmem:[%s2 + $0x640] sm:$0xff]
    %v266 = vld [vmem:[%s2 + $0x648] sm:$0xff]
    %v267 = vld [vmem:[%s2 + $0x650] sm:$0xff]
    %v268 = vld [vmem:[%s2 + $0x658] sm:$0xff]
    %v269 = vld [vmem:[%s2 + $0x660] sm:$0xff]
    %v270 = vld [vmem:[%s2 + $0x668] sm:$0xff]
    %v271 = vld [vmem:[%s2 + $0x670] sm:$0xff]
    %v272 = vld [vmem:[%s2 + $0x678] sm:$0xff]
    %v273 = vld [vmem:[%s2 + $0x680] sm:$0xff]
    %v274 = vld [vmem:[%s2 + $0x688] sm:$0xff]
    %v275 = vld [vmem:[%s2 + $0x690] sm:$0xff]
    %v276 = vld [vmem:[%s2 + $0x698] sm:$0xff]
    %v277 = vld [vmem:[%s2 + $0x6a0] sm:$0xff]
    %v278 = vld [vmem:[%s2 + $0x6a8] sm:$0xff]
    %v279 = vld [vmem:[%s2 + $0x6b0] sm:$0xff]
    %v280 = vld [vmem:[%s2 + $0x6b8] sm:$0xff]
    %v281 = vld [vmem:[%s2 + $0x6c0] sm:$0xff]
    %v282 = vld [vmem:[%s2 + $0x6c8] sm:$0xff]
    %v283 = vld [vmem:[%s2 + $0x6d0] sm:$0xff]
    %v284 = vld [vmem:[%s2 + $0x6d8] sm:$0xff]
    %v285 = vld [vmem:[%s2 + $0x6e0] sm:$0xff]
    %v286 = vld [vmem:[%s2 + $0x6e8] sm:$0xff]
    %v287 = vld [vmem:[%s2 + $0x6f0] sm:$0xff]
    %v288 = vld [vmem:[%s2 + $0x6f8] sm:$0xff]
    %v289 = vld [vmem:[%s2 + $0x700] sm:$0xff]
    %v290 = vld [vmem:[%s2 + $0x708] sm:$0xff]
    %v291 = vld [vmem:[%s2 + $0x710] sm:$0xff]
    %v292 = vld [vmem:[%s2 + $0x718] sm:$0xff]
    %v293 = vld [vmem:[%s2 + $0x720] sm:$0xff]
    %v294 = vld [vmem:[%s2 + $0x728] sm:$0xff]
    %v295 = vld [vmem:[%s2 + $0x730] sm:$0xff]
    %v296 = vld [vmem:[%s2 + $0x738] sm:$0xff]
    %v297 = vld [vmem:[%s2 + $0x740] sm:$0xff]
    %v298 = vld [vmem:[%s2 + $0x748] sm:$0xff]
    %v299 = vld [vmem:[%s2 + $0x750] sm:$0xff]
    %v300 = vld [vmem:[%s2 + $0x758] sm:$0xff]
    %v301 = vld [vmem:[%s2 + $0x760] sm:$0xff]
    %v302 = vld [vmem:[%s2 + $0x768] sm:$0xff]
    %v303 = vld [vmem:[%s2 + $0x770] sm:$0xff]
    %v304 = vld [vmem:[%s2 + $0x778] sm:$0xff]
    %v305 = vld [vmem:[%s2 + $0x780] sm:$0xff]
    %v306 = vld [vmem:[%s2 + $0x788] sm:$0xff]
    %v307 = vld [vmem:[%s2 + $0x790] sm:$0xff]
    %v308 = vld [vmem:[%s2 + $0x798] sm:$0xff]
    %v309 = vld [vmem:[%s2 + $0x7a0] sm:$0xff]
    %v310 = vld [vmem:[%s2 + $0x7a8] sm:$0xff]
    %v311 = vld [vmem:[%s2 + $0x7b0] sm:$0xff]
    %v312 = vld [vmem:[%s2 + $0x7b8] sm:$0xff]
    %v313 = vld [vmem:[%s2 + $0x7c0] sm:$0xff]
    %v314 = vld [vmem:[%s2 + $0x7c8] sm:$0xff]
    %v315 = vld [vmem:[%s2 + $0x7d0] sm:$0xff]
    %v316 = vld [vmem:[%s2 + $0x7d8] sm:$0xff]
    %v317 = vld [vmem:[%s2 + $0x7e0] sm:$0xff]
    %v318 = vld [vmem:[%s2 + $0x7e8] sm:$0xff]
    %v319 = vld [vmem:[%s2 + $0x7f0] sm:$0xff]
    %v320 = vld [vmem:[%s2 + $0x7f8] sm:$0xff]
    %v321 = vld [vmem:[%s2 + $0x800] sm:$0xff]
    %v322 = vld [vmem:[%s2 + $0x808] sm:$0xff]
    %v323 = vld [vmem:[%s2 + $0x810] sm:$0xff]
    %v324 = vld [vmem:[%s2 + $0x818] sm:$0xff]
    %v325 = vld [vmem:[%s2 + $0x820] sm:$0xff]
    %v326 = vld [vmem:[%s2 + $0x828] sm:$0xff]
    %v327 = vld [vmem:[%s2 + $0x830] sm:$0xff]
    %v328 = vld [vmem:[%s2 + $0x838] sm:$0xff]
    %v329 = vld [vmem:[%s2 + $0x840] sm:$0xff]
    %v330 = vld [vmem:[%s2 + $0x848] sm:$0xff]
    %v331 = vld [vmem:[%s2 + $0x850] sm:$0xff]
    %v332 = vld [vmem:[%s2 + $0x858] sm:$0xff]
    %v333 = vld [vmem:[%s2 + $0x860] sm:$0xff]
    %v334 = vld [vmem:[%s2 + $0x868] sm:$0xff]
    %v335 = vld [vmem:[%s2 + $0x870] sm:$0xff]
    %v336 = vld [vmem:[%s2 + $0x878] sm:$0xff]
    %v337 = vld [vmem:[%s2 + $0x880] sm:$0xff]
    %v338 = vld [vmem:[%s2 + $0x888] sm:$0xff]
    %v339 = vld [vmem:[%s2 + $0x890] sm:$0xff]
    %v340 = vld [vmem:[%s2 + $0x898] sm:$0xff]
    %v341 = vld [vmem:[%s2 + $0x8a0] sm:$0xff]
    %v342 = vld [vmem:[%s2 + $0x8a8] sm:$0xff]
    %v343 = vld [vmem:[%s2 + $0x8b0] sm:$0xff]
    %v344 = vld [vmem:[%s2 + $0x8b8] sm:$0xff]
    %v345 = vld [vmem:[%s2 + $0x8c0] sm:$0xff]
    %v346 = vld [vmem:[%s2 + $0x8c8] sm:$0xff]
    %v347 = vld [vmem:[%s2 + $0x8d0] sm:$0xff]
    %v348 = vld [vmem:[%s2 + $0x8d8] sm:$0xff]
    %v349 = vld [vmem:[%s2 + $0x8e0] sm:$0xff]
    %v350 = vld [vmem:[%s2 + $0x8e8] sm:$0xff]
    %v351 = vld [vmem:[%s2 + $0x8f0] sm:$0xff]
    %v352 = vld [vmem:[%s2 + $0x8f8] sm:$0xff]
    %v353 = vld [vmem:[%s2 + $0x900] sm:$0xff]
    %v354 = vld [vmem:[%s2 + $0x908] sm:$0xff]
    %v355 = vld [vmem:[%s2 + $0x910] sm:$0xff]
    %v356 = vld [vmem:[%s2 + $0x918] sm:$0xff]
    %v357 = vld [vmem:[%s2 + $0x920] sm:$0xff]
    %v358 = vld [vmem:[%s2 + $0x928] sm:$0xff]
    %v359 = vld [vmem:[%s2 + $0x930] sm:$0xff]
    %v360 = vld [vmem:[%s2 + $0x938] sm:$0xff]
    %v361 = vld [vmem:[%s2 + $0x940] sm:$0xff]
    %v362 = vld [vmem:[%s2 + $0x948] sm:$0xff]
    %v363 = vld [vmem:[%s2 + $0x950] sm:$0xff]
    %v364 = vld [vmem:[%s2 + $0x958] sm:$0xff]
    %v365 = vld [vmem:[%s2 + $0x960] sm:$0xff]
    %v366 = vld [vmem:[%s2 + $0x968] sm:$0xff]
    %v367 = vld [vmem:[%s2 + $0x970] sm:$0xff]
    %v368 = vld [vmem:[%s2 + $0x978] sm:$0xff]
    %v369 = vld [vmem:[%s2 + $0x980] sm:$0xff]
    %v370 = vld [vmem:[%s2 + $0x988] sm:$0xff]
    %v371 = vld [vmem:[%s2 + $0x990] sm:$0xff]
    %v372 = vld [vmem:[%s2 + $0x998] sm:$0xff]
    %v373 = vld [vmem:[%s2 + $0x9a0] sm:$0xff]
    %v374 = vld [vmem:[%s2 + $0x9a8] sm:$0xff]
    %v375 = vld [vmem:[%s2 + $0x9b0] sm:$0xff]
    %v376 = vld [vmem:[%s2 + $0x9b8] sm:$0xff]
    %v377 = vld [vmem:[%s2 + $0x9c0] sm:$0xff]
    %v378 = vld [vmem:[%s2 + $0x9c8] sm:$0xff]
    %v379 = vld [vmem:[%s2 + $0x9d0] sm:$0xff]
    %v380 = vld [vmem:[%s2 + $0x9d8] sm:$0xff]
    %v381 = vld [vmem:[%s2 + $0x9e0] sm:$0xff]
    %v382 = vld [vmem:[%s2 + $0x9e8] sm:$0xff]
    %v383 = vld [vmem:[%s2 + $0x9f0] sm:$0xff]
    %v384 = vld [vmem:[%s2 + $0x9f8] sm:$0xff]
    %v385 = vld [vmem:[%s2 + $0xa00] sm:$0xff]
    %v386 = vld [vmem:[%s2 + $0xa08] sm:$0xff]
    %v387 = vld [vmem:[%s2 + $0xa10] sm:$0xff]
    %v388 = vld [vmem:[%s2 + $0xa18] sm:$0xff]
    %v389 = vld [vmem:[%s2 + $0xa20] sm:$0xff]
    %v390 = vld [vmem:[%s2 + $0xa28] sm:$0xff]
    %v391 = vld [vmem:[%s2 + $0xa30] sm:$0xff]
    %v392 = vld [vmem:[%s2 + $0xa38] sm:$0xff]
    %v393 = vld [vmem:[%s2 + $0xa40] sm:$0xff]
    %v394 = vld [vmem:[%s2 + $0xa48] sm:$0xff]
    %v395 = vld [vmem:[%s2 + $0xa50] sm:$0xff]
    %v396 = vld [vmem:[%s2 + $0xa58] sm:$0xff]
    %v397 = vld [vmem:[%s2 + $0xa60] sm:$0xff]
    %v398 = vld [vmem:[%s2 + $0xa68] sm:$0xff]
    %v399 = vld [vmem:[%s2 + $0xa70] sm:$0xff]
    %v400 = vld [vmem:[%s2 + $0xa78] sm:$0xff]
    %v401 = vld [vmem:[%s2 + $0xa80] sm:$0xff]
    %v402 = vld [vmem:[%s2 + $0xa88] sm:$0xff]
    %v403 = vld [vmem:[%s2 + $0xa90] sm:$0xff]
    %v404 = vld [vmem:[%s2 + $0xa98] sm:$0xff]
    %v405 = vld [vmem:[%s2 + $0xaa0] sm:$0xff]
    %v406 = vld [vmem:[%s2 + $0xaa8] sm:$0xff]
    %v407 = vld [vmem:[%s2 + $0xab0] sm:$0xff]
    %v408 = vld [vmem:[%s2 + $0xab8] sm:$0xff]
    %v409 = vld [vmem:[%s2 + $0xac0] sm:$0xff]
    %v410 = vld [vmem:[%s2 + $0xac8] sm:$0xff]
    %v411 = vld [vmem:[%s2 + $0xad0] sm:$0xff]
    %v412 = vld [vmem:[%s2 + $0xad8] sm:$0xff]
    %v413 = vld [vmem:[%s2 + $0xae0] sm:$0xff]
    %v414 = vld [vmem:[%s2 + $0xae8] sm:$0xff]
    %v415 = vld [vmem:[%s2 + $0xaf0] sm:$0xff]
    %v416 = vld [vmem:[%s2 + $0xaf8] sm:$0xff]
    %v417 = vld [vmem:[%s2 + $0xb00] sm:$0xff]
    %v418 = vld [vmem:[%s2 + $0xb08] sm:$0xff]
    %v419 = vld [vmem:[%s2 + $0xb10] sm:$0xff]
    %v420 = vld [vmem:[%s2 + $0xb18] sm:$0xff]
    %v421 = vld [vmem:[%s2 + $0xb20] sm:$0xff]
    %v422 = vld [vmem:[%s2 + $0xb28] sm:$0xff]
    %v423 = vld [vmem:[%s2 + $0xb30] sm:$0xff]
    %v424 = vld [vmem:[%s2 + $0xb38] sm:$0xff]
    %v425 = vld [vmem:[%s2 + $0xb40] sm:$0xff]
    %v426 = vld [vmem:[%s2 + $0xb48] sm:$0xff]
    %v427 = vld [vmem:[%s2 + $0xb50] sm:$0xff]
    %v428 = vld [vmem:[%s2 + $0xb58] sm:$0xff]
    %v429 = vld [vmem:[%s2 + $0xb60] sm:$0xff]
    %v430 = vld [vmem:[%s2 + $0xb68] sm:$0xff]
    %v431 = vld [vmem:[%s2 + $0xb70] sm:$0xff]
    %v432 = vld [vmem:[%s2 + $0xb78] sm:$0xff]
    %v433 = vld [vmem:[%s2 + $0xb80] sm:$0xff]
    %v434 = vld [vmem:[%s2 + $0xb88] sm:$0xff]
    %v435 = vld [vmem:[%s2 + $0xb90] sm:$0xff]
    %v436 = vld [vmem:[%s2 + $0xb98] sm:$0xff]
    %v437 = vld [vmem:[%s2 + $0xba0] sm:$0xff]
    %v438 = vld [vmem:[%s2 + $0xba8] sm:$0xff]
    %v439 = vld [vmem:[%s2 + $0xbb0] sm:$0xff]
    %v440 = vld [vmem:[%s2 + $0xbb8] sm:$0xff]
    %v441 = vld [vmem:[%s2 + $0xbc0] sm:$0xff]
    %v442 = vld [vmem:[%s2 + $0xbc8] sm:$0xff]
    %v443 = vld [vmem:[%s2 + $0xbd0] sm:$0xff]
    %v444 = vld [vmem:[%s2 + $0xbd8] sm:$0xff]
    %v445 = vld [vmem:[%s2 + $0xbe0] sm:$0xff]
    %v446 = vld [vmem:[%s2 + $0xbe8] sm:$0xff]
    %v447 = vld [vmem:[%s2 + $0xbf0] sm:$0xff]
    %v448 = vld [vmem:[%s2 + $0xbf8] sm:$0xff]
    %v449 = vld [vmem:[%s3] sm:$0xff]
    %v450 = vld [vmem:[%s3 + $0x8] sm:$0xf]
    %v453 = vperm.slane %v449, 0
    %v454 = vperm.slane %v449, 1
    %v455 = vperm.slane %v449, 2
    %v456 = vperm.slane %v449, 3
    %v457 = vperm.slane %v449, 4
    %v458 = vperm.slane %v449, 5
    %v459 = vperm.slane %v449, 6
    %v460 = vperm.slane %v449, 7
    %v461 = vperm.slane %v450, 0
    %v462 = vperm.slane %v450, 1
    %v463 = vperm.slane %v450, 2
    %v464 = vperm.slane %v450, 3
    %v481 = vunpack.c.l.b16 %v58
    %v482 = vunpack.c.h.b16 %v58
    %v483 = vunpack.c.l.b16 %v59
    %v484 = vunpack.c.h.b16 %v59
    %v485 = vunpack.c.l.b16 %v60
    %v486 = vunpack.c.h.b16 %v60
    %v487 = vunpack.c.l.b16 %v61
    %v488 = vunpack.c.h.b16 %v61
    %v489 = vpack.c.b16 %v485, %v481
    %v490 = vpack.c.b16 %v486, %v482
    %v491 = vpack.c.b16 %v487, %v483
    %v492 = vpack.c.b16 %v488, %v484
    %v881 = vunpack.c.l.b16 %v65
    %v882 = vunpack.c.h.b16 %v65
    %v883 = vunpack.c.l.b16 %v66
    %v884 = vunpack.c.h.b16 %v66
    %v885 = vunpack.c.l.b16 %v67
    %v886 = vunpack.c.h.b16 %v67
    %v887 = vunpack.c.l.b16 %v68
    %v888 = vunpack.c.h.b16 %v68
    %v889 = vunpack.c.l.b16 %v69
    %v890 = vunpack.c.h.b16 %v69
    %v891 = vunpack.c.l.b16 %v70
    %v892 = vunpack.c.h.b16 %v70
    %v893 = vunpack.c.l.b16 %v71
    %v894 = vunpack.c.h.b16 %v71
    %v895 = vunpack.c.l.b16 %v72
    %v896 = vunpack.c.h.b16 %v72
    %v897 = vunpack.c.l.b16 %v73
    %v898 = vunpack.c.h.b16 %v73
    %v899 = vunpack.c.l.b16 %v74
    %v900 = vunpack.c.h.b16 %v74
    %v901 = vunpack.c.l.b16 %v75
    %v902 = vunpack.c.h.b16 %v75
    %v903 = vunpack.c.l.b16 %v76
    %v904 = vunpack.c.h.b16 %v76
    %v905 = vunpack.c.l.b16 %v77
    %v906 = vunpack.c.h.b16 %v77
    %v907 = vunpack.c.l.b16 %v78
    %v908 = vunpack.c.h.b16 %v78
    %v909 = vunpack.c.l.b16 %v79
    %v910 = vunpack.c.h.b16 %v79
    %v911 = vunpack.c.l.b16 %v80
    %v912 = vunpack.c.h.b16 %v80
    %v913 = vunpack.c.l.b16 %v81
    %v914 = vunpack.c.h.b16 %v81
    %v915 = vunpack.c.l.b16 %v82
    %v916 = vunpack.c.h.b16 %v82
    %v917 = vunpack.c.l.b16 %v83
    %v918 = vunpack.c.h.b16 %v83
    %v919 = vunpack.c.l.b16 %v84
    %v920 = vunpack.c.h.b16 %v84
    %v921 = vunpack.c.l.b16 %v85
    %v922 = vunpack.c.h.b16 %v85
    %v923 = vunpack.c.l.b16 %v86
    %v924 = vunpack.c.h.b16 %v86
    %v925 = vunpack.c.l.b16 %v87
    %v926 = vunpack.c.h.b16 %v87
    %v927 = vunpack.c.l.b16 %v88
    %v928 = vunpack.c.h.b16 %v88
    %v929 = vunpack.c.l.b16 %v89
    %v930 = vunpack.c.h.b16 %v89
    %v931 = vunpack.c.l.b16 %v90
    %v932 = vunpack.c.h.b16 %v90
    %v933 = vunpack.c.l.b16 %v91
    %v934 = vunpack.c.h.b16 %v91
    %v935 = vunpack.c.l.b16 %v92
    %v936 = vunpack.c.h.b16 %v92
    %v937 = vunpack.c.l.b16 %v93
    %v938 = vunpack.c.h.b16 %v93
    %v939 = vunpack.c.l.b16 %v94
    %v940 = vunpack.c.h.b16 %v94
    %v941 = vunpack.c.l.b16 %v95
    %v942 = vunpack.c.h.b16 %v95
    %v943 = vunpack.c.l.b16 %v96
    %v944 = vunpack.c.h.b16 %v96
    %v945 = vunpack.c.l.b16 %v97
    %v946 = vunpack.c.h.b16 %v97
    %v947 = vunpack.c.l.b16 %v98
    %v948 = vunpack.c.h.b16 %v98
    %v949 = vunpack.c.l.b16 %v99
    %v950 = vunpack.c.h.b16 %v99
    %v951 = vunpack.c.l.b16 %v100
    %v952 = vunpack.c.h.b16 %v100
    %v953 = vunpack.c.l.b16 %v101
    %v954 = vunpack.c.h.b16 %v101
    %v955 = vunpack.c.l.b16 %v102
    %v956 = vunpack.c.h.b16 %v102
    %v957 = vunpack.c.l.b16 %v103
    %v958 = vunpack.c.h.b16 %v103
    %v959 = vunpack.c.l.b16 %v104
    %v960 = vunpack.c.h.b16 %v104
    %v961 = vunpack.c.l.b16 %v105
    %v962 = vunpack.c.h.b16 %v105
    %v963 = vunpack.c.l.b16 %v106
    %v964 = vunpack.c.h.b16 %v106
    %v965 = vunpack.c.l.b16 %v107
    %v966 = vunpack.c.h.b16 %v107
    %v967 = vunpack.c.l.b16 %v108
    %v968 = vunpack.c.h.b16 %v108
    %v969 = vunpack.c.l.b16 %v109
    %v970 = vunpack.c.h.b16 %v109
    %v971 = vunpack.c.l.b16 %v110
    %v972 = vunpack.c.h.b16 %v110
    %v973 = vunpack.c.l.b16 %v111
    %v974 = vunpack.c.h.b16 %v111
    %v975 = vunpack.c.l.b16 %v112
    %v976 = vunpack.c.h.b16 %v112
    %v977 = vunpack.c.l.b16 %v113
    %v978 = vunpack.c.h.b16 %v113
    %v979 = vunpack.c.l.b16 %v114
    %v980 = vunpack.c.h.b16 %v114
    %v981 = vunpack.c.l.b16 %v115
    %v982 = vunpack.c.h.b16 %v115
    %v983 = vunpack.c.l.b16 %v116
    %v984 = vunpack.c.h.b16 %v116
    %v985 = vunpack.c.l.b16 %v117
    %v986 = vunpack.c.h.b16 %v117
    %v987 = vunpack.c.l.b16 %v118
    %v988 = vunpack.c.h.b16 %v118
    %v989 = vunpack.c.l.b16 %v119
    %v990 = vunpack.c.h.b16 %v119
    %v991 = vunpack.c.l.b16 %v120
    %v992 = vunpack.c.h.b16 %v120
    %v993 = vunpack.c.l.b16 %v121
    %v994 = vunpack.c.h.b16 %v121
    %v995 = vunpack.c.l.b16 %v122
    %v996 = vunpack.c.h.b16 %v122
    %v997 = vunpack.c.l.b16 %v123
    %v998 = vunpack.c.h.b16 %v123
    %v999 = vunpack.c.l.b16 %v124
    %v1000 = vunpack.c.h.b16 %v124
    %v1001 = vunpack.c.l.b16 %v125
    %v1002 = vunpack.c.h.b16 %v125
    %v1003 = vunpack.c.l.b16 %v126
    %v1004 = vunpack.c.h.b16 %v126
    %v1005 = vunpack.c.l.b16 %v127
    %v1006 = vunpack.c.h.b16 %v127
    %v1007 = vunpack.c.l.b16 %v128
    %v1008 = vunpack.c.h.b16 %v128
    %v1009 = vunpack.c.l.b16 %v129
    %v1010 = vunpack.c.h.b16 %v129
    %v1011 = vunpack.c.l.b16 %v130
    %v1012 = vunpack.c.h.b16 %v130
    %v1013 = vunpack.c.l.b16 %v131
    %v1014 = vunpack.c.h.b16 %v131
    %v1015 = vunpack.c.l.b16 %v132
    %v1016 = vunpack.c.h.b16 %v132
    %v1017 = vunpack.c.l.b16 %v133
    %v1018 = vunpack.c.h.b16 %v133
    %v1019 = vunpack.c.l.b16 %v134
    %v1020 = vunpack.c.h.b16 %v134
    %v1021 = vunpack.c.l.b16 %v135
    %v1022 = vunpack.c.h.b16 %v135
    %v1023 = vunpack.c.l.b16 %v136
    %v1024 = vunpack.c.h.b16 %v136
    %v1025 = vunpack.c.l.b16 %v137
    %v1026 = vunpack.c.h.b16 %v137
    %v1027 = vunpack.c.l.b16 %v138
    %v1028 = vunpack.c.h.b16 %v138
    %v1029 = vunpack.c.l.b16 %v139
    %v1030 = vunpack.c.h.b16 %v139
    %v1031 = vunpack.c.l.b16 %v140
    %v1032 = vunpack.c.h.b16 %v140
    %v1033 = vunpack.c.l.b16 %v141
    %v1034 = vunpack.c.h.b16 %v141
    %v1035 = vunpack.c.l.b16 %v142
    %v1036 = vunpack.c.h.b16 %v142
    %v1037 = vunpack.c.l.b16 %v143
    %v1038 = vunpack.c.h.b16 %v143
    %v1039 = vunpack.c.l.b16 %v144
    %v1040 = vunpack.c.h.b16 %v144
    %v1041 = vunpack.c.l.b16 %v145
    %v1042 = vunpack.c.h.b16 %v145
    %v1043 = vunpack.c.l.b16 %v146
    %v1044 = vunpack.c.h.b16 %v146
    %v1045 = vunpack.c.l.b16 %v147
    %v1046 = vunpack.c.h.b16 %v147
    %v1047 = vunpack.c.l.b16 %v148
    %v1048 = vunpack.c.h.b16 %v148
    %v1049 = vunpack.c.l.b16 %v149
    %v1050 = vunpack.c.h.b16 %v149
    %v1051 = vunpack.c.l.b16 %v150
    %v1052 = vunpack.c.h.b16 %v150
    %v1053 = vunpack.c.l.b16 %v151
    %v1054 = vunpack.c.h.b16 %v151
    %v1055 = vunpack.c.l.b16 %v152
    %v1056 = vunpack.c.h.b16 %v152
    %v1057 = vunpack.c.l.b16 %v153
    %v1058 = vunpack.c.h.b16 %v153
    %v1059 = vunpack.c.l.b16 %v154
    %v1060 = vunpack.c.h.b16 %v154
    %v1061 = vunpack.c.l.b16 %v155
    %v1062 = vunpack.c.h.b16 %v155
    %v1063 = vunpack.c.l.b16 %v156
    %v1064 = vunpack.c.h.b16 %v156
    %v1065 = vunpack.c.l.b16 %v157
    %v1066 = vunpack.c.h.b16 %v157
    %v1067 = vunpack.c.l.b16 %v158
    %v1068 = vunpack.c.h.b16 %v158
    %v1069 = vunpack.c.l.b16 %v159
    %v1070 = vunpack.c.h.b16 %v159
    %v1071 = vunpack.c.l.b16 %v160
    %v1072 = vunpack.c.h.b16 %v160
    %v1073 = vunpack.c.l.b16 %v161
    %v1074 = vunpack.c.h.b16 %v161
    %v1075 = vunpack.c.l.b16 %v162
    %v1076 = vunpack.c.h.b16 %v162
    %v1077 = vunpack.c.l.b16 %v163
    %v1078 = vunpack.c.h.b16 %v163
    %v1079 = vunpack.c.l.b16 %v164
    %v1080 = vunpack.c.h.b16 %v164
    %v1081 = vunpack.c.l.b16 %v165
    %v1082 = vunpack.c.h.b16 %v165
    %v1083 = vunpack.c.l.b16 %v166
    %v1084 = vunpack.c.h.b16 %v166
    %v1085 = vunpack.c.l.b16 %v167
    %v1086 = vunpack.c.h.b16 %v167
    %v1087 = vunpack.c.l.b16 %v168
    %v1088 = vunpack.c.h.b16 %v168
    %v1089 = vunpack.c.l.b16 %v169
    %v1090 = vunpack.c.h.b16 %v169
    %v1091 = vunpack.c.l.b16 %v170
    %v1092 = vunpack.c.h.b16 %v170
    %v1093 = vunpack.c.l.b16 %v171
    %v1094 = vunpack.c.h.b16 %v171
    %v1095 = vunpack.c.l.b16 %v172
    %v1096 = vunpack.c.h.b16 %v172
    %v1097 = vunpack.c.l.b16 %v173
    %v1098 = vunpack.c.h.b16 %v173
    %v1099 = vunpack.c.l.b16 %v174
    %v1100 = vunpack.c.h.b16 %v174
    %v1101 = vunpack.c.l.b16 %v175
    %v1102 = vunpack.c.h.b16 %v175
    %v1103 = vunpack.c.l.b16 %v176
    %v1104 = vunpack.c.h.b16 %v176
    %v1105 = vunpack.c.l.b16 %v177
    %v1106 = vunpack.c.h.b16 %v177
    %v1107 = vunpack.c.l.b16 %v178
    %v1108 = vunpack.c.h.b16 %v178
    %v1109 = vunpack.c.l.b16 %v179
    %v1110 = vunpack.c.h.b16 %v179
    %v1111 = vunpack.c.l.b16 %v180
    %v1112 = vunpack.c.h.b16 %v180
    %v1113 = vunpack.c.l.b16 %v181
    %v1114 = vunpack.c.h.b16 %v181
    %v1115 = vunpack.c.l.b16 %v182
    %v1116 = vunpack.c.h.b16 %v182
    %v1117 = vunpack.c.l.b16 %v183
    %v1118 = vunpack.c.h.b16 %v183
    %v1119 = vunpack.c.l.b16 %v184
    %v1120 = vunpack.c.h.b16 %v184
    %v1121 = vunpack.c.l.b16 %v185
    %v1122 = vunpack.c.h.b16 %v185
    %v1123 = vunpack.c.l.b16 %v186
    %v1124 = vunpack.c.h.b16 %v186
    %v1125 = vunpack.c.l.b16 %v187
    %v1126 = vunpack.c.h.b16 %v187
    %v1127 = vunpack.c.l.b16 %v188
    %v1128 = vunpack.c.h.b16 %v188
    %v1129 = vunpack.c.l.b16 %v189
    %v1130 = vunpack.c.h.b16 %v189
    %v1131 = vunpack.c.l.b16 %v190
    %v1132 = vunpack.c.h.b16 %v190
    %v1133 = vunpack.c.l.b16 %v191
    %v1134 = vunpack.c.h.b16 %v191
    %v1135 = vunpack.c.l.b16 %v192
    %v1136 = vunpack.c.h.b16 %v192
    %v1137 = vunpack.c.l.b16 %v193
    %v1138 = vunpack.c.h.b16 %v193
    %v1139 = vunpack.c.l.b16 %v194
    %v1140 = vunpack.c.h.b16 %v194
    %v1141 = vunpack.c.l.b16 %v195
    %v1142 = vunpack.c.h.b16 %v195
    %v1143 = vunpack.c.l.b16 %v196
    %v1144 = vunpack.c.h.b16 %v196
    %v1145 = vunpack.c.l.b16 %v197
    %v1146 = vunpack.c.h.b16 %v197
    %v1147 = vunpack.c.l.b16 %v198
    %v1148 = vunpack.c.h.b16 %v198
    %v1149 = vunpack.c.l.b16 %v199
    %v1150 = vunpack.c.h.b16 %v199
    %v1151 = vunpack.c.l.b16 %v200
    %v1152 = vunpack.c.h.b16 %v200
    %v1153 = vunpack.c.l.b16 %v201
    %v1154 = vunpack.c.h.b16 %v201
    %v1155 = vunpack.c.l.b16 %v202
    %v1156 = vunpack.c.h.b16 %v202
    %v1157 = vunpack.c.l.b16 %v203
    %v1158 = vunpack.c.h.b16 %v203
    %v1159 = vunpack.c.l.b16 %v204
    %v1160 = vunpack.c.h.b16 %v204
    %v1161 = vunpack.c.l.b16 %v205
    %v1162 = vunpack.c.h.b16 %v205
    %v1163 = vunpack.c.l.b16 %v206
    %v1164 = vunpack.c.h.b16 %v206
    %v1165 = vunpack.c.l.b16 %v207
    %v1166 = vunpack.c.h.b16 %v207
    %v1167 = vunpack.c.l.b16 %v208
    %v1168 = vunpack.c.h.b16 %v208
    %v1169 = vunpack.c.l.b16 %v209
    %v1170 = vunpack.c.h.b16 %v209
    %v1171 = vunpack.c.l.b16 %v210
    %v1172 = vunpack.c.h.b16 %v210
    %v1173 = vunpack.c.l.b16 %v211
    %v1174 = vunpack.c.h.b16 %v211
    %v1175 = vunpack.c.l.b16 %v212
    %v1176 = vunpack.c.h.b16 %v212
    %v1177 = vunpack.c.l.b16 %v213
    %v1178 = vunpack.c.h.b16 %v213
    %v1179 = vunpack.c.l.b16 %v214
    %v1180 = vunpack.c.h.b16 %v214
    %v1181 = vunpack.c.l.b16 %v215
    %v1182 = vunpack.c.h.b16 %v215
    %v1183 = vunpack.c.l.b16 %v216
    %v1184 = vunpack.c.h.b16 %v216
    %v1185 = vunpack.c.l.b16 %v217
    %v1186 = vunpack.c.h.b16 %v217
    %v1187 = vunpack.c.l.b16 %v218
    %v1188 = vunpack.c.h.b16 %v218
    %v1189 = vunpack.c.l.b16 %v219
    %v1190 = vunpack.c.h.b16 %v219
    %v1191 = vunpack.c.l.b16 %v220
    %v1192 = vunpack.c.h.b16 %v220
    %v1193 = vunpack.c.l.b16 %v221
    %v1194 = vunpack.c.h.b16 %v221
    %v1195 = vunpack.c.l.b16 %v222
    %v1196 = vunpack.c.h.b16 %v222
    %v1197 = vunpack.c.l.b16 %v223
    %v1198 = vunpack.c.h.b16 %v223
    %v1199 = vunpack.c.l.b16 %v224
    %v1200 = vunpack.c.h.b16 %v224
    %v1201 = vunpack.c.l.b16 %v225
    %v1202 = vunpack.c.h.b16 %v225
    %v1203 = vunpack.c.l.b16 %v226
    %v1204 = vunpack.c.h.b16 %v226
    %v1205 = vunpack.c.l.b16 %v227
    %v1206 = vunpack.c.h.b16 %v227
    %v1207 = vunpack.c.l.b16 %v228
    %v1208 = vunpack.c.h.b16 %v228
    %v1209 = vunpack.c.l.b16 %v229
    %v1210 = vunpack.c.h.b16 %v229
    %v1211 = vunpack.c.l.b16 %v230
    %v1212 = vunpack.c.h.b16 %v230
    %v1213 = vunpack.c.l.b16 %v231
    %v1214 = vunpack.c.h.b16 %v231
    %v1215 = vunpack.c.l.b16 %v232
    %v1216 = vunpack.c.h.b16 %v232
    %v1217 = vunpack.c.l.b16 %v233
    %v1218 = vunpack.c.h.b16 %v233
    %v1219 = vunpack.c.l.b16 %v234
    %v1220 = vunpack.c.h.b16 %v234
    %v1221 = vunpack.c.l.b16 %v235
    %v1222 = vunpack.c.h.b16 %v235
    %v1223 = vunpack.c.l.b16 %v236
    %v1224 = vunpack.c.h.b16 %v236
    %v1225 = vunpack.c.l.b16 %v237
    %v1226 = vunpack.c.h.b16 %v237
    %v1227 = vunpack.c.l.b16 %v238
    %v1228 = vunpack.c.h.b16 %v238
    %v1229 = vunpack.c.l.b16 %v239
    %v1230 = vunpack.c.h.b16 %v239
    %v1231 = vunpack.c.l.b16 %v240
    %v1232 = vunpack.c.h.b16 %v240
    %v1233 = vunpack.c.l.b16 %v241
    %v1234 = vunpack.c.h.b16 %v241
    %v1235 = vunpack.c.l.b16 %v242
    %v1236 = vunpack.c.h.b16 %v242
    %v1237 = vunpack.c.l.b16 %v243
    %v1238 = vunpack.c.h.b16 %v243
    %v1239 = vunpack.c.l.b16 %v244
    %v1240 = vunpack.c.h.b16 %v244
    %v1241 = vunpack.c.l.b16 %v245
    %v1242 = vunpack.c.h.b16 %v245
    %v1243 = vunpack.c.l.b16 %v246
    %v1244 = vunpack.c.h.b16 %v246
    %v1245 = vunpack.c.l.b16 %v247
    %v1246 = vunpack.c.h.b16 %v247
    %v1247 = vunpack.c.l.b16 %v248
    %v1248 = vunpack.c.h.b16 %v248
    %v1249 = vunpack.c.l.b16 %v249
    %v1250 = vunpack.c.h.b16 %v249
    %v1251 = vunpack.c.l.b16 %v250
    %v1252 = vunpack.c.h.b16 %v250
    %v1253 = vunpack.c.l.b16 %v251
    %v1254 = vunpack.c.h.b16 %v251
    %v1255 = vunpack.c.l.b16 %v252
    %v1256 = vunpack.c.h.b16 %v252
    %v1257 = vunpack.c.l.b16 %v253
    %v1258 = vunpack.c.h.b16 %v253
    %v1259 = vunpack.c.l.b16 %v254
    %v1260 = vunpack.c.h.b16 %v254
    %v1261 = vunpack.c.l.b16 %v255
    %v1262 = vunpack.c.h.b16 %v255
    %v1263 = vunpack.c.l.b16 %v256
    %v1264 = vunpack.c.h.b16 %v256
    %v1265 = vunpack.c.l.b16 %v257
    %v1266 = vunpack.c.h.b16 %v257
    %v1267 = vunpack.c.l.b16 %v258
    %v1268 = vunpack.c.h.b16 %v258
    %v1269 = vunpack.c.l.b16 %v259
    %v1270 = vunpack.c.h.b16 %v259
    %v1271 = vunpack.c.l.b16 %v260
    %v1272 = vunpack.c.h.b16 %v260
    %v1273 = vunpack.c.l.b16 %v261
    %v1274 = vunpack.c.h.b16 %v261
    %v1275 = vunpack.c.l.b16 %v262
    %v1276 = vunpack.c.h.b16 %v262
    %v1277 = vunpack.c.l.b16 %v263
    %v1278 = vunpack.c.h.b16 %v263
    %v1279 = vunpack.c.l.b16 %v264
    %v1280 = vunpack.c.h.b16 %v264
    %v1281 = vunpack.c.l.b16 %v265
    %v1282 = vunpack.c.h.b16 %v265
    %v1283 = vunpack.c.l.b16 %v266
    %v1284 = vunpack.c.h.b16 %v266
    %v1285 = vunpack.c.l.b16 %v267
    %v1286 = vunpack.c.h.b16 %v267
    %v1287 = vunpack.c.l.b16 %v268
    %v1288 = vunpack.c.h.b16 %v268
    %v1289 = vunpack.c.l.b16 %v269
    %v1290 = vunpack.c.h.b16 %v269
    %v1291 = vunpack.c.l.b16 %v270
    %v1292 = vunpack.c.h.b16 %v270
    %v1293 = vunpack.c.l.b16 %v271
    %v1294 = vunpack.c.h.b16 %v271
    %v1295 = vunpack.c.l.b16 %v272
    %v1296 = vunpack.c.h.b16 %v272
    %v1297 = vunpack.c.l.b16 %v273
    %v1298 = vunpack.c.h.b16 %v273
    %v1299 = vunpack.c.l.b16 %v274
    %v1300 = vunpack.c.h.b16 %v274
    %v1301 = vunpack.c.l.b16 %v275
    %v1302 = vunpack.c.h.b16 %v275
    %v1303 = vunpack.c.l.b16 %v276
    %v1304 = vunpack.c.h.b16 %v276
    %v1305 = vunpack.c.l.b16 %v277
    %v1306 = vunpack.c.h.b16 %v277
    %v1307 = vunpack.c.l.b16 %v278
    %v1308 = vunpack.c.h.b16 %v278
    %v1309 = vunpack.c.l.b16 %v279
    %v1310 = vunpack.c.h.b16 %v279
    %v1311 = vunpack.c.l.b16 %v280
    %v1312 = vunpack.c.h.b16 %v280
    %v1313 = vunpack.c.l.b16 %v281
    %v1314 = vunpack.c.h.b16 %v281
    %v1315 = vunpack.c.l.b16 %v282
    %v1316 = vunpack.c.h.b16 %v282
    %v1317 = vunpack.c.l.b16 %v283
    %v1318 = vunpack.c.h.b16 %v283
    %v1319 = vunpack.c.l.b16 %v284
    %v1320 = vunpack.c.h.b16 %v284
    %v1321 = vunpack.c.l.b16 %v285
    %v1322 = vunpack.c.h.b16 %v285
    %v1323 = vunpack.c.l.b16 %v286
    %v1324 = vunpack.c.h.b16 %v286
    %v1325 = vunpack.c.l.b16 %v287
    %v1326 = vunpack.c.h.b16 %v287
    %v1327 = vunpack.c.l.b16 %v288
    %v1328 = vunpack.c.h.b16 %v288
    %v1329 = vunpack.c.l.b16 %v289
    %v1330 = vunpack.c.h.b16 %v289
    %v1331 = vunpack.c.l.b16 %v290
    %v1332 = vunpack.c.h.b16 %v290
    %v1333 = vunpack.c.l.b16 %v291
    %v1334 = vunpack.c.h.b16 %v291
    %v1335 = vunpack.c.l.b16 %v292
    %v1336 = vunpack.c.h.b16 %v292
    %v1337 = vunpack.c.l.b16 %v293
    %v1338 = vunpack.c.h.b16 %v293
    %v1339 = vunpack.c.l.b16 %v294
    %v1340 = vunpack.c.h.b16 %v294
    %v1341 = vunpack.c.l.b16 %v295
    %v1342 = vunpack.c.h.b16 %v295
    %v1343 = vunpack.c.l.b16 %v296
    %v1344 = vunpack.c.h.b16 %v296
    %v1345 = vunpack.c.l.b16 %v297
    %v1346 = vunpack.c.h.b16 %v297
    %v1347 = vunpack.c.l.b16 %v298
    %v1348 = vunpack.c.h.b16 %v298
    %v1349 = vunpack.c.l.b16 %v299
    %v1350 = vunpack.c.h.b16 %v299
    %v1351 = vunpack.c.l.b16 %v300
    %v1352 = vunpack.c.h.b16 %v300
    %v1353 = vunpack.c.l.b16 %v301
    %v1354 = vunpack.c.h.b16 %v301
    %v1355 = vunpack.c.l.b16 %v302
    %v1356 = vunpack.c.h.b16 %v302
    %v1357 = vunpack.c.l.b16 %v303
    %v1358 = vunpack.c.h.b16 %v303
    %v1359 = vunpack.c.l.b16 %v304
    %v1360 = vunpack.c.h.b16 %v304
    %v1361 = vunpack.c.l.b16 %v305
    %v1362 = vunpack.c.h.b16 %v305
    %v1363 = vunpack.c.l.b16 %v306
    %v1364 = vunpack.c.h.b16 %v306
    %v1365 = vunpack.c.l.b16 %v307
    %v1366 = vunpack.c.h.b16 %v307
    %v1367 = vunpack.c.l.b16 %v308
    %v1368 = vunpack.c.h.b16 %v308
    %v1369 = vunpack.c.l.b16 %v309
    %v1370 = vunpack.c.h.b16 %v309
    %v1371 = vunpack.c.l.b16 %v310
    %v1372 = vunpack.c.h.b16 %v310
    %v1373 = vunpack.c.l.b16 %v311
    %v1374 = vunpack.c.h.b16 %v311
    %v1375 = vunpack.c.l.b16 %v312
    %v1376 = vunpack.c.h.b16 %v312
    %v1377 = vunpack.c.l.b16 %v313
    %v1378 = vunpack.c.h.b16 %v313
    %v1379 = vunpack.c.l.b16 %v314
    %v1380 = vunpack.c.h.b16 %v314
    %v1381 = vunpack.c.l.b16 %v315
    %v1382 = vunpack.c.h.b16 %v315
    %v1383 = vunpack.c.l.b16 %v316
    %v1384 = vunpack.c.h.b16 %v316
    %v1385 = vunpack.c.l.b16 %v317
    %v1386 = vunpack.c.h.b16 %v317
    %v1387 = vunpack.c.l.b16 %v318
    %v1388 = vunpack.c.h.b16 %v318
    %v1389 = vunpack.c.l.b16 %v319
    %v1390 = vunpack.c.h.b16 %v319
    %v1391 = vunpack.c.l.b16 %v320
    %v1392 = vunpack.c.h.b16 %v320
    %v1393 = vunpack.c.l.b16 %v321
    %v1394 = vunpack.c.h.b16 %v321
    %v1395 = vunpack.c.l.b16 %v322
    %v1396 = vunpack.c.h.b16 %v322
    %v1397 = vunpack.c.l.b16 %v323
    %v1398 = vunpack.c.h.b16 %v323
    %v1399 = vunpack.c.l.b16 %v324
    %v1400 = vunpack.c.h.b16 %v324
    %v1401 = vunpack.c.l.b16 %v325
    %v1402 = vunpack.c.h.b16 %v325
    %v1403 = vunpack.c.l.b16 %v326
    %v1404 = vunpack.c.h.b16 %v326
    %v1405 = vunpack.c.l.b16 %v327
    %v1406 = vunpack.c.h.b16 %v327
    %v1407 = vunpack.c.l.b16 %v328
    %v1408 = vunpack.c.h.b16 %v328
    %v1409 = vunpack.c.l.b16 %v329
    %v1410 = vunpack.c.h.b16 %v329
    %v1411 = vunpack.c.l.b16 %v330
    %v1412 = vunpack.c.h.b16 %v330
    %v1413 = vunpack.c.l.b16 %v331
    %v1414 = vunpack.c.h.b16 %v331
    %v1415 = vunpack.c.l.b16 %v332
    %v1416 = vunpack.c.h.b16 %v332
    %v1417 = vunpack.c.l.b16 %v333
    %v1418 = vunpack.c.h.b16 %v333
    %v1419 = vunpack.c.l.b16 %v334
    %v1420 = vunpack.c.h.b16 %v334
    %v1421 = vunpack.c.l.b16 %v335
    %v1422 = vunpack.c.h.b16 %v335
    %v1423 = vunpack.c.l.b16 %v336
    %v1424 = vunpack.c.h.b16 %v336
    %v1425 = vunpack.c.l.b16 %v337
    %v1426 = vunpack.c.h.b16 %v337
    %v1427 = vunpack.c.l.b16 %v338
    %v1428 = vunpack.c.h.b16 %v338
    %v1429 = vunpack.c.l.b16 %v339
    %v1430 = vunpack.c.h.b16 %v339
    %v1431 = vunpack.c.l.b16 %v340
    %v1432 = vunpack.c.h.b16 %v340
    %v1433 = vunpack.c.l.b16 %v341
    %v1434 = vunpack.c.h.b16 %v341
    %v1435 = vunpack.c.l.b16 %v342
    %v1436 = vunpack.c.h.b16 %v342
    %v1437 = vunpack.c.l.b16 %v343
    %v1438 = vunpack.c.h.b16 %v343
    %v1439 = vunpack.c.l.b16 %v344
    %v1440 = vunpack.c.h.b16 %v344
    %v1441 = vunpack.c.l.b16 %v345
    %v1442 = vunpack.c.h.b16 %v345
    %v1443 = vunpack.c.l.b16 %v346
    %v1444 = vunpack.c.h.b16 %v346
    %v1445 = vunpack.c.l.b16 %v347
    %v1446 = vunpack.c.h.b16 %v347
    %v1447 = vunpack.c.l.b16 %v348
    %v1448 = vunpack.c.h.b16 %v348
    %v1449 = vunpack.c.l.b16 %v349
    %v1450 = vunpack.c.h.b16 %v349
    %v1451 = vunpack.c.l.b16 %v350
    %v1452 = vunpack.c.h.b16 %v350
    %v1453 = vunpack.c.l.b16 %v351
    %v1454 = vunpack.c.h.b16 %v351
    %v1455 = vunpack.c.l.b16 %v352
    %v1456 = vunpack.c.h.b16 %v352
    %v1457 = vunpack.c.l.b16 %v353
    %v1458 = vunpack.c.h.b16 %v353
    %v1459 = vunpack.c.l.b16 %v354
    %v1460 = vunpack.c.h.b16 %v354
    %v1461 = vunpack.c.l.b16 %v355
    %v1462 = vunpack.c.h.b16 %v355
    %v1463 = vunpack.c.l.b16 %v356
    %v1464 = vunpack.c.h.b16 %v356
    %v1465 = vunpack.c.l.b16 %v357
    %v1466 = vunpack.c.h.b16 %v357
    %v1467 = vunpack.c.l.b16 %v358
    %v1468 = vunpack.c.h.b16 %v358
    %v1469 = vunpack.c.l.b16 %v359
    %v1470 = vunpack.c.h.b16 %v359
    %v1471 = vunpack.c.l.b16 %v360
    %v1472 = vunpack.c.h.b16 %v360
    %v1473 = vunpack.c.l.b16 %v361
    %v1474 = vunpack.c.h.b16 %v361
    %v1475 = vunpack.c.l.b16 %v362
    %v1476 = vunpack.c.h.b16 %v362
    %v1477 = vunpack.c.l.b16 %v363
    %v1478 = vunpack.c.h.b16 %v363
    %v1479 = vunpack.c.l.b16 %v364
    %v1480 = vunpack.c.h.b16 %v364
    %v1481 = vunpack.c.l.b16 %v365
    %v1482 = vunpack.c.h.b16 %v365
    %v1483 = vunpack.c.l.b16 %v366
    %v1484 = vunpack.c.h.b16 %v366
    %v1485 = vunpack.c.l.b16 %v367
    %v1486 = vunpack.c.h.b16 %v367
    %v1487 = vunpack.c.l.b16 %v368
    %v1488 = vunpack.c.h.b16 %v368
    %v1489 = vunpack.c.l.b16 %v369
    %v1490 = vunpack.c.h.b16 %v369
    %v1491 = vunpack.c.l.b16 %v370
    %v1492 = vunpack.c.h.b16 %v370
    %v1493 = vunpack.c.l.b16 %v371
    %v1494 = vunpack.c.h.b16 %v371
    %v1495 = vunpack.c.l.b16 %v372
    %v1496 = vunpack.c.h.b16 %v372
    %v1497 = vunpack.c.l.b16 %v373
    %v1498 = vunpack.c.h.b16 %v373
    %v1499 = vunpack.c.l.b16 %v374
    %v1500 = vunpack.c.h.b16 %v374
    %v1501 = vunpack.c.l.b16 %v375
    %v1502 = vunpack.c.h.b16 %v375
    %v1503 = vunpack.c.l.b16 %v376
    %v1504 = vunpack.c.h.b16 %v376
    %v1505 = vunpack.c.l.b16 %v377
    %v1506 = vunpack.c.h.b16 %v377
    %v1507 = vunpack.c.l.b16 %v378
    %v1508 = vunpack.c.h.b16 %v378
    %v1509 = vunpack.c.l.b16 %v379
    %v1510 = vunpack.c.h.b16 %v379
    %v1511 = vunpack.c.l.b16 %v380
    %v1512 = vunpack.c.h.b16 %v380
    %v1513 = vunpack.c.l.b16 %v381
    %v1514 = vunpack.c.h.b16 %v381
    %v1515 = vunpack.c.l.b16 %v382
    %v1516 = vunpack.c.h.b16 %v382
    %v1517 = vunpack.c.l.b16 %v383
    %v1518 = vunpack.c.h.b16 %v383
    %v1519 = vunpack.c.l.b16 %v384
    %v1520 = vunpack.c.h.b16 %v384
    %v1521 = vunpack.c.l.b16 %v385
    %v1522 = vunpack.c.h.b16 %v385
    %v1523 = vunpack.c.l.b16 %v386
    %v1524 = vunpack.c.h.b16 %v386
    %v1525 = vunpack.c.l.b16 %v387
    %v1526 = vunpack.c.h.b16 %v387
    %v1527 = vunpack.c.l.b16 %v388
    %v1528 = vunpack.c.h.b16 %v388
    %v1529 = vunpack.c.l.b16 %v389
    %v1530 = vunpack.c.h.b16 %v389
    %v1531 = vunpack.c.l.b16 %v390
    %v1532 = vunpack.c.h.b16 %v390
    %v1533 = vunpack.c.l.b16 %v391
    %v1534 = vunpack.c.h.b16 %v391
    %v1535 = vunpack.c.l.b16 %v392
    %v1536 = vunpack.c.h.b16 %v392
    %v1537 = vunpack.c.l.b16 %v393
    %v1538 = vunpack.c.h.b16 %v393
    %v1539 = vunpack.c.l.b16 %v394
    %v1540 = vunpack.c.h.b16 %v394
    %v1541 = vunpack.c.l.b16 %v395
    %v1542 = vunpack.c.h.b16 %v395
    %v1543 = vunpack.c.l.b16 %v396
    %v1544 = vunpack.c.h.b16 %v396
    %v1545 = vunpack.c.l.b16 %v397
    %v1546 = vunpack.c.h.b16 %v397
    %v1547 = vunpack.c.l.b16 %v398
    %v1548 = vunpack.c.h.b16 %v398
    %v1549 = vunpack.c.l.b16 %v399
    %v1550 = vunpack.c.h.b16 %v399
    %v1551 = vunpack.c.l.b16 %v400
    %v1552 = vunpack.c.h.b16 %v400
    %v1553 = vunpack.c.l.b16 %v401
    %v1554 = vunpack.c.h.b16 %v401
    %v1555 = vunpack.c.l.b16 %v402
    %v1556 = vunpack.c.h.b16 %v402
    %v1557 = vunpack.c.l.b16 %v403
    %v1558 = vunpack.c.h.b16 %v403
    %v1559 = vunpack.c.l.b16 %v404
    %v1560 = vunpack.c.h.b16 %v404
    %v1561 = vunpack.c.l.b16 %v405
    %v1562 = vunpack.c.h.b16 %v405
    %v1563 = vunpack.c.l.b16 %v406
    %v1564 = vunpack.c.h.b16 %v406
    %v1565 = vunpack.c.l.b16 %v407
    %v1566 = vunpack.c.h.b16 %v407
    %v1567 = vunpack.c.l.b16 %v408
    %v1568 = vunpack.c.h.b16 %v408
    %v1569 = vunpack.c.l.b16 %v409
    %v1570 = vunpack.c.h.b16 %v409
    %v1571 = vunpack.c.l.b16 %v410
    %v1572 = vunpack.c.h.b16 %v410
    %v1573 = vunpack.c.l.b16 %v411
    %v1574 = vunpack.c.h.b16 %v411
    %v1575 = vunpack.c.l.b16 %v412
    %v1576 = vunpack.c.h.b16 %v412
    %v1577 = vunpack.c.l.b16 %v413
    %v1578 = vunpack.c.h.b16 %v413
    %v1579 = vunpack.c.l.b16 %v414
    %v1580 = vunpack.c.h.b16 %v414
    %v1581 = vunpack.c.l.b16 %v415
    %v1582 = vunpack.c.h.b16 %v415
    %v1583 = vunpack.c.l.b16 %v416
    %v1584 = vunpack.c.h.b16 %v416
    %v1585 = vunpack.c.l.b16 %v417
    %v1586 = vunpack.c.h.b16 %v417
    %v1587 = vunpack.c.l.b16 %v418
    %v1588 = vunpack.c.h.b16 %v418
    %v1589 = vunpack.c.l.b16 %v419
    %v1590 = vunpack.c.h.b16 %v419
    %v1591 = vunpack.c.l.b16 %v420
    %v1592 = vunpack.c.h.b16 %v420
    %v1593 = vunpack.c.l.b16 %v421
    %v1594 = vunpack.c.h.b16 %v421
    %v1595 = vunpack.c.l.b16 %v422
    %v1596 = vunpack.c.h.b16 %v422
    %v1597 = vunpack.c.l.b16 %v423
    %v1598 = vunpack.c.h.b16 %v423
    %v1599 = vunpack.c.l.b16 %v424
    %v1600 = vunpack.c.h.b16 %v424
    %v1601 = vunpack.c.l.b16 %v425
    %v1602 = vunpack.c.h.b16 %v425
    %v1603 = vunpack.c.l.b16 %v426
    %v1604 = vunpack.c.h.b16 %v426
    %v1605 = vunpack.c.l.b16 %v427
    %v1606 = vunpack.c.h.b16 %v427
    %v1607 = vunpack.c.l.b16 %v428
    %v1608 = vunpack.c.h.b16 %v428
    %v1609 = vunpack.c.l.b16 %v429
    %v1610 = vunpack.c.h.b16 %v429
    %v1611 = vunpack.c.l.b16 %v430
    %v1612 = vunpack.c.h.b16 %v430
    %v1613 = vunpack.c.l.b16 %v431
    %v1614 = vunpack.c.h.b16 %v431
    %v1615 = vunpack.c.l.b16 %v432
    %v1616 = vunpack.c.h.b16 %v432
    %v1617 = vunpack.c.l.b16 %v433
    %v1618 = vunpack.c.h.b16 %v433
    %v1619 = vunpack.c.l.b16 %v434
    %v1620 = vunpack.c.h.b16 %v434
    %v1621 = vunpack.c.l.b16 %v435
    %v1622 = vunpack.c.h.b16 %v435
    %v1623 = vunpack.c.l.b16 %v436
    %v1624 = vunpack.c.h.b16 %v436
    %v1625 = vunpack.c.l.b16 %v437
    %v1626 = vunpack.c.h.b16 %v437
    %v1627 = vunpack.c.l.b16 %v438
    %v1628 = vunpack.c.h.b16 %v438
    %v1629 = vunpack.c.l.b16 %v439
    %v1630 = vunpack.c.h.b16 %v439
    %v1631 = vunpack.c.l.b16 %v440
    %v1632 = vunpack.c.h.b16 %v440
    %v1633 = vunpack.c.l.b16 %v441
    %v1634 = vunpack.c.h.b16 %v441
    %v1635 = vunpack.c.l.b16 %v442
    %v1636 = vunpack.c.h.b16 %v442
    %v1637 = vunpack.c.l.b16 %v443
    %v1638 = vunpack.c.h.b16 %v443
    %v1639 = vunpack.c.l.b16 %v444
    %v1640 = vunpack.c.h.b16 %v444
    %v1641 = vunpack.c.l.b16 %v445
    %v1642 = vunpack.c.h.b16 %v445
    %v1643 = vunpack.c.l.b16 %v446
    %v1644 = vunpack.c.h.b16 %v446
    %v1645 = vunpack.c.l.b16 %v447
    %v1646 = vunpack.c.h.b16 %v447
    %v1647 = vunpack.c.l.b16 %v448
    %v1648 = vunpack.c.h.b16 %v448
    %v1649 = vpack.c.b16 %v893, %v881
    %v1650 = vpack.c.b16 %v894, %v882
    %v1651 = vpack.c.b16 %v895, %v883
    %v1652 = vpack.c.b16 %v896, %v884
    %v1653 = vpack.c.b16 %v897, %v885
    %v1654 = vpack.c.b16 %v898, %v886
    %v1655 = vpack.c.b16 %v899, %v887
    %v1656 = vpack.c.b16 %v900, %v888
    %v1657 = vpack.c.b16 %v901, %v889
    %v1658 = vpack.c.b16 %v902, %v890
    %v1659 = vpack.c.b16 %v903, %v891
    %v1660 = vpack.c.b16 %v904, %v892
    %v1661 = vpack.c.b16 %v917, %v905
    %v1662 = vpack.c.b16 %v918, %v906
    %v1663 = vpack.c.b16 %v919, %v907
    %v1664 = vpack.c.b16 %v920, %v908
    %v1665 = vpack.c.b16 %v921, %v909
    %v1666 = vpack.c.b16 %v922, %v910
    %v1667 = vpack.c.b16 %v923, %v911
    %v1668 = vpack.c.b16 %v924, %v912
    %v1669 = vpack.c.b16 %v925, %v913
    %v1670 = vpack.c.b16 %v926, %v914
    %v1671 = vpack.c.b16 %v927, %v915
    %v1672 = vpack.c.b16 %v928, %v916
    %v1673 = vpack.c.b16 %v941, %v929
    %v1674 = vpack.c.b16 %v942, %v930
    %v1675 = vpack.c.b16 %v943, %v931
    %v1676 = vpack.c.b16 %v944, %v932
    %v1677 = vpack.c.b16 %v945, %v933
    %v1678 = vpack.c.b16 %v946, %v934
    %v1679 = vpack.c.b16 %v947, %v935
    %v1680 = vpack.c.b16 %v948, %v936
    %v1681 = vpack.c.b16 %v949, %v937
    %v1682 = vpack.c.b16 %v950, %v938
    %v1683 = vpack.c.b16 %v951, %v939
    %v1684 = vpack.c.b16 %v952, %v940
    %v1685 = vpack.c.b16 %v965, %v953
    %v1686 = vpack.c.b16 %v966, %v954
    %v1687 = vpack.c.b16 %v967, %v955
    %v1688 = vpack.c.b16 %v968, %v956
    %v1689 = vpack.c.b16 %v969, %v957
    %v1690 = vpack.c.b16 %v970, %v958
    %v1691 = vpack.c.b16 %v971, %v959
    %v1692 = vpack.c.b16 %v972, %v960
    %v1693 = vpack.c.b16 %v973, %v961
    %v1694 = vpack.c.b16 %v974, %v962
    %v1695 = vpack.c.b16 %v975, %v963
    %v1696 = vpack.c.b16 %v976, %v964
    %v1697 = vpack.c.b16 %v989, %v977
    %v1698 = vpack.c.b16 %v990, %v978
    %v1699 = vpack.c.b16 %v991, %v979
    %v1700 = vpack.c.b16 %v992, %v980
    %v1701 = vpack.c.b16 %v993, %v981
    %v1702 = vpack.c.b16 %v994, %v982
    %v1703 = vpack.c.b16 %v995, %v983
    %v1704 = vpack.c.b16 %v996, %v984
    %v1705 = vpack.c.b16 %v997, %v985
    %v1706 = vpack.c.b16 %v998, %v986
    %v1707 = vpack.c.b16 %v999, %v987
    %v1708 = vpack.c.b16 %v1000, %v988
    %v1709 = vpack.c.b16 %v1013, %v1001
    %v1710 = vpack.c.b16 %v1014, %v1002
    %v1711 = vpack.c.b16 %v1015, %v1003
    %v1712 = vpack.c.b16 %v1016, %v1004
    %v1713 = vpack.c.b16 %v1017, %v1005
    %v1714 = vpack.c.b16 %v1018, %v1006
    %v1715 = vpack.c.b16 %v1019, %v1007
    %v1716 = vpack.c.b16 %v1020, %v1008
    %v1717 = vpack.c.b16 %v1021, %v1009
    %v1718 = vpack.c.b16 %v1022, %v1010
    %v1719 = vpack.c.b16 %v1023, %v1011
    %v1720 = vpack.c.b16 %v1024, %v1012
    %v1721 = vpack.c.b16 %v1037, %v1025
    %v1722 = vpack.c.b16 %v1038, %v1026
    %v1723 = vpack.c.b16 %v1039, %v1027
    %v1724 = vpack.c.b16 %v1040, %v1028
    %v1725 = vpack.c.b16 %v1041, %v1029
    %v1726 = vpack.c.b16 %v1042, %v1030
    %v1727 = vpack.c.b16 %v1043, %v1031
    %v1728 = vpack.c.b16 %v1044, %v1032
    %v1729 = vpack.c.b16 %v1045, %v1033
    %v1730 = vpack.c.b16 %v1046, %v1034
    %v1731 = vpack.c.b16 %v1047, %v1035
    %v1732 = vpack.c.b16 %v1048, %v1036
    %v1733 = vpack.c.b16 %v1061, %v1049
    %v1734 = vpack.c.b16 %v1062, %v1050
    %v1735 = vpack.c.b16 %v1063, %v1051
    %v1736 = vpack.c.b16 %v1064, %v1052
    %v1737 = vpack.c.b16 %v1065, %v1053
    %v1738 = vpack.c.b16 %v1066, %v1054
    %v1739 = vpack.c.b16 %v1067, %v1055
    %v1740 = vpack.c.b16 %v1068, %v1056
    %v1741 = vpack.c.b16 %v1069, %v1057
    %v1742 = vpack.c.b16 %v1070, %v1058
    %v1743 = vpack.c.b16 %v1071, %v1059
    %v1744 = vpack.c.b16 %v1072, %v1060
    %v1745 = vpack.c.b16 %v1085, %v1073
    %v1746 = vpack.c.b16 %v1086, %v1074
    %v1747 = vpack.c.b16 %v1087, %v1075
    %v1748 = vpack.c.b16 %v1088, %v1076
    %v1749 = vpack.c.b16 %v1089, %v1077
    %v1750 = vpack.c.b16 %v1090, %v1078
    %v1751 = vpack.c.b16 %v1091, %v1079
    %v1752 = vpack.c.b16 %v1092, %v1080
    %v1753 = vpack.c.b16 %v1093, %v1081
    %v1754 = vpack.c.b16 %v1094, %v1082
    %v1755 = vpack.c.b16 %v1095, %v1083
    %v1756 = vpack.c.b16 %v1096, %v1084
    %v1757 = vpack.c.b16 %v1109, %v1097
    %v1758 = vpack.c.b16 %v1110, %v1098
    %v1759 = vpack.c.b16 %v1111, %v1099
    %v1760 = vpack.c.b16 %v1112, %v1100
    %v1761 = vpack.c.b16 %v1113, %v1101
    %v1762 = vpack.c.b16 %v1114, %v1102
    %v1763 = vpack.c.b16 %v1115, %v1103
    %v1764 = vpack.c.b16 %v1116, %v1104
    %v1765 = vpack.c.b16 %v1117, %v1105
    %v1766 = vpack.c.b16 %v1118, %v1106
    %v1767 = vpack.c.b16 %v1119, %v1107
    %v1768 = vpack.c.b16 %v1120, %v1108
    %v1769 = vpack.c.b16 %v1133, %v1121
    %v1770 = vpack.c.b16 %v1134, %v1122
    %v1771 = vpack.c.b16 %v1135, %v1123
    %v1772 = vpack.c.b16 %v1136, %v1124
    %v1773 = vpack.c.b16 %v1137, %v1125
    %v1774 = vpack.c.b16 %v1138, %v1126
    %v1775 = vpack.c.b16 %v1139, %v1127
    %v1776 = vpack.c.b16 %v1140, %v1128
    %v1777 = vpack.c.b16 %v1141, %v1129
    %v1778 = vpack.c.b16 %v1142, %v1130
    %v1779 = vpack.c.b16 %v1143, %v1131
    %v1780 = vpack.c.b16 %v1144, %v1132
    %v1781 = vpack.c.b16 %v1157, %v1145
    %v1782 = vpack.c.b16 %v1158, %v1146
    %v1783 = vpack.c.b16 %v1159, %v1147
    %v1784 = vpack.c.b16 %v1160, %v1148
    %v1785 = vpack.c.b16 %v1161, %v1149
    %v1786 = vpack.c.b16 %v1162, %v1150
    %v1787 = vpack.c.b16 %v1163, %v1151
    %v1788 = vpack.c.b16 %v1164, %v1152
    %v1789 = vpack.c.b16 %v1165, %v1153
    %v1790 = vpack.c.b16 %v1166, %v1154
    %v1791 = vpack.c.b16 %v1167, %v1155
    %v1792 = vpack.c.b16 %v1168, %v1156
    %v1793 = vpack.c.b16 %v1181, %v1169
    %v1794 = vpack.c.b16 %v1182, %v1170
    %v1795 = vpack.c.b16 %v1183, %v1171
    %v1796 = vpack.c.b16 %v1184, %v1172
    %v1797 = vpack.c.b16 %v1185, %v1173
    %v1798 = vpack.c.b16 %v1186, %v1174
    %v1799 = vpack.c.b16 %v1187, %v1175
    %v1800 = vpack.c.b16 %v1188, %v1176
    %v1801 = vpack.c.b16 %v1189, %v1177
    %v1802 = vpack.c.b16 %v1190, %v1178
    %v1803 = vpack.c.b16 %v1191, %v1179
    %v1804 = vpack.c.b16 %v1192, %v1180
    %v1805 = vpack.c.b16 %v1205, %v1193
    %v1806 = vpack.c.b16 %v1206, %v1194
    %v1807 = vpack.c.b16 %v1207, %v1195
    %v1808 = vpack.c.b16 %v1208, %v1196
    %v1809 = vpack.c.b16 %v1209, %v1197
    %v1810 = vpack.c.b16 %v1210, %v1198
    %v1811 = vpack.c.b16 %v1211, %v1199
    %v1812 = vpack.c.b16 %v1212, %v1200
    %v1813 = vpack.c.b16 %v1213, %v1201
    %v1814 = vpack.c.b16 %v1214, %v1202
    %v1815 = vpack.c.b16 %v1215, %v1203
    %v1816 = vpack.c.b16 %v1216, %v1204
    %v1817 = vpack.c.b16 %v1229, %v1217
    %v1818 = vpack.c.b16 %v1230, %v1218
    %v1819 = vpack.c.b16 %v1231, %v1219
    %v1820 = vpack.c.b16 %v1232, %v1220
    %v1821 = vpack.c.b16 %v1233, %v1221
    %v1822 = vpack.c.b16 %v1234, %v1222
    %v1823 = vpack.c.b16 %v1235, %v1223
    %v1824 = vpack.c.b16 %v1236, %v1224
    %v1825 = vpack.c.b16 %v1237, %v1225
    %v1826 = vpack.c.b16 %v1238, %v1226
    %v1827 = vpack.c.b16 %v1239, %v1227
    %v1828 = vpack.c.b16 %v1240, %v1228
    %v1829 = vpack.c.b16 %v1253, %v1241
    %v1830 = vpack.c.b16 %v1254, %v1242
    %v1831 = vpack.c.b16 %v1255, %v1243
    %v1832 = vpack.c.b16 %v1256, %v1244
    %v1833 = vpack.c.b16 %v1257, %v1245
    %v1834 = vpack.c.b16 %v1258, %v1246
    %v1835 = vpack.c.b16 %v1259, %v1247
    %v1836 = vpack.c.b16 %v1260, %v1248
    %v1837 = vpack.c.b16 %v1261, %v1249
    %v1838 = vpack.c.b16 %v1262, %v1250
    %v1839 = vpack.c.b16 %v1263, %v1251
    %v1840 = vpack.c.b16 %v1264, %v1252
    %v1841 = vpack.c.b16 %v1277, %v1265
    %v1842 = vpack.c.b16 %v1278, %v1266
    %v1843 = vpack.c.b16 %v1279, %v1267
    %v1844 = vpack.c.b16 %v1280, %v1268
    %v1845 = vpack.c.b16 %v1281, %v1269
    %v1846 = vpack.c.b16 %v1282, %v1270
    %v1847 = vpack.c.b16 %v1283, %v1271
    %v1848 = vpack.c.b16 %v1284, %v1272
    %v1849 = vpack.c.b16 %v1285, %v1273
    %v1850 = vpack.c.b16 %v1286, %v1274
    %v1851 = vpack.c.b16 %v1287, %v1275
    %v1852 = vpack.c.b16 %v1288, %v1276
    %v1853 = vpack.c.b16 %v1301, %v1289
    %v1854 = vpack.c.b16 %v1302, %v1290
    %v1855 = vpack.c.b16 %v1303, %v1291
    %v1856 = vpack.c.b16 %v1304, %v1292
    %v1857 = vpack.c.b16 %v1305, %v1293
    %v1858 = vpack.c.b16 %v1306, %v1294
    %v1859 = vpack.c.b16 %v1307, %v1295
    %v1860 = vpack.c.b16 %v1308, %v1296
    %v1861 = vpack.c.b16 %v1309, %v1297
    %v1862 = vpack.c.b16 %v1310, %v1298
    %v1863 = vpack.c.b16 %v1311, %v1299
    %v1864 = vpack.c.b16 %v1312, %v1300
    %v1865 = vpack.c.b16 %v1325, %v1313
    %v1866 = vpack.c.b16 %v1326, %v1314
    %v1867 = vpack.c.b16 %v1327, %v1315
    %v1868 = vpack.c.b16 %v1328, %v1316
    %v1869 = vpack.c.b16 %v1329, %v1317
    %v1870 = vpack.c.b16 %v1330, %v1318
    %v1871 = vpack.c.b16 %v1331, %v1319
    %v1872 = vpack.c.b16 %v1332, %v1320
    %v1873 = vpack.c.b16 %v1333, %v1321
    %v1874 = vpack.c.b16 %v1334, %v1322
    %v1875 = vpack.c.b16 %v1335, %v1323
    %v1876 = vpack.c.b16 %v1336, %v1324
    %v1877 = vpack.c.b16 %v1349, %v1337
    %v1878 = vpack.c.b16 %v1350, %v1338
    %v1879 = vpack.c.b16 %v1351, %v1339
    %v1880 = vpack.c.b16 %v1352, %v1340
    %v1881 = vpack.c.b16 %v1353, %v1341
    %v1882 = vpack.c.b16 %v1354, %v1342
    %v1883 = vpack.c.b16 %v1355, %v1343
    %v1884 = vpack.c.b16 %v1356, %v1344
    %v1885 = vpack.c.b16 %v1357, %v1345
    %v1886 = vpack.c.b16 %v1358, %v1346
    %v1887 = vpack.c.b16 %v1359, %v1347
    %v1888 = vpack.c.b16 %v1360, %v1348
    %v1889 = vpack.c.b16 %v1373, %v1361
    %v1890 = vpack.c.b16 %v1374, %v1362
    %v1891 = vpack.c.b16 %v1375, %v1363
    %v1892 = vpack.c.b16 %v1376, %v1364
    %v1893 = vpack.c.b16 %v1377, %v1365
    %v1894 = vpack.c.b16 %v1378, %v1366
    %v1895 = vpack.c.b16 %v1379, %v1367
    %v1896 = vpack.c.b16 %v1380, %v1368
    %v1897 = vpack.c.b16 %v1381, %v1369
    %v1898 = vpack.c.b16 %v1382, %v1370
    %v1899 = vpack.c.b16 %v1383, %v1371
    %v1900 = vpack.c.b16 %v1384, %v1372
    %v1901 = vpack.c.b16 %v1397, %v1385
    %v1902 = vpack.c.b16 %v1398, %v1386
    %v1903 = vpack.c.b16 %v1399, %v1387
    %v1904 = vpack.c.b16 %v1400, %v1388
    %v1905 = vpack.c.b16 %v1401, %v1389
    %v1906 = vpack.c.b16 %v1402, %v1390
    %v1907 = vpack.c.b16 %v1403, %v1391
    %v1908 = vpack.c.b16 %v1404, %v1392
    %v1909 = vpack.c.b16 %v1405, %v1393
    %v1910 = vpack.c.b16 %v1406, %v1394
    %v1911 = vpack.c.b16 %v1407, %v1395
    %v1912 = vpack.c.b16 %v1408, %v1396
    %v1913 = vpack.c.b16 %v1421, %v1409
    %v1914 = vpack.c.b16 %v1422, %v1410
    %v1915 = vpack.c.b16 %v1423, %v1411
    %v1916 = vpack.c.b16 %v1424, %v1412
    %v1917 = vpack.c.b16 %v1425, %v1413
    %v1918 = vpack.c.b16 %v1426, %v1414
    %v1919 = vpack.c.b16 %v1427, %v1415
    %v1920 = vpack.c.b16 %v1428, %v1416
    %v1921 = vpack.c.b16 %v1429, %v1417
    %v1922 = vpack.c.b16 %v1430, %v1418
    %v1923 = vpack.c.b16 %v1431, %v1419
    %v1924 = vpack.c.b16 %v1432, %v1420
    %v1925 = vpack.c.b16 %v1445, %v1433
    %v1926 = vpack.c.b16 %v1446, %v1434
    %v1927 = vpack.c.b16 %v1447, %v1435
    %v1928 = vpack.c.b16 %v1448, %v1436
    %v1929 = vpack.c.b16 %v1449, %v1437
    %v1930 = vpack.c.b16 %v1450, %v1438
    %v1931 = vpack.c.b16 %v1451, %v1439
    %v1932 = vpack.c.b16 %v1452, %v1440
    %v1933 = vpack.c.b16 %v1453, %v1441
    %v1934 = vpack.c.b16 %v1454, %v1442
    %v1935 = vpack.c.b16 %v1455, %v1443
    %v1936 = vpack.c.b16 %v1456, %v1444
    %v1937 = vpack.c.b16 %v1469, %v1457
    %v1938 = vpack.c.b16 %v1470, %v1458
    %v1939 = vpack.c.b16 %v1471, %v1459
    %v1940 = vpack.c.b16 %v1472, %v1460
    %v1941 = vpack.c.b16 %v1473, %v1461
    %v1942 = vpack.c.b16 %v1474, %v1462
    %v1943 = vpack.c.b16 %v1475, %v1463
    %v1944 = vpack.c.b16 %v1476, %v1464
    %v1945 = vpack.c.b16 %v1477, %v1465
    %v1946 = vpack.c.b16 %v1478, %v1466
    %v1947 = vpack.c.b16 %v1479, %v1467
    %v1948 = vpack.c.b16 %v1480, %v1468
    %v1949 = vpack.c.b16 %v1493, %v1481
    %v1950 = vpack.c.b16 %v1494, %v1482
    %v1951 = vpack.c.b16 %v1495, %v1483
    %v1952 = vpack.c.b16 %v1496, %v1484
    %v1953 = vpack.c.b16 %v1497, %v1485
    %v1954 = vpack.c.b16 %v1498, %v1486
    %v1955 = vpack.c.b16 %v1499, %v1487
    %v1956 = vpack.c.b16 %v1500, %v1488
    %v1957 = vpack.c.b16 %v1501, %v1489
    %v1958 = vpack.c.b16 %v1502, %v1490
    %v1959 = vpack.c.b16 %v1503, %v1491
    %v1960 = vpack.c.b16 %v1504, %v1492
    %v1961 = vpack.c.b16 %v1517, %v1505
    %v1962 = vpack.c.b16 %v1518, %v1506
    %v1963 = vpack.c.b16 %v1519, %v1507
    %v1964 = vpack.c.b16 %v1520, %v1508
    %v1965 = vpack.c.b16 %v1521, %v1509
    %v1966 = vpack.c.b16 %v1522, %v1510
    %v1967 = vpack.c.b16 %v1523, %v1511
    %v1968 = vpack.c.b16 %v1524, %v1512
    %v1969 = vpack.c.b16 %v1525, %v1513
    %v1970 = vpack.c.b16 %v1526, %v1514
    %v1971 = vpack.c.b16 %v1527, %v1515
    %v1972 = vpack.c.b16 %v1528, %v1516
    %v1973 = vpack.c.b16 %v1541, %v1529
    %v1974 = vpack.c.b16 %v1542, %v1530
    %v1975 = vpack.c.b16 %v1543, %v1531
    %v1976 = vpack.c.b16 %v1544, %v1532
    %v1977 = vpack.c.b16 %v1545, %v1533
    %v1978 = vpack.c.b16 %v1546, %v1534
    %v1979 = vpack.c.b16 %v1547, %v1535
    %v1980 = vpack.c.b16 %v1548, %v1536
    %v1981 = vpack.c.b16 %v1549, %v1537
    %v1982 = vpack.c.b16 %v1550, %v1538
    %v1983 = vpack.c.b16 %v1551, %v1539
    %v1984 = vpack.c.b16 %v1552, %v1540
    %v1985 = vpack.c.b16 %v1565, %v1553
    %v1986 = vpack.c.b16 %v1566, %v1554
    %v1987 = vpack.c.b16 %v1567, %v1555
    %v1988 = vpack.c.b16 %v1568, %v1556
    %v1989 = vpack.c.b16 %v1569, %v1557
    %v1990 = vpack.c.b16 %v1570, %v1558
    %v1991 = vpack.c.b16 %v1571, %v1559
    %v1992 = vpack.c.b16 %v1572, %v1560
    %v1993 = vpack.c.b16 %v1573, %v1561
    %v1994 = vpack.c.b16 %v1574, %v1562
    %v1995 = vpack.c.b16 %v1575, %v1563
    %v1996 = vpack.c.b16 %v1576, %v1564
    %v1997 = vpack.c.b16 %v1589, %v1577
    %v1998 = vpack.c.b16 %v1590, %v1578
    %v1999 = vpack.c.b16 %v1591, %v1579
    %v2000 = vpack.c.b16 %v1592, %v1580
    %v2001 = vpack.c.b16 %v1593, %v1581
    %v2002 = vpack.c.b16 %v1594, %v1582
    %v2003 = vpack.c.b16 %v1595, %v1583
    %v2004 = vpack.c.b16 %v1596, %v1584
    %v2005 = vpack.c.b16 %v1597, %v1585
    %v2006 = vpack.c.b16 %v1598, %v1586
    %v2007 = vpack.c.b16 %v1599, %v1587
    %v2008 = vpack.c.b16 %v1600, %v1588
    %v2009 = vpack.c.b16 %v1613, %v1601
    %v2010 = vpack.c.b16 %v1614, %v1602
    %v2011 = vpack.c.b16 %v1615, %v1603
    %v2012 = vpack.c.b16 %v1616, %v1604
    %v2013 = vpack.c.b16 %v1617, %v1605
    %v2014 = vpack.c.b16 %v1618, %v1606
    %v2015 = vpack.c.b16 %v1619, %v1607
    %v2016 = vpack.c.b16 %v1620, %v1608
    %v2017 = vpack.c.b16 %v1621, %v1609
    %v2018 = vpack.c.b16 %v1622, %v1610
    %v2019 = vpack.c.b16 %v1623, %v1611
    %v2020 = vpack.c.b16 %v1624, %v1612
    %v2021 = vpack.c.b16 %v1637, %v1625
    %v2022 = vpack.c.b16 %v1638, %v1626
    %v2023 = vpack.c.b16 %v1639, %v1627
    %v2024 = vpack.c.b16 %v1640, %v1628
    %v2025 = vpack.c.b16 %v1641, %v1629
    %v2026 = vpack.c.b16 %v1642, %v1630
    %v2027 = vpack.c.b16 %v1643, %v1631
    %v2028 = vpack.c.b16 %v1644, %v1632
    %v2029 = vpack.c.b16 %v1645, %v1633
    %v2030 = vpack.c.b16 %v1646, %v1634
    %v2031 = vpack.c.b16 %v1647, %v1635
    %v2032 = vpack.c.b16 %v1648, %v1636
    %2417 = vmatpush.bf16.msra.mxu0 %v1733
    %2418 = vmatpush.bf16.msra.mxu0 %v1721
    %2419 = vmatpush.bf16.msra.mxu0 %v1709
    %2420 = vmatpush.bf16.msra.mxu0 %v1697
    %2421 = vmatpush.bf16.msra.mxu0 %v1685
    %2422 = vmatpush.bf16.msra.mxu0 %v1673
    %2423 = vmatpush.bf16.msra.mxu0 %v1661
    %2424 = vmatpush.bf16.msra.mxu0 %v1649
    %2425 = vmatmul.bf16.gmra.mxu0 %v489
    %v2426 = vpop.f32.mrf.mxu0
    %v2427 = vadd.f32 %v453, %v2426
    %v2428 = vpop.f32.mrf.mxu0
    %v2429 = vadd.f32 %v453, %v2428
    %2430 = vdwg.mxu0
    %2431 = vmatpush.bf16.msra.mxu0 %v1829
    %2432 = vmatpush.bf16.msra.mxu0 %v1817
    %2433 = vmatpush.bf16.msra.mxu0 %v1805
    %2434 = vmatpush.bf16.msra.mxu0 %v1793
    %2435 = vmatpush.bf16.msra.mxu0 %v1781
    %2436 = vmatpush.bf16.msra.mxu0 %v1769
    %2437 = vmatpush.bf16.msra.mxu0 %v1757
    %2438 = vmatpush.bf16.msra.mxu0 %v1745
    %2439 = vmatmul.bf16.gmra.mxu0 %v490
    %v2440 = vpop.f32.mrf.mxu0
    %v2441 = vadd.f32 %v2427, %v2440
    %v2442 = vpop.f32.mrf.mxu0
    %v2443 = vadd.f32 %v2429, %v2442
    %2444 = vdwg.mxu0
    %2445 = vmatpush.bf16.msra.mxu0 %v1925
    %2446 = vmatpush.bf16.msra.mxu0 %v1913
    %2447 = vmatpush.bf16.msra.mxu0 %v1901
    %2448 = vmatpush.bf16.msra.mxu0 %v1889
    %2449 = vmatpush.bf16.msra.mxu0 %v1877
    %2450 = vmatpush.bf16.msra.mxu0 %v1865
    %2451 = vmatpush.bf16.msra.mxu0 %v1853
    %2452 = vmatpush.bf16.msra.mxu0 %v1841
    %2453 = vmatmul.bf16.gmra.mxu0 %v491
    %v2454 = vpop.f32.mrf.mxu0
    %v2455 = vadd.f32 %v2441, %v2454
    %v2456 = vpop.f32.mrf.mxu0
    %v2457 = vadd.f32 %v2443, %v2456
    %2458 = vdwg.mxu0
    %2459 = vmatpush.bf16.msra.mxu0 %v2021
    %2460 = vmatpush.bf16.msra.mxu0 %v2009
    %2461 = vmatpush.bf16.msra.mxu0 %v1997
    %2462 = vmatpush.bf16.msra.mxu0 %v1985
    %2463 = vmatpush.bf16.msra.mxu0 %v1973
    %2464 = vmatpush.bf16.msra.mxu0 %v1961
    %2465 = vmatpush.bf16.msra.mxu0 %v1949
    %2466 = vmatpush.bf16.msra.mxu0 %v1937
    %2467 = vmatmul.bf16.gmra.mxu0 %v492
    %v2468 = vpop.f32.mrf.mxu0
    %v2469 = vadd.f32 %v2455, %v2468
    %v2470 = vpop.f32.mrf.mxu0
    %v2471 = vadd.f32 %v2457, %v2470
    %2472 = vdwg.mxu0
    %2473 = vmatpush.bf16.msra.mxu0 %v1734
    %2474 = vmatpush.bf16.msra.mxu0 %v1722
    %2475 = vmatpush.bf16.msra.mxu0 %v1710
    %2476 = vmatpush.bf16.msra.mxu0 %v1698
    %2477 = vmatpush.bf16.msra.mxu0 %v1686
    %2478 = vmatpush.bf16.msra.mxu0 %v1674
    %2479 = vmatpush.bf16.msra.mxu0 %v1662
    %2480 = vmatpush.bf16.msra.mxu0 %v1650
    %2481 = vmatmul.bf16.gmra.mxu0 %v489
    %v2482 = vpop.f32.mrf.mxu0
    %v2483 = vadd.f32 %v454, %v2482
    %v2484 = vpop.f32.mrf.mxu0
    %v2485 = vadd.f32 %v454, %v2484
    %2486 = vdwg.mxu0
    %2487 = vmatpush.bf16.msra.mxu0 %v1830
    %2488 = vmatpush.bf16.msra.mxu0 %v1818
    %2489 = vmatpush.bf16.msra.mxu0 %v1806
    %2490 = vmatpush.bf16.msra.mxu0 %v1794
    %2491 = vmatpush.bf16.msra.mxu0 %v1782
    %2492 = vmatpush.bf16.msra.mxu0 %v1770
    %2493 = vmatpush.bf16.msra.mxu0 %v1758
    %2494 = vmatpush.bf16.msra.mxu0 %v1746
    %2495 = vmatmul.bf16.gmra.mxu0 %v490
    %v2496 = vpop.f32.mrf.mxu0
    %v2497 = vadd.f32 %v2483, %v2496
    %v2498 = vpop.f32.mrf.mxu0
    %v2499 = vadd.f32 %v2485, %v2498
    %2500 = vdwg.mxu0
    %2501 = vmatpush.bf16.msra.mxu0 %v1926
    %2502 = vmatpush.bf16.msra.mxu0 %v1914
    %2503 = vmatpush.bf16.msra.mxu0 %v1902
    %2504 = vmatpush.bf16.msra.mxu0 %v1890
    %2505 = vmatpush.bf16.msra.mxu0 %v1878
    %2506 = vmatpush.bf16.msra.mxu0 %v1866
    %2507 = vmatpush.bf16.msra.mxu0 %v1854
    %2508 = vmatpush.bf16.msra.mxu0 %v1842
    %2509 = vmatmul.bf16.gmra.mxu0 %v491
    %v2510 = vpop.f32.mrf.mxu0
    %v2511 = vadd.f32 %v2497, %v2510
    %v2512 = vpop.f32.mrf.mxu0
    %v2513 = vadd.f32 %v2499, %v2512
    %2514 = vdwg.mxu0
    %2515 = vmatpush.bf16.msra.mxu0 %v2022
    %2516 = vmatpush.bf16.msra.mxu0 %v2010
    %2517 = vmatpush.bf16.msra.mxu0 %v1998
    %2518 = vmatpush.bf16.msra.mxu0 %v1986
    %2519 = vmatpush.bf16.msra.mxu0 %v1974
    %2520 = vmatpush.bf16.msra.mxu0 %v1962
    %2521 = vmatpush.bf16.msra.mxu0 %v1950
    %2522 = vmatpush.bf16.msra.mxu0 %v1938
    %2523 = vmatmul.bf16.gmra.mxu0 %v492
    %v2524 = vpop.f32.mrf.mxu0
    %v2525 = vadd.f32 %v2511, %v2524
    %v2526 = vpop.f32.mrf.mxu0
    %v2527 = vadd.f32 %v2513, %v2526
    %2528 = vdwg.mxu0
    %2529 = vmatpush.bf16.msra.mxu0 %v1735
    %2530 = vmatpush.bf16.msra.mxu0 %v1723
    %2531 = vmatpush.bf16.msra.mxu0 %v1711
    %2532 = vmatpush.bf16.msra.mxu0 %v1699
    %2533 = vmatpush.bf16.msra.mxu0 %v1687
    %2534 = vmatpush.bf16.msra.mxu0 %v1675
    %2535 = vmatpush.bf16.msra.mxu0 %v1663
    %2536 = vmatpush.bf16.msra.mxu0 %v1651
    %2537 = vmatmul.bf16.gmra.mxu0 %v489
    %v2538 = vpop.f32.mrf.mxu0
    %v2539 = vadd.f32 %v455, %v2538
    %v2540 = vpop.f32.mrf.mxu0
    %v2541 = vadd.f32 %v455, %v2540
    %2542 = vdwg.mxu0
    %2543 = vmatpush.bf16.msra.mxu0 %v1831
    %2544 = vmatpush.bf16.msra.mxu0 %v1819
    %2545 = vmatpush.bf16.msra.mxu0 %v1807
    %2546 = vmatpush.bf16.msra.mxu0 %v1795
    %2547 = vmatpush.bf16.msra.mxu0 %v1783
    %2548 = vmatpush.bf16.msra.mxu0 %v1771
    %2549 = vmatpush.bf16.msra.mxu0 %v1759
    %2550 = vmatpush.bf16.msra.mxu0 %v1747
    %2551 = vmatmul.bf16.gmra.mxu0 %v490
    %v2552 = vpop.f32.mrf.mxu0
    %v2553 = vadd.f32 %v2539, %v2552
    %v2554 = vpop.f32.mrf.mxu0
    %v2555 = vadd.f32 %v2541, %v2554
    %2556 = vdwg.mxu0
    %2557 = vmatpush.bf16.msra.mxu0 %v1927
    %2558 = vmatpush.bf16.msra.mxu0 %v1915
    %2559 = vmatpush.bf16.msra.mxu0 %v1903
    %2560 = vmatpush.bf16.msra.mxu0 %v1891
    %2561 = vmatpush.bf16.msra.mxu0 %v1879
    %2562 = vmatpush.bf16.msra.mxu0 %v1867
    %2563 = vmatpush.bf16.msra.mxu0 %v1855
    %2564 = vmatpush.bf16.msra.mxu0 %v1843
    %2565 = vmatmul.bf16.gmra.mxu0 %v491
    %v2566 = vpop.f32.mrf.mxu0
    %v2567 = vadd.f32 %v2553, %v2566
    %v2568 = vpop.f32.mrf.mxu0
    %v2569 = vadd.f32 %v2555, %v2568
    %2570 = vdwg.mxu0
    %2571 = vmatpush.bf16.msra.mxu0 %v2023
    %2572 = vmatpush.bf16.msra.mxu0 %v2011
    %2573 = vmatpush.bf16.msra.mxu0 %v1999
    %2574 = vmatpush.bf16.msra.mxu0 %v1987
    %2575 = vmatpush.bf16.msra.mxu0 %v1975
    %2576 = vmatpush.bf16.msra.mxu0 %v1963
    %2577 = vmatpush.bf16.msra.mxu0 %v1951
    %2578 = vmatpush.bf16.msra.mxu0 %v1939
    %2579 = vmatmul.bf16.gmra.mxu0 %v492
    %v2580 = vpop.f32.mrf.mxu0
    %v2581 = vadd.f32 %v2567, %v2580
    %v2582 = vpop.f32.mrf.mxu0
    %v2583 = vadd.f32 %v2569, %v2582
    %2584 = vdwg.mxu0
    %2585 = vmatpush.bf16.msra.mxu0 %v1736
    %2586 = vmatpush.bf16.msra.mxu0 %v1724
    %2587 = vmatpush.bf16.msra.mxu0 %v1712
    %2588 = vmatpush.bf16.msra.mxu0 %v1700
    %2589 = vmatpush.bf16.msra.mxu0 %v1688
    %2590 = vmatpush.bf16.msra.mxu0 %v1676
    %2591 = vmatpush.bf16.msra.mxu0 %v1664
    %2592 = vmatpush.bf16.msra.mxu0 %v1652
    %2593 = vmatmul.bf16.gmra.mxu0 %v489
    %v2594 = vpop.f32.mrf.mxu0
    %v2595 = vadd.f32 %v456, %v2594
    %v2596 = vpop.f32.mrf.mxu0
    %v2597 = vadd.f32 %v456, %v2596
    %2598 = vdwg.mxu0
    %2599 = vmatpush.bf16.msra.mxu0 %v1832
    %2600 = vmatpush.bf16.msra.mxu0 %v1820
    %2601 = vmatpush.bf16.msra.mxu0 %v1808
    %2602 = vmatpush.bf16.msra.mxu0 %v1796
    %2603 = vmatpush.bf16.msra.mxu0 %v1784
    %2604 = vmatpush.bf16.msra.mxu0 %v1772
    %2605 = vmatpush.bf16.msra.mxu0 %v1760
    %2606 = vmatpush.bf16.msra.mxu0 %v1748
    %2607 = vmatmul.bf16.gmra.mxu0 %v490
    %v2608 = vpop.f32.mrf.mxu0
    %v2609 = vadd.f32 %v2595, %v2608
    %v2610 = vpop.f32.mrf.mxu0
    %v2611 = vadd.f32 %v2597, %v2610
    %2612 = vdwg.mxu0
    %2613 = vmatpush.bf16.msra.mxu0 %v1928
    %2614 = vmatpush.bf16.msra.mxu0 %v1916
    %2615 = vmatpush.bf16.msra.mxu0 %v1904
    %2616 = vmatpush.bf16.msra.mxu0 %v1892
    %2617 = vmatpush.bf16.msra.mxu0 %v1880
    %2618 = vmatpush.bf16.msra.mxu0 %v1868
    %2619 = vmatpush.bf16.msra.mxu0 %v1856
    %2620 = vmatpush.bf16.msra.mxu0 %v1844
    %2621 = vmatmul.bf16.gmra.mxu0 %v491
    %v2622 = vpop.f32.mrf.mxu0
    %v2623 = vadd.f32 %v2609, %v2622
    %v2624 = vpop.f32.mrf.mxu0
    %v2625 = vadd.f32 %v2611, %v2624
    %2626 = vdwg.mxu0
    %2627 = vmatpush.bf16.msra.mxu0 %v2024
    %2628 = vmatpush.bf16.msra.mxu0 %v2012
    %2629 = vmatpush.bf16.msra.mxu0 %v2000
    %2630 = vmatpush.bf16.msra.mxu0 %v1988
    %2631 = vmatpush.bf16.msra.mxu0 %v1976
    %2632 = vmatpush.bf16.msra.mxu0 %v1964
    %2633 = vmatpush.bf16.msra.mxu0 %v1952
    %2634 = vmatpush.bf16.msra.mxu0 %v1940
    %2635 = vmatmul.bf16.gmra.mxu0 %v492
    %v2636 = vpop.f32.mrf.mxu0
    %v2637 = vadd.f32 %v2623, %v2636
    %v2638 = vpop.f32.mrf.mxu0
    %v2639 = vadd.f32 %v2625, %v2638
    %2640 = vdwg.mxu0
    %2641 = vmatpush.bf16.msra.mxu0 %v1737
    %2642 = vmatpush.bf16.msra.mxu0 %v1725
    %2643 = vmatpush.bf16.msra.mxu0 %v1713
    %2644 = vmatpush.bf16.msra.mxu0 %v1701
    %2645 = vmatpush.bf16.msra.mxu0 %v1689
    %2646 = vmatpush.bf16.msra.mxu0 %v1677
    %2647 = vmatpush.bf16.msra.mxu0 %v1665
    %2648 = vmatpush.bf16.msra.mxu0 %v1653
    %2649 = vmatmul.bf16.gmra.mxu0 %v489
    %v2650 = vpop.f32.mrf.mxu0
    %v2651 = vadd.f32 %v457, %v2650
    %v2652 = vpop.f32.mrf.mxu0
    %v2653 = vadd.f32 %v457, %v2652
    %2654 = vdwg.mxu0
    %2655 = vmatpush.bf16.msra.mxu0 %v1833
    %2656 = vmatpush.bf16.msra.mxu0 %v1821
    %2657 = vmatpush.bf16.msra.mxu0 %v1809
    %2658 = vmatpush.bf16.msra.mxu0 %v1797
    %2659 = vmatpush.bf16.msra.mxu0 %v1785
    %2660 = vmatpush.bf16.msra.mxu0 %v1773
    %2661 = vmatpush.bf16.msra.mxu0 %v1761
    %2662 = vmatpush.bf16.msra.mxu0 %v1749
    %2663 = vmatmul.bf16.gmra.mxu0 %v490
    %v2664 = vpop.f32.mrf.mxu0
    %v2665 = vadd.f32 %v2651, %v2664
    %v2666 = vpop.f32.mrf.mxu0
    %v2667 = vadd.f32 %v2653, %v2666
    %2668 = vdwg.mxu0
    %2669 = vmatpush.bf16.msra.mxu0 %v1929
    %2670 = vmatpush.bf16.msra.mxu0 %v1917
    %2671 = vmatpush.bf16.msra.mxu0 %v1905
    %2672 = vmatpush.bf16.msra.mxu0 %v1893
    %2673 = vmatpush.bf16.msra.mxu0 %v1881
    %2674 = vmatpush.bf16.msra.mxu0 %v1869
    %2675 = vmatpush.bf16.msra.mxu0 %v1857
    %2676 = vmatpush.bf16.msra.mxu0 %v1845
    %2677 = vmatmul.bf16.gmra.mxu0 %v491
    %v2678 = vpop.f32.mrf.mxu0
    %v2679 = vadd.f32 %v2665, %v2678
    %v2680 = vpop.f32.mrf.mxu0
    %v2681 = vadd.f32 %v2667, %v2680
    %2682 = vdwg.mxu0
    %2683 = vmatpush.bf16.msra.mxu0 %v2025
    %2684 = vmatpush.bf16.msra.mxu0 %v2013
    %2685 = vmatpush.bf16.msra.mxu0 %v2001
    %2686 = vmatpush.bf16.msra.mxu0 %v1989
    %2687 = vmatpush.bf16.msra.mxu0 %v1977
    %2688 = vmatpush.bf16.msra.mxu0 %v1965
    %2689 = vmatpush.bf16.msra.mxu0 %v1953
    %2690 = vmatpush.bf16.msra.mxu0 %v1941
    %2691 = vmatmul.bf16.gmra.mxu0 %v492
    %v2692 = vpop.f32.mrf.mxu0
    %v2693 = vadd.f32 %v2679, %v2692
    %v2694 = vpop.f32.mrf.mxu0
    %v2695 = vadd.f32 %v2681, %v2694
    %2696 = vdwg.mxu0
    %2697 = vmatpush.bf16.msra.mxu0 %v1738
    %2698 = vmatpush.bf16.msra.mxu0 %v1726
    %2699 = vmatpush.bf16.msra.mxu0 %v1714
    %2700 = vmatpush.bf16.msra.mxu0 %v1702
    %2701 = vmatpush.bf16.msra.mxu0 %v1690
    %2702 = vmatpush.bf16.msra.mxu0 %v1678
    %2703 = vmatpush.bf16.msra.mxu0 %v1666
    %2704 = vmatpush.bf16.msra.mxu0 %v1654
    %2705 = vmatmul.bf16.gmra.mxu0 %v489
    %v2706 = vpop.f32.mrf.mxu0
    %v2707 = vadd.f32 %v458, %v2706
    %v2708 = vpop.f32.mrf.mxu0
    %v2709 = vadd.f32 %v458, %v2708
    %2710 = vdwg.mxu0
    %2711 = vmatpush.bf16.msra.mxu0 %v1834
    %2712 = vmatpush.bf16.msra.mxu0 %v1822
    %2713 = vmatpush.bf16.msra.mxu0 %v1810
    %2714 = vmatpush.bf16.msra.mxu0 %v1798
    %2715 = vmatpush.bf16.msra.mxu0 %v1786
    %2716 = vmatpush.bf16.msra.mxu0 %v1774
    %2717 = vmatpush.bf16.msra.mxu0 %v1762
    %2718 = vmatpush.bf16.msra.mxu0 %v1750
    %2719 = vmatmul.bf16.gmra.mxu0 %v490
    %v2720 = vpop.f32.mrf.mxu0
    %v2721 = vadd.f32 %v2707, %v2720
    %v2722 = vpop.f32.mrf.mxu0
    %v2723 = vadd.f32 %v2709, %v2722
    %2724 = vdwg.mxu0
    %2725 = vmatpush.bf16.msra.mxu0 %v1930
    %2726 = vmatpush.bf16.msra.mxu0 %v1918
    %2727 = vmatpush.bf16.msra.mxu0 %v1906
    %2728 = vmatpush.bf16.msra.mxu0 %v1894
    %2729 = vmatpush.bf16.msra.mxu0 %v1882
    %2730 = vmatpush.bf16.msra.mxu0 %v1870
    %2731 = vmatpush.bf16.msra.mxu0 %v1858
    %2732 = vmatpush.bf16.msra.mxu0 %v1846
    %2733 = vmatmul.bf16.gmra.mxu0 %v491
    %v2734 = vpop.f32.mrf.mxu0
    %v2735 = vadd.f32 %v2721, %v2734
    %v2736 = vpop.f32.mrf.mxu0
    %v2737 = vadd.f32 %v2723, %v2736
    %2738 = vdwg.mxu0
    %2739 = vmatpush.bf16.msra.mxu0 %v2026
    %2740 = vmatpush.bf16.msra.mxu0 %v2014
    %2741 = vmatpush.bf16.msra.mxu0 %v2002
    %2742 = vmatpush.bf16.msra.mxu0 %v1990
    %2743 = vmatpush.bf16.msra.mxu0 %v1978
    %2744 = vmatpush.bf16.msra.mxu0 %v1966
    %2745 = vmatpush.bf16.msra.mxu0 %v1954
    %2746 = vmatpush.bf16.msra.mxu0 %v1942
    %2747 = vmatmul.bf16.gmra.mxu0 %v492
    %v2748 = vpop.f32.mrf.mxu0
    %v2749 = vadd.f32 %v2735, %v2748
    %v2750 = vpop.f32.mrf.mxu0
    %v2751 = vadd.f32 %v2737, %v2750
    %2752 = vdwg.mxu0
    %2753 = vmatpush.bf16.msra.mxu0 %v1739
    %2754 = vmatpush.bf16.msra.mxu0 %v1727
    %2755 = vmatpush.bf16.msra.mxu0 %v1715
    %2756 = vmatpush.bf16.msra.mxu0 %v1703
    %2757 = vmatpush.bf16.msra.mxu0 %v1691
    %2758 = vmatpush.bf16.msra.mxu0 %v1679
    %2759 = vmatpush.bf16.msra.mxu0 %v1667
    %2760 = vmatpush.bf16.msra.mxu0 %v1655
    %2761 = vmatmul.bf16.gmra.mxu0 %v489
    %v2762 = vpop.f32.mrf.mxu0
    %v2763 = vadd.f32 %v459, %v2762
    %v2764 = vpop.f32.mrf.mxu0
    %v2765 = vadd.f32 %v459, %v2764
    %2766 = vdwg.mxu0
    %2767 = vmatpush.bf16.msra.mxu0 %v1835
    %2768 = vmatpush.bf16.msra.mxu0 %v1823
    %2769 = vmatpush.bf16.msra.mxu0 %v1811
    %2770 = vmatpush.bf16.msra.mxu0 %v1799
    %2771 = vmatpush.bf16.msra.mxu0 %v1787
    %2772 = vmatpush.bf16.msra.mxu0 %v1775
    %2773 = vmatpush.bf16.msra.mxu0 %v1763
    %2774 = vmatpush.bf16.msra.mxu0 %v1751
    %2775 = vmatmul.bf16.gmra.mxu0 %v490
    %v2776 = vpop.f32.mrf.mxu0
    %v2777 = vadd.f32 %v2763, %v2776
    %v2778 = vpop.f32.mrf.mxu0
    %v2779 = vadd.f32 %v2765, %v2778
    %2780 = vdwg.mxu0
    %2781 = vmatpush.bf16.msra.mxu0 %v1931
    %2782 = vmatpush.bf16.msra.mxu0 %v1919
    %2783 = vmatpush.bf16.msra.mxu0 %v1907
    %2784 = vmatpush.bf16.msra.mxu0 %v1895
    %2785 = vmatpush.bf16.msra.mxu0 %v1883
    %2786 = vmatpush.bf16.msra.mxu0 %v1871
    %2787 = vmatpush.bf16.msra.mxu0 %v1859
    %2788 = vmatpush.bf16.msra.mxu0 %v1847
    %2789 = vmatmul.bf16.gmra.mxu0 %v491
    %v2790 = vpop.f32.mrf.mxu0
    %v2791 = vadd.f32 %v2777, %v2790
    %v2792 = vpop.f32.mrf.mxu0
    %v2793 = vadd.f32 %v2779, %v2792
    %2794 = vdwg.mxu0
    %2795 = vmatpush.bf16.msra.mxu0 %v2027
    %2796 = vmatpush.bf16.msra.mxu0 %v2015
    %2797 = vmatpush.bf16.msra.mxu0 %v2003
    %2798 = vmatpush.bf16.msra.mxu0 %v1991
    %2799 = vmatpush.bf16.msra.mxu0 %v1979
    %2800 = vmatpush.bf16.msra.mxu0 %v1967
    %2801 = vmatpush.bf16.msra.mxu0 %v1955
    %2802 = vmatpush.bf16.msra.mxu0 %v1943
    %2803 = vmatmul.bf16.gmra.mxu0 %v492
    %v2804 = vpop.f32.mrf.mxu0
    %v2805 = vadd.f32 %v2791, %v2804
    %v2806 = vpop.f32.mrf.mxu0
    %v2807 = vadd.f32 %v2793, %v2806
    %2808 = vdwg.mxu0
    %2809 = vmatpush.bf16.msra.mxu0 %v1740
    %2810 = vmatpush.bf16.msra.mxu0 %v1728
    %2811 = vmatpush.bf16.msra.mxu0 %v1716
    %2812 = vmatpush.bf16.msra.mxu0 %v1704
    %2813 = vmatpush.bf16.msra.mxu0 %v1692
    %2814 = vmatpush.bf16.msra.mxu0 %v1680
    %2815 = vmatpush.bf16.msra.mxu0 %v1668
    %2816 = vmatpush.bf16.msra.mxu0 %v1656
    %2817 = vmatmul.bf16.gmra.mxu0 %v489
    %v2818 = vpop.f32.mrf.mxu0
    %v2819 = vadd.f32 %v460, %v2818
    %v2820 = vpop.f32.mrf.mxu0
    %v2821 = vadd.f32 %v460, %v2820
    %2822 = vdwg.mxu0
    %2823 = vmatpush.bf16.msra.mxu0 %v1836
    %2824 = vmatpush.bf16.msra.mxu0 %v1824
    %2825 = vmatpush.bf16.msra.mxu0 %v1812
    %2826 = vmatpush.bf16.msra.mxu0 %v1800
    %2827 = vmatpush.bf16.msra.mxu0 %v1788
    %2828 = vmatpush.bf16.msra.mxu0 %v1776
    %2829 = vmatpush.bf16.msra.mxu0 %v1764
    %2830 = vmatpush.bf16.msra.mxu0 %v1752
    %2831 = vmatmul.bf16.gmra.mxu0 %v490
    %v2832 = vpop.f32.mrf.mxu0
    %v2833 = vadd.f32 %v2819, %v2832
    %v2834 = vpop.f32.mrf.mxu0
    %v2835 = vadd.f32 %v2821, %v2834
    %2836 = vdwg.mxu0
    %2837 = vmatpush.bf16.msra.mxu0 %v1932
    %2838 = vmatpush.bf16.msra.mxu0 %v1920
    %2839 = vmatpush.bf16.msra.mxu0 %v1908
    %2840 = vmatpush.bf16.msra.mxu0 %v1896
    %2841 = vmatpush.bf16.msra.mxu0 %v1884
    %2842 = vmatpush.bf16.msra.mxu0 %v1872
    %2843 = vmatpush.bf16.msra.mxu0 %v1860
    %2844 = vmatpush.bf16.msra.mxu0 %v1848
    %2845 = vmatmul.bf16.gmra.mxu0 %v491
    %v2846 = vpop.f32.mrf.mxu0
    %v2847 = vadd.f32 %v2833, %v2846
    %v2848 = vpop.f32.mrf.mxu0
    %v2849 = vadd.f32 %v2835, %v2848
    %2850 = vdwg.mxu0
    %2851 = vmatpush.bf16.msra.mxu0 %v2028
    %2852 = vmatpush.bf16.msra.mxu0 %v2016
    %2853 = vmatpush.bf16.msra.mxu0 %v2004
    %2854 = vmatpush.bf16.msra.mxu0 %v1992
    %2855 = vmatpush.bf16.msra.mxu0 %v1980
    %2856 = vmatpush.bf16.msra.mxu0 %v1968
    %2857 = vmatpush.bf16.msra.mxu0 %v1956
    %2858 = vmatpush.bf16.msra.mxu0 %v1944
    %2859 = vmatmul.bf16.gmra.mxu0 %v492
    %v2860 = vpop.f32.mrf.mxu0
    %v2861 = vadd.f32 %v2847, %v2860
    %v2862 = vpop.f32.mrf.mxu0
    %v2863 = vadd.f32 %v2849, %v2862
    %2864 = vdwg.mxu0
    %2865 = vmatpush.bf16.msra.mxu0 %v1741
    %2866 = vmatpush.bf16.msra.mxu0 %v1729
    %2867 = vmatpush.bf16.msra.mxu0 %v1717
    %2868 = vmatpush.bf16.msra.mxu0 %v1705
    %2869 = vmatpush.bf16.msra.mxu0 %v1693
    %2870 = vmatpush.bf16.msra.mxu0 %v1681
    %2871 = vmatpush.bf16.msra.mxu0 %v1669
    %2872 = vmatpush.bf16.msra.mxu0 %v1657
    %2873 = vmatmul.bf16.gmra.mxu0 %v489
    %v2874 = vpop.f32.mrf.mxu0
    %v2875 = vadd.f32 %v461, %v2874
    %v2876 = vpop.f32.mrf.mxu0
    %v2877 = vadd.f32 %v461, %v2876
    %2878 = vdwg.mxu0
    %2879 = vmatpush.bf16.msra.mxu0 %v1837
    %2880 = vmatpush.bf16.msra.mxu0 %v1825
    %2881 = vmatpush.bf16.msra.mxu0 %v1813
    %2882 = vmatpush.bf16.msra.mxu0 %v1801
    %2883 = vmatpush.bf16.msra.mxu0 %v1789
    %2884 = vmatpush.bf16.msra.mxu0 %v1777
    %2885 = vmatpush.bf16.msra.mxu0 %v1765
    %2886 = vmatpush.bf16.msra.mxu0 %v1753
    %2887 = vmatmul.bf16.gmra.mxu0 %v490
    %v2888 = vpop.f32.mrf.mxu0
    %v2889 = vadd.f32 %v2875, %v2888
    %v2890 = vpop.f32.mrf.mxu0
    %v2891 = vadd.f32 %v2877, %v2890
    %2892 = vdwg.mxu0
    %2893 = vmatpush.bf16.msra.mxu0 %v1933
    %2894 = vmatpush.bf16.msra.mxu0 %v1921
    %2895 = vmatpush.bf16.msra.mxu0 %v1909
    %2896 = vmatpush.bf16.msra.mxu0 %v1897
    %2897 = vmatpush.bf16.msra.mxu0 %v1885
    %2898 = vmatpush.bf16.msra.mxu0 %v1873
    %2899 = vmatpush.bf16.msra.mxu0 %v1861
    %2900 = vmatpush.bf16.msra.mxu0 %v1849
    %2901 = vmatmul.bf16.gmra.mxu0 %v491
    %v2902 = vpop.f32.mrf.mxu0
    %v2903 = vadd.f32 %v2889, %v2902
    %v2904 = vpop.f32.mrf.mxu0
    %v2905 = vadd.f32 %v2891, %v2904
    %2906 = vdwg.mxu0
    %2907 = vmatpush.bf16.msra.mxu0 %v2029
    %2908 = vmatpush.bf16.msra.mxu0 %v2017
    %2909 = vmatpush.bf16.msra.mxu0 %v2005
    %2910 = vmatpush.bf16.msra.mxu0 %v1993
    %2911 = vmatpush.bf16.msra.mxu0 %v1981
    %2912 = vmatpush.bf16.msra.mxu0 %v1969
    %2913 = vmatpush.bf16.msra.mxu0 %v1957
    %2914 = vmatpush.bf16.msra.mxu0 %v1945
    %2915 = vmatmul.bf16.gmra.mxu0 %v492
    %v2916 = vpop.f32.mrf.mxu0
    %v2917 = vadd.f32 %v2903, %v2916
    %v2918 = vpop.f32.mrf.mxu0
    %v2919 = vadd.f32 %v2905, %v2918
    %2920 = vdwg.mxu0
    %2921 = vmatpush.bf16.msra.mxu0 %v1742
    %2922 = vmatpush.bf16.msra.mxu0 %v1730
    %2923 = vmatpush.bf16.msra.mxu0 %v1718
    %2924 = vmatpush.bf16.msra.mxu0 %v1706
    %2925 = vmatpush.bf16.msra.mxu0 %v1694
    %2926 = vmatpush.bf16.msra.mxu0 %v1682
    %2927 = vmatpush.bf16.msra.mxu0 %v1670
    %2928 = vmatpush.bf16.msra.mxu0 %v1658
    %2929 = vmatmul.bf16.gmra.mxu0 %v489
    %v2930 = vpop.f32.mrf.mxu0
    %v2931 = vadd.f32 %v462, %v2930
    %v2932 = vpop.f32.mrf.mxu0
    %v2933 = vadd.f32 %v462, %v2932
    %2934 = vdwg.mxu0
    %2935 = vmatpush.bf16.msra.mxu0 %v1838
    %2936 = vmatpush.bf16.msra.mxu0 %v1826
    %2937 = vmatpush.bf16.msra.mxu0 %v1814
    %2938 = vmatpush.bf16.msra.mxu0 %v1802
    %2939 = vmatpush.bf16.msra.mxu0 %v1790
    %2940 = vmatpush.bf16.msra.mxu0 %v1778
    %2941 = vmatpush.bf16.msra.mxu0 %v1766
    %2942 = vmatpush.bf16.msra.mxu0 %v1754
    %2943 = vmatmul.bf16.gmra.mxu0 %v490
    %v2944 = vpop.f32.mrf.mxu0
    %v2945 = vadd.f32 %v2931, %v2944
    %v2946 = vpop.f32.mrf.mxu0
    %v2947 = vadd.f32 %v2933, %v2946
    %2948 = vdwg.mxu0
    %2949 = vmatpush.bf16.msra.mxu0 %v1934
    %2950 = vmatpush.bf16.msra.mxu0 %v1922
    %2951 = vmatpush.bf16.msra.mxu0 %v1910
    %2952 = vmatpush.bf16.msra.mxu0 %v1898
    %2953 = vmatpush.bf16.msra.mxu0 %v1886
    %2954 = vmatpush.bf16.msra.mxu0 %v1874
    %2955 = vmatpush.bf16.msra.mxu0 %v1862
    %2956 = vmatpush.bf16.msra.mxu0 %v1850
    %2957 = vmatmul.bf16.gmra.mxu0 %v491
    %v2958 = vpop.f32.mrf.mxu0
    %v2959 = vadd.f32 %v2945, %v2958
    %v2960 = vpop.f32.mrf.mxu0
    %v2961 = vadd.f32 %v2947, %v2960
    %2962 = vdwg.mxu0
    %2963 = vmatpush.bf16.msra.mxu0 %v2030
    %2964 = vmatpush.bf16.msra.mxu0 %v2018
    %2965 = vmatpush.bf16.msra.mxu0 %v2006
    %2966 = vmatpush.bf16.msra.mxu0 %v1994
    %2967 = vmatpush.bf16.msra.mxu0 %v1982
    %2968 = vmatpush.bf16.msra.mxu0 %v1970
    %2969 = vmatpush.bf16.msra.mxu0 %v1958
    %2970 = vmatpush.bf16.msra.mxu0 %v1946
    %2971 = vmatmul.bf16.gmra.mxu0 %v492
    %v2972 = vpop.f32.mrf.mxu0
    %v2973 = vadd.f32 %v2959, %v2972
    %v2974 = vpop.f32.mrf.mxu0
    %v2975 = vadd.f32 %v2961, %v2974
    %2976 = vdwg.mxu0
    %2977 = vmatpush.bf16.msra.mxu0 %v1743
    %2978 = vmatpush.bf16.msra.mxu0 %v1731
    %2979 = vmatpush.bf16.msra.mxu0 %v1719
    %2980 = vmatpush.bf16.msra.mxu0 %v1707
    %2981 = vmatpush.bf16.msra.mxu0 %v1695
    %2982 = vmatpush.bf16.msra.mxu0 %v1683
    %2983 = vmatpush.bf16.msra.mxu0 %v1671
    %2984 = vmatpush.bf16.msra.mxu0 %v1659
    %2985 = vmatmul.bf16.gmra.mxu0 %v489
    %v2986 = vpop.f32.mrf.mxu0
    %v2987 = vadd.f32 %v463, %v2986
    %v2988 = vpop.f32.mrf.mxu0
    %v2989 = vadd.f32 %v463, %v2988
    %2990 = vdwg.mxu0
    %2991 = vmatpush.bf16.msra.mxu0 %v1839
    %2992 = vmatpush.bf16.msra.mxu0 %v1827
    %2993 = vmatpush.bf16.msra.mxu0 %v1815
    %2994 = vmatpush.bf16.msra.mxu0 %v1803
    %2995 = vmatpush.bf16.msra.mxu0 %v1791
    %2996 = vmatpush.bf16.msra.mxu0 %v1779
    %2997 = vmatpush.bf16.msra.mxu0 %v1767
    %2998 = vmatpush.bf16.msra.mxu0 %v1755
    %2999 = vmatmul.bf16.gmra.mxu0 %v490
    %v3000 = vpop.f32.mrf.mxu0
    %v3001 = vadd.f32 %v2987, %v3000
    %v3002 = vpop.f32.mrf.mxu0
    %v3003 = vadd.f32 %v2989, %v3002
    %3004 = vdwg.mxu0
    %3005 = vmatpush.bf16.msra.mxu0 %v1935
    %3006 = vmatpush.bf16.msra.mxu0 %v1923
    %3007 = vmatpush.bf16.msra.mxu0 %v1911
    %3008 = vmatpush.bf16.msra.mxu0 %v1899
    %3009 = vmatpush.bf16.msra.mxu0 %v1887
    %3010 = vmatpush.bf16.msra.mxu0 %v1875
    %3011 = vmatpush.bf16.msra.mxu0 %v1863
    %3012 = vmatpush.bf16.msra.mxu0 %v1851
    %3013 = vmatmul.bf16.gmra.mxu0 %v491
    %v3014 = vpop.f32.mrf.mxu0
    %v3015 = vadd.f32 %v3001, %v3014
    %v3016 = vpop.f32.mrf.mxu0
    %v3017 = vadd.f32 %v3003, %v3016
    %3018 = vdwg.mxu0
    %3019 = vmatpush.bf16.msra.mxu0 %v2031
    %3020 = vmatpush.bf16.msra.mxu0 %v2019
    %3021 = vmatpush.bf16.msra.mxu0 %v2007
    %3022 = vmatpush.bf16.msra.mxu0 %v1995
    %3023 = vmatpush.bf16.msra.mxu0 %v1983
    %3024 = vmatpush.bf16.msra.mxu0 %v1971
    %3025 = vmatpush.bf16.msra.mxu0 %v1959
    %3026 = vmatpush.bf16.msra.mxu0 %v1947
    %3027 = vmatmul.bf16.gmra.mxu0 %v492
    %v3028 = vpop.f32.mrf.mxu0
    %v3029 = vadd.f32 %v3015, %v3028
    %v3030 = vpop.f32.mrf.mxu0
    %v3031 = vadd.f32 %v3017, %v3030
    %3032 = vdwg.mxu0
    %3033 = vmatpush.bf16.msra.mxu0 %v1744
    %3034 = vmatpush.bf16.msra.mxu0 %v1732
    %3035 = vmatpush.bf16.msra.mxu0 %v1720
    %3036 = vmatpush.bf16.msra.mxu0 %v1708
    %3037 = vmatpush.bf16.msra.mxu0 %v1696
    %3038 = vmatpush.bf16.msra.mxu0 %v1684
    %3039 = vmatpush.bf16.msra.mxu0 %v1672
    %3040 = vmatpush.bf16.msra.mxu0 %v1660
    %3041 = vmatmul.bf16.gmra.mxu0 %v489
    %v3042 = vpop.f32.mrf.mxu0
    %v3043 = vadd.f32 %v464, %v3042
    %v3044 = vpop.f32.mrf.mxu0
    %v3045 = vadd.f32 %v464, %v3044
    %3046 = vdwg.mxu0
    %3047 = vmatpush.bf16.msra.mxu0 %v1840
    %3048 = vmatpush.bf16.msra.mxu0 %v1828
    %3049 = vmatpush.bf16.msra.mxu0 %v1816
    %3050 = vmatpush.bf16.msra.mxu0 %v1804
    %3051 = vmatpush.bf16.msra.mxu0 %v1792
    %3052 = vmatpush.bf16.msra.mxu0 %v1780
    %3053 = vmatpush.bf16.msra.mxu0 %v1768
    %3054 = vmatpush.bf16.msra.mxu0 %v1756
    %3055 = vmatmul.bf16.gmra.mxu0 %v490
    %v3056 = vpop.f32.mrf.mxu0
    %v3057 = vadd.f32 %v3043, %v3056
    %v3058 = vpop.f32.mrf.mxu0
    %v3059 = vadd.f32 %v3045, %v3058
    %3060 = vdwg.mxu0
    %3061 = vmatpush.bf16.msra.mxu0 %v1936
    %3062 = vmatpush.bf16.msra.mxu0 %v1924
    %3063 = vmatpush.bf16.msra.mxu0 %v1912
    %3064 = vmatpush.bf16.msra.mxu0 %v1900
    %3065 = vmatpush.bf16.msra.mxu0 %v1888
    %3066 = vmatpush.bf16.msra.mxu0 %v1876
    %3067 = vmatpush.bf16.msra.mxu0 %v1864
    %3068 = vmatpush.bf16.msra.mxu0 %v1852
    %3069 = vmatmul.bf16.gmra.mxu0 %v491
    %v3070 = vpop.f32.mrf.mxu0
    %v3071 = vadd.f32 %v3057, %v3070
    %v3072 = vpop.f32.mrf.mxu0
    %v3073 = vadd.f32 %v3059, %v3072
    %3074 = vdwg.mxu0
    %3075 = vmatpush.bf16.msra.mxu0 %v2032
    %3076 = vmatpush.bf16.msra.mxu0 %v2020
    %3077 = vmatpush.bf16.msra.mxu0 %v2008
    %3078 = vmatpush.bf16.msra.mxu0 %v1996
    %3079 = vmatpush.bf16.msra.mxu0 %v1984
    %3080 = vmatpush.bf16.msra.mxu0 %v1972
    %3081 = vmatpush.bf16.msra.mxu0 %v1960
    %3082 = vmatpush.bf16.msra.mxu0 %v1948
    %3083 = vmatmul.bf16.gmra.mxu0 %v492
    %v3084 = vpop.f32.mrf.mxu0
    %v3085 = vadd.f32 %v3071, %v3084
    %v3086 = vpop.f32.mrf.mxu0
    %v3087 = vadd.f32 %v3073, %v3086
    %3088 = vdwg.mxu0
    %v3089 = vmul.f32 %v2469, 0.088388346
    %v3090 = vmul.f32 %v2471, 0.088388346
    %v3091 = vpack.c.bf16 %v3089, %v3089
    %v3092 = vpack.c.bf16 %v3090, %v3090
    %v3093 = vpack.c.bf16 %v2693, %v2693
    %v3094 = vpack.c.bf16 %v2695, %v2695
    %v3095 = vpack.c.bf16 %v2917, %v2917
    %v3096 = vpack.c.bf16 %v2919, %v2919
    %v3097 = vperm.slane %v62, 0
    %v3098 = vperm.slane %v64, 0
    %3101 = vmatpush.bf16.xpose.msra.mxu0 0
    %3102 = vmatpush.bf16.xpose.msra.mxu0 0
    %3103 = vmatpush.bf16.xpose.msra.mxu0 0
    %3104 = vmatpush.bf16.xpose.msra.mxu0 0
    %3105 = vmatpush.bf16.xpose.msra.mxu0 0
    %3106 = vmatpush.bf16.xpose.msra.mxu0 0
    %3107 = vmatpush.bf16.xpose.msra.mxu0 0
    %3108 = vmatpush.bf16.xpose.msra.mxu0 %v3093
    %3109 = vmatmul.bf16.gmra.mxu0 %v3091
    %v3110 = vpop.f32.mrf.mxu0
    %v3111 = vadd.f32 %v3097, %v3110
    %v3112 = vpop.f32.mrf.mxu0
    %3113 = vdwg.mxu0
    %3114 = vmatpush.bf16.xpose.msra.mxu0 0
    %3115 = vmatpush.bf16.xpose.msra.mxu0 0
    %3116 = vmatpush.bf16.xpose.msra.mxu0 0
    %3117 = vmatpush.bf16.xpose.msra.mxu0 0
    %3118 = vmatpush.bf16.xpose.msra.mxu0 0
    %3119 = vmatpush.bf16.xpose.msra.mxu0 0
    %3120 = vmatpush.bf16.xpose.msra.mxu0 0
    %3121 = vmatpush.bf16.xpose.msra.mxu0 %v3094
    %3122 = vmatmul.bf16.gmra.mxu0 %v3092
    %v3123 = vpop.f32.mrf.mxu0
    %v3124 = vadd.f32 %v3098, %v3123
    %v3125 = vpop.f32.mrf.mxu0
    %3126 = vdwg.mxu0
    %vm3127 = vcmask 64512
    %v3128 = vsel %vm3127, %v3111, -inf
    %3129 = vmax.xlane.f32.xlu0 %v3128
    %v3130 = vpop.xlane.xlu0 %3129
    %v3131 = vsel %vm3127, %v3124, -inf
    %3132 = vmax.xlane.f32.xlu0 %v3131
    %v3133 = vpop.xlane.xlu0 %3132
    %v3134 = vsub.f32 %v3111, %v3130
    %v3135 = vsub.f32 %v3124, %v3133
    %v3136 = vmul.f32 %v3134, 1.442695
    %v3137 = vpow.pop %v3136
    %v3138 = vmul.f32 %v3135, 1.442695
    %v3139 = vpow.pop %v3138
    %v3140 = vsel %vm3127, %v3137, 0.0
    %3141 = vadd.xlane.f32.xlu0 %v3140
    %v3142 = vpop.xlane.xlu0 %3141
    %v3143 = vsel %vm3127, %v3139, 0.0
    %3144 = vadd.xlane.f32.xlu0 %v3143
    %v3145 = vpop.xlane.xlu0 %3144
    %v3146 = vrcp.pop %v3142
    %v3147 = vrcp.pop %v3145
    %v3148 = vmul.f32 %v3137, %v3146
    %v3149 = vmul.f32 %v3139, %v3147
    %v3150 = vpack.c.bf16 %v3148, %v3148
    %v3151 = vpack.c.bf16 %v3149, %v3149
    %v3153 = vsel %vm3127, %v3150, 0
    %vm3155 = vcmask 1043456
    %v3157 = vsel %vm3155, %v3095, 0
    %3159 = vmatpush.bf16.msra.mxu0 0
    %3160 = vmatpush.bf16.msra.mxu0 0
    %3161 = vmatpush.bf16.msra.mxu0 0
    %3162 = vmatpush.bf16.msra.mxu0 0
    %3163 = vmatpush.bf16.msra.mxu0 0
    %3164 = vmatpush.bf16.msra.mxu0 0
    %3165 = vmatpush.bf16.msra.mxu0 0
    %3166 = vmatpush.bf16.msra.mxu0 %v3157
    %3167 = vmatmul.bf16.gmra.mxu0 %v3153
    %v3168 = vpop.f32.mrf.mxu0
    %v3169 = vadd.f32 0.0, %v3168
    %v3170 = vpop.f32.mrf.mxu0
    %3171 = vdwg.mxu0
    %v3173 = vsel %vm3127, %v3151, 0
    %v3176 = vsel %vm3155, %v3096, 0
    %3178 = vmatpush.bf16.msra.mxu0 0
    %3179 = vmatpush.bf16.msra.mxu0 0
    %3180 = vmatpush.bf16.msra.mxu0 0
    %3181 = vmatpush.bf16.msra.mxu0 0
    %3182 = vmatpush.bf16.msra.mxu0 0
    %3183 = vmatpush.bf16.msra.mxu0 0
    %3184 = vmatpush.bf16.msra.mxu0 0
    %3185 = vmatpush.bf16.msra.mxu0 %v3176
    %3186 = vmatmul.bf16.gmra.mxu0 %v3173
    %v3187 = vpop.f32.mrf.mxu0
    %v3188 = vadd.f32 0.0, %v3187
    %v3189 = vpop.f32.mrf.mxu0
    %3190 = vdwg.mxu0
    %v3191 = vpack.c.bf16 %v3188, %v3169
    %v3192 = vld [vmem:[%s6] sm:$0xf]
    %v3193 = vld [vmem:[%s6 + $0x4] sm:$0xf]
    %v3194 = vld [vmem:[%s6 + $0x8] sm:$0xf]
    %v3195 = vld [vmem:[%s6 + $0xc] sm:$0xf]
    %v3196 = vld [vmem:[%s6 + $0x10] sm:$0xf]
    %v3197 = vld [vmem:[%s6 + $0x14] sm:$0xf]
    %v3198 = vld [vmem:[%s6 + $0x18] sm:$0xf]
    %v3199 = vld [vmem:[%s6 + $0x1c] sm:$0xf]
    %v3200 = vld [vmem:[%s6 + $0x20] sm:$0xf]
    %v3201 = vld [vmem:[%s6 + $0x24] sm:$0xf]
    %v3202 = vld [vmem:[%s6 + $0x28] sm:$0xf]
    %v3203 = vld [vmem:[%s6 + $0x2c] sm:$0xf]
    %v3204 = vld [vmem:[%s6 + $0x30] sm:$0xf]
    %v3205 = vld [vmem:[%s6 + $0x34] sm:$0xf]
    %v3206 = vld [vmem:[%s6 + $0x38] sm:$0xf]
    %v3207 = vld [vmem:[%s6 + $0x3c] sm:$0xf]
    %v3208 = vrot.slane %v3169, 4
    %v3209 = vadd.f32 %v3169, %v3208
    %v3210 = vrot.slane %v3209, 2
    %v3211 = vadd.f32 %v3209, %v3210
    %v3212 = vrot.slane %v3211, 1
    %v3213 = vadd.f32 %v3211, %v3212
    %v3214 = vrot.slane %v3188, 4
    %v3215 = vadd.f32 %v3188, %v3214
    %v3216 = vrot.slane %v3215, 2
    %v3217 = vadd.f32 %v3215, %v3216
    %v3218 = vrot.slane %v3217, 1
    %v3219 = vadd.f32 %v3217, %v3218
    %v3220 = vrcp.pop 8.0
    %v3221 = vmul.f32 8.0, %v3220
    %v3222 = vsub.f32 1.0, %v3221
    %v3223 = vmul.f32 %v3220, %v3222
    %v3224 = vadd.f32 %v3220, %v3223
    %vm3225 = vweird.f32 %v3220
    %v3226 = vsel %vm3225, %v3220, %v3224
    %v3227 = vmul.f32 %v3213, %v3226
    %v3228 = vmul.f32 %v3219, %v3226
    %v3229 = vpack.c.bf16 %v3227, %v3227
    %v3230 = vpack.c.bf16 %v3228, %v3228
    %v3231 = vld [vmem:[%s4] sm:$0xff]
    %v3232 = vld [vmem:[%s4 + $0x8] sm:$0xff]
    %v3233 = vld [vmem:[%s4 + $0x10] sm:$0xff]
    %v3234 = vld [vmem:[%s4 + $0x18] sm:$0xff]
    %v3235 = vld [vmem:[%s4 + $0x20] sm:$0xff]
    %v3236 = vld [vmem:[%s4 + $0x28] sm:$0xff]
    %v3237 = vld [vmem:[%s4 + $0x30] sm:$0xff]
    %v3238 = vld [vmem:[%s4 + $0x38] sm:$0xff]
    %v3239 = vld [vmem:[%s4 + $0x40] sm:$0xff]
    %v3240 = vld [vmem:[%s4 + $0x48] sm:$0xff]
    %v3241 = vld [vmem:[%s4 + $0x50] sm:$0xff]
    %v3242 = vld [vmem:[%s4 + $0x58] sm:$0xff]
    %v3243 = vld [vmem:[%s4 + $0x60] sm:$0xff]
    %v3244 = vld [vmem:[%s4 + $0x68] sm:$0xff]
    %v3245 = vld [vmem:[%s4 + $0x70] sm:$0xff]
    %v3246 = vld [vmem:[%s4 + $0x78] sm:$0xff]
    %v3247 = vld [vmem:[%s4 + $0x80] sm:$0xff]
    %v3248 = vld [vmem:[%s4 + $0x88] sm:$0xff]
    %v3249 = vld [vmem:[%s4 + $0x90] sm:$0xff]
    %v3250 = vld [vmem:[%s4 + $0x98] sm:$0xff]
    %v3251 = vld [vmem:[%s4 + $0xa0] sm:$0xff]
    %v3252 = vld [vmem:[%s4 + $0xa8] sm:$0xff]
    %v3253 = vld [vmem:[%s4 + $0xb0] sm:$0xff]
    %v3254 = vld [vmem:[%s4 + $0xb8] sm:$0xff]
    %v3255 = vld [vmem:[%s4 + $0xc0] sm:$0xff]
    %v3256 = vld [vmem:[%s4 + $0xc8] sm:$0xff]
    %v3257 = vld [vmem:[%s4 + $0xd0] sm:$0xff]
    %v3258 = vld [vmem:[%s4 + $0xd8] sm:$0xff]
    %v3259 = vld [vmem:[%s4 + $0xe0] sm:$0xff]
    %v3260 = vld [vmem:[%s4 + $0xe8] sm:$0xff]
    %v3261 = vld [vmem:[%s4 + $0xf0] sm:$0xff]
    %v3262 = vld [vmem:[%s4 + $0xf8] sm:$0xff]
    %v3263 = vmul.f32 %v2525, 0.088388346
    %v3264 = vmul.f32 %v2527, 0.088388346
    %v3265 = vpack.c.bf16 %v3263, %v3263
    %v3266 = vpack.c.bf16 %v3264, %v3264
    %v3267 = vpack.c.bf16 %v2749, %v2749
    %v3268 = vpack.c.bf16 %v2751, %v2751
    %v3269 = vpack.c.bf16 %v2973, %v2973
    %v3270 = vpack.c.bf16 %v2975, %v2975
    %3271 = vmatpush.bf16.xpose.msra.mxu0 0
    %3272 = vmatpush.bf16.xpose.msra.mxu0 0
    %3273 = vmatpush.bf16.xpose.msra.mxu0 0
    %3274 = vmatpush.bf16.xpose.msra.mxu0 0
    %3275 = vmatpush.bf16.xpose.msra.mxu0 0
    %3276 = vmatpush.bf16.xpose.msra.mxu0 0
    %3277 = vmatpush.bf16.xpose.msra.mxu0 0
    %3278 = vmatpush.bf16.xpose.msra.mxu0 %v3267
    %3279 = vmatmul.bf16.gmra.mxu0 %v3265
    %v3280 = vpop.f32.mrf.mxu0
    %v3281 = vadd.f32 %v3097, %v3280
    %v3282 = vpop.f32.mrf.mxu0
    %3283 = vdwg.mxu0
    %3284 = vmatpush.bf16.xpose.msra.mxu0 0
    %3285 = vmatpush.bf16.xpose.msra.mxu0 0
    %3286 = vmatpush.bf16.xpose.msra.mxu0 0
    %3287 = vmatpush.bf16.xpose.msra.mxu0 0
    %3288 = vmatpush.bf16.xpose.msra.mxu0 0
    %3289 = vmatpush.bf16.xpose.msra.mxu0 0
    %3290 = vmatpush.bf16.xpose.msra.mxu0 0
    %3291 = vmatpush.bf16.xpose.msra.mxu0 %v3268
    %3292 = vmatmul.bf16.gmra.mxu0 %v3266
    %v3293 = vpop.f32.mrf.mxu0
    %v3294 = vadd.f32 %v3098, %v3293
    %v3295 = vpop.f32.mrf.mxu0
    %3296 = vdwg.mxu0
    %v3297 = vsel %vm3127, %v3281, -inf
    %3298 = vmax.xlane.f32.xlu0 %v3297
    %v3299 = vpop.xlane.xlu0 %3298
    %v3300 = vsel %vm3127, %v3294, -inf
    %3301 = vmax.xlane.f32.xlu0 %v3300
    %v3302 = vpop.xlane.xlu0 %3301
    %v3303 = vsub.f32 %v3281, %v3299
    %v3304 = vsub.f32 %v3294, %v3302
    %v3305 = vmul.f32 %v3303, 1.442695
    %v3306 = vpow.pop %v3305
    %v3307 = vmul.f32 %v3304, 1.442695
    %v3308 = vpow.pop %v3307
    %v3309 = vsel %vm3127, %v3306, 0.0
    %3310 = vadd.xlane.f32.xlu0 %v3309
    %v3311 = vpop.xlane.xlu0 %3310
    %v3312 = vsel %vm3127, %v3308, 0.0
    %3313 = vadd.xlane.f32.xlu0 %v3312
    %v3314 = vpop.xlane.xlu0 %3313
    %v3315 = vrcp.pop %v3311
    %v3316 = vrcp.pop %v3314
    %v3317 = vmul.f32 %v3306, %v3315
    %v3318 = vmul.f32 %v3308, %v3316
    %v3319 = vpack.c.bf16 %v3317, %v3317
    %v3320 = vpack.c.bf16 %v3318, %v3318
    %v3322 = vsel %vm3127, %v3319, 0
    %v3325 = vsel %vm3155, %v3269, 0
    %3327 = vmatpush.bf16.msra.mxu0 0
    %3328 = vmatpush.bf16.msra.mxu0 0
    %3329 = vmatpush.bf16.msra.mxu0 0
    %3330 = vmatpush.bf16.msra.mxu0 0
    %3331 = vmatpush.bf16.msra.mxu0 0
    %3332 = vmatpush.bf16.msra.mxu0 0
    %3333 = vmatpush.bf16.msra.mxu0 0
    %3334 = vmatpush.bf16.msra.mxu0 %v3325
    %3335 = vmatmul.bf16.gmra.mxu0 %v3322
    %v3336 = vpop.f32.mrf.mxu0
    %v3337 = vadd.f32 0.0, %v3336
    %v3338 = vpop.f32.mrf.mxu0
    %3339 = vdwg.mxu0
    %v3341 = vsel %vm3127, %v3320, 0
    %v3344 = vsel %vm3155, %v3270, 0
    %3346 = vmatpush.bf16.msra.mxu0 0
    %3347 = vmatpush.bf16.msra.mxu0 0
    %3348 = vmatpush.bf16.msra.mxu0 0
    %3349 = vmatpush.bf16.msra.mxu0 0
    %3350 = vmatpush.bf16.msra.mxu0 0
    %3351 = vmatpush.bf16.msra.mxu0 0
    %3352 = vmatpush.bf16.msra.mxu0 0
    %3353 = vmatpush.bf16.msra.mxu0 %v3344
    %3354 = vmatmul.bf16.gmra.mxu0 %v3341
    %v3355 = vpop.f32.mrf.mxu0
    %v3356 = vadd.f32 0.0, %v3355
    %v3357 = vpop.f32.mrf.mxu0
    %3358 = vdwg.mxu0
    %v3359 = vpack.c.bf16 %v3356, %v3337
    %v3360 = vld [vmem:[%s6 + $0x40] sm:$0xf]
    %v3361 = vld [vmem:[%s6 + $0x44] sm:$0xf]
    %v3362 = vld [vmem:[%s6 + $0x48] sm:$0xf]
    %v3363 = vld [vmem:[%s6 + $0x4c] sm:$0xf]
    %v3364 = vld [vmem:[%s6 + $0x50] sm:$0xf]
    %v3365 = vld [vmem:[%s6 + $0x54] sm:$0xf]
    %v3366 = vld [vmem:[%s6 + $0x58] sm:$0xf]
    %v3367 = vld [vmem:[%s6 + $0x5c] sm:$0xf]
    %v3368 = vld [vmem:[%s6 + $0x60] sm:$0xf]
    %v3369 = vld [vmem:[%s6 + $0x64] sm:$0xf]
    %v3370 = vld [vmem:[%s6 + $0x68] sm:$0xf]
    %v3371 = vld [vmem:[%s6 + $0x6c] sm:$0xf]
    %v3372 = vld [vmem:[%s6 + $0x70] sm:$0xf]
    %v3373 = vld [vmem:[%s6 + $0x74] sm:$0xf]
    %v3374 = vld [vmem:[%s6 + $0x78] sm:$0xf]
    %v3375 = vld [vmem:[%s6 + $0x7c] sm:$0xf]
    %v3392 = vunpack.c.l.b16 %v3360
    %v3393 = vunpack.c.l.b16 %v3361
    %v3394 = vunpack.c.l.b16 %v3362
    %v3395 = vunpack.c.l.b16 %v3363
    %v3396 = vunpack.c.l.b16 %v3364
    %v3397 = vunpack.c.l.b16 %v3365
    %v3398 = vunpack.c.l.b16 %v3366
    %v3399 = vunpack.c.l.b16 %v3367
    %v3400 = vunpack.c.l.b16 %v3368
    %v3401 = vunpack.c.l.b16 %v3369
    %v3402 = vunpack.c.l.b16 %v3370
    %v3403 = vunpack.c.l.b16 %v3371
    %v3404 = vunpack.c.l.b16 %v3372
    %v3405 = vunpack.c.l.b16 %v3373
    %v3406 = vunpack.c.l.b16 %v3374
    %v3407 = vunpack.c.l.b16 %v3375
    %v3408 = vpack.c.b16 %v3393, %v3392
    %v3409 = vpack.c.b16 %v3395, %v3394
    %v3410 = vpack.c.b16 %v3397, %v3396
    %v3411 = vpack.c.b16 %v3399, %v3398
    %v3412 = vpack.c.b16 %v3401, %v3400
    %v3413 = vpack.c.b16 %v3403, %v3402
    %v3414 = vpack.c.b16 %v3405, %v3404
    %v3415 = vpack.c.b16 %v3407, %v3406
    %3424 = vmatpush.bf16.msra.mxu0 %v3415
    %3425 = vmatpush.bf16.msra.mxu0 %v3414
    %3426 = vmatpush.bf16.msra.mxu0 %v3413
    %3427 = vmatpush.bf16.msra.mxu0 %v3412
    %3428 = vmatpush.bf16.msra.mxu0 %v3411
    %3429 = vmatpush.bf16.msra.mxu0 %v3410
    %3430 = vmatpush.bf16.msra.mxu0 %v3409
    %3431 = vmatpush.bf16.msra.mxu0 %v3408
    %3432 = vmatmul.bf16.gmra.mxu0 %v3359
    %v3433 = vpop.f32.mrf.mxu0
    %v3434 = vadd.f32 0.0, %v3433
    %v3435 = vpop.f32.mrf.mxu0
    %v3436 = vadd.f32 0.0, %v3435
    %3437 = vdwg.mxu0
    %v3454 = vunpack.c.l.b16 %v3192
    %v3455 = vunpack.c.l.b16 %v3193
    %v3456 = vunpack.c.l.b16 %v3194
    %v3457 = vunpack.c.l.b16 %v3195
    %v3458 = vunpack.c.l.b16 %v3196
    %v3459 = vunpack.c.l.b16 %v3197
    %v3460 = vunpack.c.l.b16 %v3198
    %v3461 = vunpack.c.l.b16 %v3199
    %v3462 = vunpack.c.l.b16 %v3200
    %v3463 = vunpack.c.l.b16 %v3201
    %v3464 = vunpack.c.l.b16 %v3202
    %v3465 = vunpack.c.l.b16 %v3203
    %v3466 = vunpack.c.l.b16 %v3204
    %v3467 = vunpack.c.l.b16 %v3205
    %v3468 = vunpack.c.l.b16 %v3206
    %v3469 = vunpack.c.l.b16 %v3207
    %v3470 = vpack.c.b16 %v3455, %v3454
    %v3471 = vpack.c.b16 %v3457, %v3456
    %v3472 = vpack.c.b16 %v3459, %v3458
    %v3473 = vpack.c.b16 %v3461, %v3460
    %v3474 = vpack.c.b16 %v3463, %v3462
    %v3475 = vpack.c.b16 %v3465, %v3464
    %v3476 = vpack.c.b16 %v3467, %v3466
    %v3477 = vpack.c.b16 %v3469, %v3468
    %3486 = vmatpush.bf16.msra.mxu0 %v3477
    %3487 = vmatpush.bf16.msra.mxu0 %v3476
    %3488 = vmatpush.bf16.msra.mxu0 %v3475
    %3489 = vmatpush.bf16.msra.mxu0 %v3474
    %3490 = vmatpush.bf16.msra.mxu0 %v3473
    %3491 = vmatpush.bf16.msra.mxu0 %v3472
    %3492 = vmatpush.bf16.msra.mxu0 %v3471
    %3493 = vmatpush.bf16.msra.mxu0 %v3470
    %3494 = vmatmul.bf16.gmra.mxu0 %v3191
    %v3495 = vpop.f32.mrf.mxu0
    %v3496 = vadd.f32 %v3434, %v3495
    %v3497 = vpop.f32.mrf.mxu0
    %v3498 = vadd.f32 %v3436, %v3497
    %3499 = vdwg.mxu0
    %v3500 = vrot.slane %v3337, 4
    %v3501 = vadd.f32 %v3337, %v3500
    %v3502 = vrot.slane %v3501, 2
    %v3503 = vadd.f32 %v3501, %v3502
    %v3504 = vrot.slane %v3503, 1
    %v3505 = vadd.f32 %v3503, %v3504
    %v3506 = vrot.slane %v3356, 4
    %v3507 = vadd.f32 %v3356, %v3506
    %v3508 = vrot.slane %v3507, 2
    %v3509 = vadd.f32 %v3507, %v3508
    %v3510 = vrot.slane %v3509, 1
    %v3511 = vadd.f32 %v3509, %v3510
    %v3512 = vmul.f32 %v3505, %v3226
    %v3513 = vmul.f32 %v3511, %v3226
    %v3514 = vpack.c.bf16 %v3512, %v3512
    %v3515 = vpack.c.bf16 %v3513, %v3513
    %v3516 = vld [vmem:[%s4 + $0x100] sm:$0xff]
    %v3517 = vld [vmem:[%s4 + $0x108] sm:$0xff]
    %v3518 = vld [vmem:[%s4 + $0x110] sm:$0xff]
    %v3519 = vld [vmem:[%s4 + $0x118] sm:$0xff]
    %v3520 = vld [vmem:[%s4 + $0x120] sm:$0xff]
    %v3521 = vld [vmem:[%s4 + $0x128] sm:$0xff]
    %v3522 = vld [vmem:[%s4 + $0x130] sm:$0xff]
    %v3523 = vld [vmem:[%s4 + $0x138] sm:$0xff]
    %v3524 = vld [vmem:[%s4 + $0x140] sm:$0xff]
    %v3525 = vld [vmem:[%s4 + $0x148] sm:$0xff]
    %v3526 = vld [vmem:[%s4 + $0x150] sm:$0xff]
    %v3527 = vld [vmem:[%s4 + $0x158] sm:$0xff]
    %v3528 = vld [vmem:[%s4 + $0x160] sm:$0xff]
    %v3529 = vld [vmem:[%s4 + $0x168] sm:$0xff]
    %v3530 = vld [vmem:[%s4 + $0x170] sm:$0xff]
    %v3531 = vld [vmem:[%s4 + $0x178] sm:$0xff]
    %v3532 = vld [vmem:[%s4 + $0x180] sm:$0xff]
    %v3533 = vld [vmem:[%s4 + $0x188] sm:$0xff]
    %v3534 = vld [vmem:[%s4 + $0x190] sm:$0xff]
    %v3535 = vld [vmem:[%s4 + $0x198] sm:$0xff]
    %v3536 = vld [vmem:[%s4 + $0x1a0] sm:$0xff]
    %v3537 = vld [vmem:[%s4 + $0x1a8] sm:$0xff]
    %v3538 = vld [vmem:[%s4 + $0x1b0] sm:$0xff]
    %v3539 = vld [vmem:[%s4 + $0x1b8] sm:$0xff]
    %v3540 = vld [vmem:[%s4 + $0x1c0] sm:$0xff]
    %v3541 = vld [vmem:[%s4 + $0x1c8] sm:$0xff]
    %v3542 = vld [vmem:[%s4 + $0x1d0] sm:$0xff]
    %v3543 = vld [vmem:[%s4 + $0x1d8] sm:$0xff]
    %v3544 = vld [vmem:[%s4 + $0x1e0] sm:$0xff]
    %v3545 = vld [vmem:[%s4 + $0x1e8] sm:$0xff]
    %v3546 = vld [vmem:[%s4 + $0x1f0] sm:$0xff]
    %v3547 = vld [vmem:[%s4 + $0x1f8] sm:$0xff]
    %v3550 = vunpack.c.l.b16 %v3514
    %v3551 = vunpack.c.l.b16 %v3515
    %vm3552 = vcmask 1041409
    %v3553 = vsel %vm3552, %v3551, %v3550
    %v3554 = vpack.c.b16 %v3553, %v3553
    %v3588 = vunpack.c.l.b16 %v3516
    %v3589 = vunpack.c.h.b16 %v3516
    %v3590 = vunpack.c.l.b16 %v3517
    %v3591 = vunpack.c.h.b16 %v3517
    %v3592 = vunpack.c.l.b16 %v3518
    %v3593 = vunpack.c.h.b16 %v3518
    %v3594 = vunpack.c.l.b16 %v3519
    %v3595 = vunpack.c.h.b16 %v3519
    %v3596 = vunpack.c.l.b16 %v3520
    %v3597 = vunpack.c.h.b16 %v3520
    %v3598 = vunpack.c.l.b16 %v3521
    %v3599 = vunpack.c.h.b16 %v3521
    %v3600 = vunpack.c.l.b16 %v3522
    %v3601 = vunpack.c.h.b16 %v3522
    %v3602 = vunpack.c.l.b16 %v3523
    %v3603 = vunpack.c.h.b16 %v3523
    %v3604 = vunpack.c.l.b16 %v3524
    %v3605 = vunpack.c.h.b16 %v3524
    %v3606 = vunpack.c.l.b16 %v3525
    %v3607 = vunpack.c.h.b16 %v3525
    %v3608 = vunpack.c.l.b16 %v3526
    %v3609 = vunpack.c.h.b16 %v3526
    %v3610 = vunpack.c.l.b16 %v3527
    %v3611 = vunpack.c.h.b16 %v3527
    %v3612 = vunpack.c.l.b16 %v3528
    %v3613 = vunpack.c.h.b16 %v3528
    %v3614 = vunpack.c.l.b16 %v3529
    %v3615 = vunpack.c.h.b16 %v3529
    %v3616 = vunpack.c.l.b16 %v3530
    %v3617 = vunpack.c.h.b16 %v3530
    %v3618 = vunpack.c.l.b16 %v3531
    %v3619 = vunpack.c.h.b16 %v3531
    %v3620 = vunpack.c.l.b16 %v3532
    %v3621 = vunpack.c.h.b16 %v3532
    %v3622 = vunpack.c.l.b16 %v3533
    %v3623 = vunpack.c.h.b16 %v3533
    %v3624 = vunpack.c.l.b16 %v3534
    %v3625 = vunpack.c.h.b16 %v3534
    %v3626 = vunpack.c.l.b16 %v3535
    %v3627 = vunpack.c.h.b16 %v3535
    %v3628 = vunpack.c.l.b16 %v3536
    %v3629 = vunpack.c.h.b16 %v3536
    %v3630 = vunpack.c.l.b16 %v3537
    %v3631 = vunpack.c.h.b16 %v3537
    %v3632 = vunpack.c.l.b16 %v3538
    %v3633 = vunpack.c.h.b16 %v3538
    %v3634 = vunpack.c.l.b16 %v3539
    %v3635 = vunpack.c.h.b16 %v3539
    %v3636 = vunpack.c.l.b16 %v3540
    %v3637 = vunpack.c.h.b16 %v3540
    %v3638 = vunpack.c.l.b16 %v3541
    %v3639 = vunpack.c.h.b16 %v3541
    %v3640 = vunpack.c.l.b16 %v3542
    %v3641 = vunpack.c.h.b16 %v3542
    %v3642 = vunpack.c.l.b16 %v3543
    %v3643 = vunpack.c.h.b16 %v3543
    %v3644 = vunpack.c.l.b16 %v3544
    %v3645 = vunpack.c.h.b16 %v3544
    %v3646 = vunpack.c.l.b16 %v3545
    %v3647 = vunpack.c.h.b16 %v3545
    %v3648 = vunpack.c.l.b16 %v3546
    %v3649 = vunpack.c.h.b16 %v3546
    %v3650 = vunpack.c.l.b16 %v3547
    %v3651 = vunpack.c.h.b16 %v3547
    %v3652 = vpack.c.b16 %v3592, %v3588
    %v3653 = vpack.c.b16 %v3593, %v3589
    %v3654 = vpack.c.b16 %v3594, %v3590
    %v3655 = vpack.c.b16 %v3595, %v3591
    %v3656 = vpack.c.b16 %v3600, %v3596
    %v3657 = vpack.c.b16 %v3601, %v3597
    %v3658 = vpack.c.b16 %v3602, %v3598
    %v3659 = vpack.c.b16 %v3603, %v3599
    %v3660 = vpack.c.b16 %v3608, %v3604
    %v3661 = vpack.c.b16 %v3609, %v3605
    %v3662 = vpack.c.b16 %v3610, %v3606
    %v3663 = vpack.c.b16 %v3611, %v3607
    %v3664 = vpack.c.b16 %v3616, %v3612
    %v3665 = vpack.c.b16 %v3617, %v3613
    %v3666 = vpack.c.b16 %v3618, %v3614
    %v3667 = vpack.c.b16 %v3619, %v3615
    %v3668 = vpack.c.b16 %v3624, %v3620
    %v3669 = vpack.c.b16 %v3625, %v3621
    %v3670 = vpack.c.b16 %v3626, %v3622
    %v3671 = vpack.c.b16 %v3627, %v3623
    %v3672 = vpack.c.b16 %v3632, %v3628
    %v3673 = vpack.c.b16 %v3633, %v3629
    %v3674 = vpack.c.b16 %v3634, %v3630
    %v3675 = vpack.c.b16 %v3635, %v3631
    %v3676 = vpack.c.b16 %v3640, %v3636
    %v3677 = vpack.c.b16 %v3641, %v3637
    %v3678 = vpack.c.b16 %v3642, %v3638
    %v3679 = vpack.c.b16 %v3643, %v3639
    %v3680 = vpack.c.b16 %v3648, %v3644
    %v3681 = vpack.c.b16 %v3649, %v3645
    %v3682 = vpack.c.b16 %v3650, %v3646
    %v3683 = vpack.c.b16 %v3651, %v3647
    %3716 = vmatpush.bf16.msra.mxu0 %v3680
    %3717 = vmatpush.bf16.msra.mxu0 %v3676
    %3718 = vmatpush.bf16.msra.mxu0 %v3672
    %3719 = vmatpush.bf16.msra.mxu0 %v3668
    %3720 = vmatpush.bf16.msra.mxu0 %v3664
    %3721 = vmatpush.bf16.msra.mxu0 %v3660
    %3722 = vmatpush.bf16.msra.mxu0 %v3656
    %3723 = vmatpush.bf16.msra.mxu0 %v3652
    %3724 = vmatmul.bf16.gmra.mxu0 %v3554
    %v3725 = vpop.f32.mrf.mxu0
    %v3726 = vadd.f32 0.0, %v3725
    %v3727 = vpop.f32.mrf.mxu0
    %3728 = vdwg.mxu0
    %3729 = vmatpush.bf16.msra.mxu0 %v3681
    %3730 = vmatpush.bf16.msra.mxu0 %v3677
    %3731 = vmatpush.bf16.msra.mxu0 %v3673
    %3732 = vmatpush.bf16.msra.mxu0 %v3669
    %3733 = vmatpush.bf16.msra.mxu0 %v3665
    %3734 = vmatpush.bf16.msra.mxu0 %v3661
    %3735 = vmatpush.bf16.msra.mxu0 %v3657
    %3736 = vmatpush.bf16.msra.mxu0 %v3653
    %3737 = vmatmul.bf16.gmra.mxu0 %v3554
    %v3738 = vpop.f32.mrf.mxu0
    %v3739 = vadd.f32 0.0, %v3738
    %v3740 = vpop.f32.mrf.mxu0
    %3741 = vdwg.mxu0
    %3742 = vmatpush.bf16.msra.mxu0 %v3682
    %3743 = vmatpush.bf16.msra.mxu0 %v3678
    %3744 = vmatpush.bf16.msra.mxu0 %v3674
    %3745 = vmatpush.bf16.msra.mxu0 %v3670
    %3746 = vmatpush.bf16.msra.mxu0 %v3666
    %3747 = vmatpush.bf16.msra.mxu0 %v3662
    %3748 = vmatpush.bf16.msra.mxu0 %v3658
    %3749 = vmatpush.bf16.msra.mxu0 %v3654
    %3750 = vmatmul.bf16.gmra.mxu0 %v3554
    %v3751 = vpop.f32.mrf.mxu0
    %v3752 = vadd.f32 0.0, %v3751
    %v3753 = vpop.f32.mrf.mxu0
    %3754 = vdwg.mxu0
    %3755 = vmatpush.bf16.msra.mxu0 %v3683
    %3756 = vmatpush.bf16.msra.mxu0 %v3679
    %3757 = vmatpush.bf16.msra.mxu0 %v3675
    %3758 = vmatpush.bf16.msra.mxu0 %v3671
    %3759 = vmatpush.bf16.msra.mxu0 %v3667
    %3760 = vmatpush.bf16.msra.mxu0 %v3663
    %3761 = vmatpush.bf16.msra.mxu0 %v3659
    %3762 = vmatpush.bf16.msra.mxu0 %v3655
    %3763 = vmatmul.bf16.gmra.mxu0 %v3554
    %v3764 = vpop.f32.mrf.mxu0
    %v3765 = vadd.f32 0.0, %v3764
    %v3766 = vpop.f32.mrf.mxu0
    %3767 = vdwg.mxu0
    %v3770 = vunpack.c.l.b16 %v3229
    %v3771 = vunpack.c.l.b16 %v3230
    %v3772 = vsel %vm3552, %v3771, %v3770
    %v3773 = vpack.c.b16 %v3772, %v3772
    %v3807 = vunpack.c.l.b16 %v3231
    %v3808 = vunpack.c.h.b16 %v3231
    %v3809 = vunpack.c.l.b16 %v3232
    %v3810 = vunpack.c.h.b16 %v3232
    %v3811 = vunpack.c.l.b16 %v3233
    %v3812 = vunpack.c.h.b16 %v3233
    %v3813 = vunpack.c.l.b16 %v3234
    %v3814 = vunpack.c.h.b16 %v3234
    %v3815 = vunpack.c.l.b16 %v3235
    %v3816 = vunpack.c.h.b16 %v3235
    %v3817 = vunpack.c.l.b16 %v3236
    %v3818 = vunpack.c.h.b16 %v3236
    %v3819 = vunpack.c.l.b16 %v3237
    %v3820 = vunpack.c.h.b16 %v3237
    %v3821 = vunpack.c.l.b16 %v3238
    %v3822 = vunpack.c.h.b16 %v3238
    %v3823 = vunpack.c.l.b16 %v3239
    %v3824 = vunpack.c.h.b16 %v3239
    %v3825 = vunpack.c.l.b16 %v3240
    %v3826 = vunpack.c.h.b16 %v3240
    %v3827 = vunpack.c.l.b16 %v3241
    %v3828 = vunpack.c.h.b16 %v3241
    %v3829 = vunpack.c.l.b16 %v3242
    %v3830 = vunpack.c.h.b16 %v3242
    %v3831 = vunpack.c.l.b16 %v3243
    %v3832 = vunpack.c.h.b16 %v3243
    %v3833 = vunpack.c.l.b16 %v3244
    %v3834 = vunpack.c.h.b16 %v3244
    %v3835 = vunpack.c.l.b16 %v3245
    %v3836 = vunpack.c.h.b16 %v3245
    %v3837 = vunpack.c.l.b16 %v3246
    %v3838 = vunpack.c.h.b16 %v3246
    %v3839 = vunpack.c.l.b16 %v3247
    %v3840 = vunpack.c.h.b16 %v3247
    %v3841 = vunpack.c.l.b16 %v3248
    %v3842 = vunpack.c.h.b16 %v3248
    %v3843 = vunpack.c.l.b16 %v3249
    %v3844 = vunpack.c.h.b16 %v3249
    %v3845 = vunpack.c.l.b16 %v3250
    %v3846 = vunpack.c.h.b16 %v3250
    %v3847 = vunpack.c.l.b16 %v3251
    %v3848 = vunpack.c.h.b16 %v3251
    %v3849 = vunpack.c.l.b16 %v3252
    %v3850 = vunpack.c.h.b16 %v3252
    %v3851 = vunpack.c.l.b16 %v3253
    %v3852 = vunpack.c.h.b16 %v3253
    %v3853 = vunpack.c.l.b16 %v3254
    %v3854 = vunpack.c.h.b16 %v3254
    %v3855 = vunpack.c.l.b16 %v3255
    %v3856 = vunpack.c.h.b16 %v3255
    %v3857 = vunpack.c.l.b16 %v3256
    %v3858 = vunpack.c.h.b16 %v3256
    %v3859 = vunpack.c.l.b16 %v3257
    %v3860 = vunpack.c.h.b16 %v3257
    %v3861 = vunpack.c.l.b16 %v3258
    %v3862 = vunpack.c.h.b16 %v3258
    %v3863 = vunpack.c.l.b16 %v3259
    %v3864 = vunpack.c.h.b16 %v3259
    %v3865 = vunpack.c.l.b16 %v3260
    %v3866 = vunpack.c.h.b16 %v3260
    %v3867 = vunpack.c.l.b16 %v3261
    %v3868 = vunpack.c.h.b16 %v3261
    %v3869 = vunpack.c.l.b16 %v3262
    %v3870 = vunpack.c.h.b16 %v3262
    %v3871 = vpack.c.b16 %v3811, %v3807
    %v3872 = vpack.c.b16 %v3812, %v3808
    %v3873 = vpack.c.b16 %v3813, %v3809
    %v3874 = vpack.c.b16 %v3814, %v3810
    %v3875 = vpack.c.b16 %v3819, %v3815
    %v3876 = vpack.c.b16 %v3820, %v3816
    %v3877 = vpack.c.b16 %v3821, %v3817
    %v3878 = vpack.c.b16 %v3822, %v3818
    %v3879 = vpack.c.b16 %v3827, %v3823
    %v3880 = vpack.c.b16 %v3828, %v3824
    %v3881 = vpack.c.b16 %v3829, %v3825
    %v3882 = vpack.c.b16 %v3830, %v3826
    %v3883 = vpack.c.b16 %v3835, %v3831
    %v3884 = vpack.c.b16 %v3836, %v3832
    %v3885 = vpack.c.b16 %v3837, %v3833
    %v3886 = vpack.c.b16 %v3838, %v3834
    %v3887 = vpack.c.b16 %v3843, %v3839
    %v3888 = vpack.c.b16 %v3844, %v3840
    %v3889 = vpack.c.b16 %v3845, %v3841
    %v3890 = vpack.c.b16 %v3846, %v3842
    %v3891 = vpack.c.b16 %v3851, %v3847
    %v3892 = vpack.c.b16 %v3852, %v3848
    %v3893 = vpack.c.b16 %v3853, %v3849
    %v3894 = vpack.c.b16 %v3854, %v3850
    %v3895 = vpack.c.b16 %v3859, %v3855
    %v3896 = vpack.c.b16 %v3860, %v3856
    %v3897 = vpack.c.b16 %v3861, %v3857
    %v3898 = vpack.c.b16 %v3862, %v3858
    %v3899 = vpack.c.b16 %v3867, %v3863
    %v3900 = vpack.c.b16 %v3868, %v3864
    %v3901 = vpack.c.b16 %v3869, %v3865
    %v3902 = vpack.c.b16 %v3870, %v3866
    %3935 = vmatpush.bf16.msra.mxu0 %v3899
    %3936 = vmatpush.bf16.msra.mxu0 %v3895
    %3937 = vmatpush.bf16.msra.mxu0 %v3891
    %3938 = vmatpush.bf16.msra.mxu0 %v3887
    %3939 = vmatpush.bf16.msra.mxu0 %v3883
    %3940 = vmatpush.bf16.msra.mxu0 %v3879
    %3941 = vmatpush.bf16.msra.mxu0 %v3875
    %3942 = vmatpush.bf16.msra.mxu0 %v3871
    %3943 = vmatmul.bf16.gmra.mxu0 %v3773
    %v3944 = vpop.f32.mrf.mxu0
    %v3945 = vadd.f32 %v3726, %v3944
    %v3946 = vpop.f32.mrf.mxu0
    %3947 = vdwg.mxu0
    %3948 = vmatpush.bf16.msra.mxu0 %v3900
    %3949 = vmatpush.bf16.msra.mxu0 %v3896
    %3950 = vmatpush.bf16.msra.mxu0 %v3892
    %3951 = vmatpush.bf16.msra.mxu0 %v3888
    %3952 = vmatpush.bf16.msra.mxu0 %v3884
    %3953 = vmatpush.bf16.msra.mxu0 %v3880
    %3954 = vmatpush.bf16.msra.mxu0 %v3876
    %3955 = vmatpush.bf16.msra.mxu0 %v3872
    %3956 = vmatmul.bf16.gmra.mxu0 %v3773
    %v3957 = vpop.f32.mrf.mxu0
    %v3958 = vadd.f32 %v3739, %v3957
    %v3959 = vpop.f32.mrf.mxu0
    %3960 = vdwg.mxu0
    %3961 = vmatpush.bf16.msra.mxu0 %v3901
    %3962 = vmatpush.bf16.msra.mxu0 %v3897
    %3963 = vmatpush.bf16.msra.mxu0 %v3893
    %3964 = vmatpush.bf16.msra.mxu0 %v3889
    %3965 = vmatpush.bf16.msra.mxu0 %v3885
    %3966 = vmatpush.bf16.msra.mxu0 %v3881
    %3967 = vmatpush.bf16.msra.mxu0 %v3877
    %3968 = vmatpush.bf16.msra.mxu0 %v3873
    %3969 = vmatmul.bf16.gmra.mxu0 %v3773
    %v3970 = vpop.f32.mrf.mxu0
    %v3971 = vadd.f32 %v3752, %v3970
    %v3972 = vpop.f32.mrf.mxu0
    %3973 = vdwg.mxu0
    %3974 = vmatpush.bf16.msra.mxu0 %v3902
    %3975 = vmatpush.bf16.msra.mxu0 %v3898
    %3976 = vmatpush.bf16.msra.mxu0 %v3894
    %3977 = vmatpush.bf16.msra.mxu0 %v3890
    %3978 = vmatpush.bf16.msra.mxu0 %v3886
    %3979 = vmatpush.bf16.msra.mxu0 %v3882
    %3980 = vmatpush.bf16.msra.mxu0 %v3878
    %3981 = vmatpush.bf16.msra.mxu0 %v3874
    %3982 = vmatmul.bf16.gmra.mxu0 %v3773
    %v3983 = vpop.f32.mrf.mxu0
    %v3984 = vadd.f32 %v3765, %v3983
    %v3985 = vpop.f32.mrf.mxu0
    %3986 = vdwg.mxu0
    %v3987 = vmul.f32 %v2581, 0.088388346
    %v3988 = vmul.f32 %v2583, 0.088388346
    %v3989 = vpack.c.bf16 %v3987, %v3987
    %v3990 = vpack.c.bf16 %v3988, %v3988
    %v3991 = vpack.c.bf16 %v2805, %v2805
    %v3992 = vpack.c.bf16 %v2807, %v2807
    %v3993 = vpack.c.bf16 %v3029, %v3029
    %v3994 = vpack.c.bf16 %v3031, %v3031
    %3995 = vmatpush.bf16.xpose.msra.mxu0 0
    %3996 = vmatpush.bf16.xpose.msra.mxu0 0
    %3997 = vmatpush.bf16.xpose.msra.mxu0 0
    %3998 = vmatpush.bf16.xpose.msra.mxu0 0
    %3999 = vmatpush.bf16.xpose.msra.mxu0 0
    %4000 = vmatpush.bf16.xpose.msra.mxu0 0
    %4001 = vmatpush.bf16.xpose.msra.mxu0 0
    %4002 = vmatpush.bf16.xpose.msra.mxu0 %v3991
    %4003 = vmatmul.bf16.gmra.mxu0 %v3989
    %v4004 = vpop.f32.mrf.mxu0
    %v4005 = vadd.f32 %v3097, %v4004
    %v4006 = vpop.f32.mrf.mxu0
    %4007 = vdwg.mxu0
    %4008 = vmatpush.bf16.xpose.msra.mxu0 0
    %4009 = vmatpush.bf16.xpose.msra.mxu0 0
    %4010 = vmatpush.bf16.xpose.msra.mxu0 0
    %4011 = vmatpush.bf16.xpose.msra.mxu0 0
    %4012 = vmatpush.bf16.xpose.msra.mxu0 0
    %4013 = vmatpush.bf16.xpose.msra.mxu0 0
    %4014 = vmatpush.bf16.xpose.msra.mxu0 0
    %4015 = vmatpush.bf16.xpose.msra.mxu0 %v3992
    %4016 = vmatmul.bf16.gmra.mxu0 %v3990
    %v4017 = vpop.f32.mrf.mxu0
    %v4018 = vadd.f32 %v3098, %v4017
    %v4019 = vpop.f32.mrf.mxu0
    %4020 = vdwg.mxu0
    %v4021 = vsel %vm3127, %v4005, -inf
    %4022 = vmax.xlane.f32.xlu0 %v4021
    %v4023 = vpop.xlane.xlu0 %4022
    %v4024 = vsel %vm3127, %v4018, -inf
    %4025 = vmax.xlane.f32.xlu0 %v4024
    %v4026 = vpop.xlane.xlu0 %4025
    %v4027 = vsub.f32 %v4005, %v4023
    %v4028 = vsub.f32 %v4018, %v4026
    %v4029 = vmul.f32 %v4027, 1.442695
    %v4030 = vpow.pop %v4029
    %v4031 = vmul.f32 %v4028, 1.442695
    %v4032 = vpow.pop %v4031
    %v4033 = vsel %vm3127, %v4030, 0.0
    %4034 = vadd.xlane.f32.xlu0 %v4033
    %v4035 = vpop.xlane.xlu0 %4034
    %v4036 = vsel %vm3127, %v4032, 0.0
    %4037 = vadd.xlane.f32.xlu0 %v4036
    %v4038 = vpop.xlane.xlu0 %4037
    %v4039 = vrcp.pop %v4035
    %v4040 = vrcp.pop %v4038
    %v4041 = vmul.f32 %v4030, %v4039
    %v4042 = vmul.f32 %v4032, %v4040
    %v4043 = vpack.c.bf16 %v4041, %v4041
    %v4044 = vpack.c.bf16 %v4042, %v4042
    %v4046 = vsel %vm3127, %v4043, 0
    %v4049 = vsel %vm3155, %v3993, 0
    %4051 = vmatpush.bf16.msra.mxu0 0
    %4052 = vmatpush.bf16.msra.mxu0 0
    %4053 = vmatpush.bf16.msra.mxu0 0
    %4054 = vmatpush.bf16.msra.mxu0 0
    %4055 = vmatpush.bf16.msra.mxu0 0
    %4056 = vmatpush.bf16.msra.mxu0 0
    %4057 = vmatpush.bf16.msra.mxu0 0
    %4058 = vmatpush.bf16.msra.mxu0 %v4049
    %4059 = vmatmul.bf16.gmra.mxu0 %v4046
    %v4060 = vpop.f32.mrf.mxu0
    %v4061 = vadd.f32 0.0, %v4060
    %v4062 = vpop.f32.mrf.mxu0
    %4063 = vdwg.mxu0
    %v4065 = vsel %vm3127, %v4044, 0
    %v4068 = vsel %vm3155, %v3994, 0
    %4070 = vmatpush.bf16.msra.mxu0 0
    %4071 = vmatpush.bf16.msra.mxu0 0
    %4072 = vmatpush.bf16.msra.mxu0 0
    %4073 = vmatpush.bf16.msra.mxu0 0
    %4074 = vmatpush.bf16.msra.mxu0 0
    %4075 = vmatpush.bf16.msra.mxu0 0
    %4076 = vmatpush.bf16.msra.mxu0 0
    %4077 = vmatpush.bf16.msra.mxu0 %v4068
    %4078 = vmatmul.bf16.gmra.mxu0 %v4065
    %v4079 = vpop.f32.mrf.mxu0
    %v4080 = vadd.f32 0.0, %v4079
    %v4081 = vpop.f32.mrf.mxu0
    %4082 = vdwg.mxu0
    %v4083 = vpack.c.bf16 %v4080, %v4061
    %v4084 = vld [vmem:[%s6 + $0x80] sm:$0xf]
    %v4085 = vld [vmem:[%s6 + $0x84] sm:$0xf]
    %v4086 = vld [vmem:[%s6 + $0x88] sm:$0xf]
    %v4087 = vld [vmem:[%s6 + $0x8c] sm:$0xf]
    %v4088 = vld [vmem:[%s6 + $0x90] sm:$0xf]
    %v4089 = vld [vmem:[%s6 + $0x94] sm:$0xf]
    %v4090 = vld [vmem:[%s6 + $0x98] sm:$0xf]
    %v4091 = vld [vmem:[%s6 + $0x9c] sm:$0xf]
    %v4092 = vld [vmem:[%s6 + $0xa0] sm:$0xf]
    %v4093 = vld [vmem:[%s6 + $0xa4] sm:$0xf]
    %v4094 = vld [vmem:[%s6 + $0xa8] sm:$0xf]
    %v4095 = vld [vmem:[%s6 + $0xac] sm:$0xf]
    %v4096 = vld [vmem:[%s6 + $0xb0] sm:$0xf]
    %v4097 = vld [vmem:[%s6 + $0xb4] sm:$0xf]
    %v4098 = vld [vmem:[%s6 + $0xb8] sm:$0xf]
    %v4099 = vld [vmem:[%s6 + $0xbc] sm:$0xf]
    %v4116 = vunpack.c.l.b16 %v4084
    %v4117 = vunpack.c.l.b16 %v4085
    %v4118 = vunpack.c.l.b16 %v4086
    %v4119 = vunpack.c.l.b16 %v4087
    %v4120 = vunpack.c.l.b16 %v4088
    %v4121 = vunpack.c.l.b16 %v4089
    %v4122 = vunpack.c.l.b16 %v4090
    %v4123 = vunpack.c.l.b16 %v4091
    %v4124 = vunpack.c.l.b16 %v4092
    %v4125 = vunpack.c.l.b16 %v4093
    %v4126 = vunpack.c.l.b16 %v4094
    %v4127 = vunpack.c.l.b16 %v4095
    %v4128 = vunpack.c.l.b16 %v4096
    %v4129 = vunpack.c.l.b16 %v4097
    %v4130 = vunpack.c.l.b16 %v4098
    %v4131 = vunpack.c.l.b16 %v4099
    %v4132 = vpack.c.b16 %v4117, %v4116
    %v4133 = vpack.c.b16 %v4119, %v4118
    %v4134 = vpack.c.b16 %v4121, %v4120
    %v4135 = vpack.c.b16 %v4123, %v4122
    %v4136 = vpack.c.b16 %v4125, %v4124
    %v4137 = vpack.c.b16 %v4127, %v4126
    %v4138 = vpack.c.b16 %v4129, %v4128
    %v4139 = vpack.c.b16 %v4131, %v4130
    %4148 = vmatpush.bf16.msra.mxu0 %v4139
    %4149 = vmatpush.bf16.msra.mxu0 %v4138
    %4150 = vmatpush.bf16.msra.mxu0 %v4137
    %4151 = vmatpush.bf16.msra.mxu0 %v4136
    %4152 = vmatpush.bf16.msra.mxu0 %v4135
    %4153 = vmatpush.bf16.msra.mxu0 %v4134
    %4154 = vmatpush.bf16.msra.mxu0 %v4133
    %4155 = vmatpush.bf16.msra.mxu0 %v4132
    %4156 = vmatmul.bf16.gmra.mxu0 %v4083
    %v4157 = vpop.f32.mrf.mxu0
    %v4158 = vadd.f32 0.0, %v4157
    %v4159 = vpop.f32.mrf.mxu0
    %v4160 = vadd.f32 0.0, %v4159
    %4161 = vdwg.mxu0
    %v4162 = vadd.f32 %v3496, %v4158
    %v4163 = vadd.f32 %v3498, %v4160
    %v4164 = vrot.slane %v4061, 4
    %v4165 = vadd.f32 %v4061, %v4164
    %v4166 = vrot.slane %v4165, 2
    %v4167 = vadd.f32 %v4165, %v4166
    %v4168 = vrot.slane %v4167, 1
    %v4169 = vadd.f32 %v4167, %v4168
    %v4170 = vrot.slane %v4080, 4
    %v4171 = vadd.f32 %v4080, %v4170
    %v4172 = vrot.slane %v4171, 2
    %v4173 = vadd.f32 %v4171, %v4172
    %v4174 = vrot.slane %v4173, 1
    %v4175 = vadd.f32 %v4173, %v4174
    %v4176 = vmul.f32 %v4169, %v3226
    %v4177 = vmul.f32 %v4175, %v3226
    %v4178 = vpack.c.bf16 %v4176, %v4176
    %v4179 = vpack.c.bf16 %v4177, %v4177
    %v4180 = vld [vmem:[%s4 + $0x200] sm:$0xff]
    %v4181 = vld [vmem:[%s4 + $0x208] sm:$0xff]
    %v4182 = vld [vmem:[%s4 + $0x210] sm:$0xff]
    %v4183 = vld [vmem:[%s4 + $0x218] sm:$0xff]
    %v4184 = vld [vmem:[%s4 + $0x220] sm:$0xff]
    %v4185 = vld [vmem:[%s4 + $0x228] sm:$0xff]
    %v4186 = vld [vmem:[%s4 + $0x230] sm:$0xff]
    %v4187 = vld [vmem:[%s4 + $0x238] sm:$0xff]
    %v4188 = vld [vmem:[%s4 + $0x240] sm:$0xff]
    %v4189 = vld [vmem:[%s4 + $0x248] sm:$0xff]
    %v4190 = vld [vmem:[%s4 + $0x250] sm:$0xff]
    %v4191 = vld [vmem:[%s4 + $0x258] sm:$0xff]
    %v4192 = vld [vmem:[%s4 + $0x260] sm:$0xff]
    %v4193 = vld [vmem:[%s4 + $0x268] sm:$0xff]
    %v4194 = vld [vmem:[%s4 + $0x270] sm:$0xff]
    %v4195 = vld [vmem:[%s4 + $0x278] sm:$0xff]
    %v4196 = vld [vmem:[%s4 + $0x280] sm:$0xff]
    %v4197 = vld [vmem:[%s4 + $0x288] sm:$0xff]
    %v4198 = vld [vmem:[%s4 + $0x290] sm:$0xff]
    %v4199 = vld [vmem:[%s4 + $0x298] sm:$0xff]
    %v4200 = vld [vmem:[%s4 + $0x2a0] sm:$0xff]
    %v4201 = vld [vmem:[%s4 + $0x2a8] sm:$0xff]
    %v4202 = vld [vmem:[%s4 + $0x2b0] sm:$0xff]
    %v4203 = vld [vmem:[%s4 + $0x2b8] sm:$0xff]
    %v4204 = vld [vmem:[%s4 + $0x2c0] sm:$0xff]
    %v4205 = vld [vmem:[%s4 + $0x2c8] sm:$0xff]
    %v4206 = vld [vmem:[%s4 + $0x2d0] sm:$0xff]
    %v4207 = vld [vmem:[%s4 + $0x2d8] sm:$0xff]
    %v4208 = vld [vmem:[%s4 + $0x2e0] sm:$0xff]
    %v4209 = vld [vmem:[%s4 + $0x2e8] sm:$0xff]
    %v4210 = vld [vmem:[%s4 + $0x2f0] sm:$0xff]
    %v4211 = vld [vmem:[%s4 + $0x2f8] sm:$0xff]
    %v4214 = vunpack.c.l.b16 %v4178
    %v4215 = vunpack.c.l.b16 %v4179
    %v4216 = vsel %vm3552, %v4215, %v4214
    %v4217 = vpack.c.b16 %v4216, %v4216
    %v4251 = vunpack.c.l.b16 %v4180
    %v4252 = vunpack.c.h.b16 %v4180
    %v4253 = vunpack.c.l.b16 %v4181
    %v4254 = vunpack.c.h.b16 %v4181
    %v4255 = vunpack.c.l.b16 %v4182
    %v4256 = vunpack.c.h.b16 %v4182
    %v4257 = vunpack.c.l.b16 %v4183
    %v4258 = vunpack.c.h.b16 %v4183
    %v4259 = vunpack.c.l.b16 %v4184
    %v4260 = vunpack.c.h.b16 %v4184
    %v4261 = vunpack.c.l.b16 %v4185
    %v4262 = vunpack.c.h.b16 %v4185
    %v4263 = vunpack.c.l.b16 %v4186
    %v4264 = vunpack.c.h.b16 %v4186
    %v4265 = vunpack.c.l.b16 %v4187
    %v4266 = vunpack.c.h.b16 %v4187
    %v4267 = vunpack.c.l.b16 %v4188
    %v4268 = vunpack.c.h.b16 %v4188
    %v4269 = vunpack.c.l.b16 %v4189
    %v4270 = vunpack.c.h.b16 %v4189
    %v4271 = vunpack.c.l.b16 %v4190
    %v4272 = vunpack.c.h.b16 %v4190
    %v4273 = vunpack.c.l.b16 %v4191
    %v4274 = vunpack.c.h.b16 %v4191
    %v4275 = vunpack.c.l.b16 %v4192
    %v4276 = vunpack.c.h.b16 %v4192
    %v4277 = vunpack.c.l.b16 %v4193
    %v4278 = vunpack.c.h.b16 %v4193
    %v4279 = vunpack.c.l.b16 %v4194
    %v4280 = vunpack.c.h.b16 %v4194
    %v4281 = vunpack.c.l.b16 %v4195
    %v4282 = vunpack.c.h.b16 %v4195
    %v4283 = vunpack.c.l.b16 %v4196
    %v4284 = vunpack.c.h.b16 %v4196
    %v4285 = vunpack.c.l.b16 %v4197
    %v4286 = vunpack.c.h.b16 %v4197
    %v4287 = vunpack.c.l.b16 %v4198
    %v4288 = vunpack.c.h.b16 %v4198
    %v4289 = vunpack.c.l.b16 %v4199
    %v4290 = vunpack.c.h.b16 %v4199
    %v4291 = vunpack.c.l.b16 %v4200
    %v4292 = vunpack.c.h.b16 %v4200
    %v4293 = vunpack.c.l.b16 %v4201
    %v4294 = vunpack.c.h.b16 %v4201
    %v4295 = vunpack.c.l.b16 %v4202
    %v4296 = vunpack.c.h.b16 %v4202
    %v4297 = vunpack.c.l.b16 %v4203
    %v4298 = vunpack.c.h.b16 %v4203
    %v4299 = vunpack.c.l.b16 %v4204
    %v4300 = vunpack.c.h.b16 %v4204
    %v4301 = vunpack.c.l.b16 %v4205
    %v4302 = vunpack.c.h.b16 %v4205
    %v4303 = vunpack.c.l.b16 %v4206
    %v4304 = vunpack.c.h.b16 %v4206
    %v4305 = vunpack.c.l.b16 %v4207
    %v4306 = vunpack.c.h.b16 %v4207
    %v4307 = vunpack.c.l.b16 %v4208
    %v4308 = vunpack.c.h.b16 %v4208
    %v4309 = vunpack.c.l.b16 %v4209
    %v4310 = vunpack.c.h.b16 %v4209
    %v4311 = vunpack.c.l.b16 %v4210
    %v4312 = vunpack.c.h.b16 %v4210
    %v4313 = vunpack.c.l.b16 %v4211
    %v4314 = vunpack.c.h.b16 %v4211
    %v4315 = vpack.c.b16 %v4255, %v4251
    %v4316 = vpack.c.b16 %v4256, %v4252
    %v4317 = vpack.c.b16 %v4257, %v4253
    %v4318 = vpack.c.b16 %v4258, %v4254
    %v4319 = vpack.c.b16 %v4263, %v4259
    %v4320 = vpack.c.b16 %v4264, %v4260
    %v4321 = vpack.c.b16 %v4265, %v4261
    %v4322 = vpack.c.b16 %v4266, %v4262
    %v4323 = vpack.c.b16 %v4271, %v4267
    %v4324 = vpack.c.b16 %v4272, %v4268
    %v4325 = vpack.c.b16 %v4273, %v4269
    %v4326 = vpack.c.b16 %v4274, %v4270
    %v4327 = vpack.c.b16 %v4279, %v4275
    %v4328 = vpack.c.b16 %v4280, %v4276
    %v4329 = vpack.c.b16 %v4281, %v4277
    %v4330 = vpack.c.b16 %v4282, %v4278
    %v4331 = vpack.c.b16 %v4287, %v4283
    %v4332 = vpack.c.b16 %v4288, %v4284
    %v4333 = vpack.c.b16 %v4289, %v4285
    %v4334 = vpack.c.b16 %v4290, %v4286
    %v4335 = vpack.c.b16 %v4295, %v4291
    %v4336 = vpack.c.b16 %v4296, %v4292
    %v4337 = vpack.c.b16 %v4297, %v4293
    %v4338 = vpack.c.b16 %v4298, %v4294
    %v4339 = vpack.c.b16 %v4303, %v4299
    %v4340 = vpack.c.b16 %v4304, %v4300
    %v4341 = vpack.c.b16 %v4305, %v4301
    %v4342 = vpack.c.b16 %v4306, %v4302
    %v4343 = vpack.c.b16 %v4311, %v4307
    %v4344 = vpack.c.b16 %v4312, %v4308
    %v4345 = vpack.c.b16 %v4313, %v4309
    %v4346 = vpack.c.b16 %v4314, %v4310
    %4379 = vmatpush.bf16.msra.mxu0 %v4343
    %4380 = vmatpush.bf16.msra.mxu0 %v4339
    %4381 = vmatpush.bf16.msra.mxu0 %v4335
    %4382 = vmatpush.bf16.msra.mxu0 %v4331
    %4383 = vmatpush.bf16.msra.mxu0 %v4327
    %4384 = vmatpush.bf16.msra.mxu0 %v4323
    %4385 = vmatpush.bf16.msra.mxu0 %v4319
    %4386 = vmatpush.bf16.msra.mxu0 %v4315
    %4387 = vmatmul.bf16.gmra.mxu0 %v4217
    %v4388 = vpop.f32.mrf.mxu0
    %v4389 = vadd.f32 0.0, %v4388
    %v4390 = vpop.f32.mrf.mxu0
    %4391 = vdwg.mxu0
    %4392 = vmatpush.bf16.msra.mxu0 %v4344
    %4393 = vmatpush.bf16.msra.mxu0 %v4340
    %4394 = vmatpush.bf16.msra.mxu0 %v4336
    %4395 = vmatpush.bf16.msra.mxu0 %v4332
    %4396 = vmatpush.bf16.msra.mxu0 %v4328
    %4397 = vmatpush.bf16.msra.mxu0 %v4324
    %4398 = vmatpush.bf16.msra.mxu0 %v4320
    %4399 = vmatpush.bf16.msra.mxu0 %v4316
    %4400 = vmatmul.bf16.gmra.mxu0 %v4217
    %v4401 = vpop.f32.mrf.mxu0
    %v4402 = vadd.f32 0.0, %v4401
    %v4403 = vpop.f32.mrf.mxu0
    %4404 = vdwg.mxu0
    %4405 = vmatpush.bf16.msra.mxu0 %v4345
    %4406 = vmatpush.bf16.msra.mxu0 %v4341
    %4407 = vmatpush.bf16.msra.mxu0 %v4337
    %4408 = vmatpush.bf16.msra.mxu0 %v4333
    %4409 = vmatpush.bf16.msra.mxu0 %v4329
    %4410 = vmatpush.bf16.msra.mxu0 %v4325
    %4411 = vmatpush.bf16.msra.mxu0 %v4321
    %4412 = vmatpush.bf16.msra.mxu0 %v4317
    %4413 = vmatmul.bf16.gmra.mxu0 %v4217
    %v4414 = vpop.f32.mrf.mxu0
    %v4415 = vadd.f32 0.0, %v4414
    %v4416 = vpop.f32.mrf.mxu0
    %4417 = vdwg.mxu0
    %4418 = vmatpush.bf16.msra.mxu0 %v4346
    %4419 = vmatpush.bf16.msra.mxu0 %v4342
    %4420 = vmatpush.bf16.msra.mxu0 %v4338
    %4421 = vmatpush.bf16.msra.mxu0 %v4334
    %4422 = vmatpush.bf16.msra.mxu0 %v4330
    %4423 = vmatpush.bf16.msra.mxu0 %v4326
    %4424 = vmatpush.bf16.msra.mxu0 %v4322
    %4425 = vmatpush.bf16.msra.mxu0 %v4318
    %4426 = vmatmul.bf16.gmra.mxu0 %v4217
    %v4427 = vpop.f32.mrf.mxu0
    %v4428 = vadd.f32 0.0, %v4427
    %v4429 = vpop.f32.mrf.mxu0
    %4430 = vdwg.mxu0
    %v4431 = vadd.f32 %v3945, %v4389
    %v4432 = vadd.f32 %v3958, %v4402
    %v4433 = vadd.f32 %v3971, %v4415
    %v4434 = vadd.f32 %v3984, %v4428
    %v4435 = vmul.f32 %v2637, 0.088388346
    %v4436 = vmul.f32 %v2639, 0.088388346
    %v4437 = vpack.c.bf16 %v4435, %v4435
    %v4438 = vpack.c.bf16 %v4436, %v4436
    %v4439 = vpack.c.bf16 %v2861, %v2861
    %v4440 = vpack.c.bf16 %v2863, %v2863
    %v4441 = vpack.c.bf16 %v3085, %v3085
    %v4442 = vpack.c.bf16 %v3087, %v3087
    %4443 = vmatpush.bf16.xpose.msra.mxu0 0
    %4444 = vmatpush.bf16.xpose.msra.mxu0 0
    %4445 = vmatpush.bf16.xpose.msra.mxu0 0
    %4446 = vmatpush.bf16.xpose.msra.mxu0 0
    %4447 = vmatpush.bf16.xpose.msra.mxu0 0
    %4448 = vmatpush.bf16.xpose.msra.mxu0 0
    %4449 = vmatpush.bf16.xpose.msra.mxu0 0
    %4450 = vmatpush.bf16.xpose.msra.mxu0 %v4439
    %4451 = vmatmul.bf16.gmra.mxu0 %v4437
    %v4452 = vpop.f32.mrf.mxu0
    %v4453 = vadd.f32 %v3097, %v4452
    %v4454 = vpop.f32.mrf.mxu0
    %4455 = vdwg.mxu0
    %4456 = vmatpush.bf16.xpose.msra.mxu0 0
    %4457 = vmatpush.bf16.xpose.msra.mxu0 0
    %4458 = vmatpush.bf16.xpose.msra.mxu0 0
    %4459 = vmatpush.bf16.xpose.msra.mxu0 0
    %4460 = vmatpush.bf16.xpose.msra.mxu0 0
    %4461 = vmatpush.bf16.xpose.msra.mxu0 0
    %4462 = vmatpush.bf16.xpose.msra.mxu0 0
    %4463 = vmatpush.bf16.xpose.msra.mxu0 %v4440
    %4464 = vmatmul.bf16.gmra.mxu0 %v4438
    %v4465 = vpop.f32.mrf.mxu0
    %v4466 = vadd.f32 %v3098, %v4465
    %v4467 = vpop.f32.mrf.mxu0
    %4468 = vdwg.mxu0
    %v4469 = vsel %vm3127, %v4453, -inf
    %4470 = vmax.xlane.f32.xlu0 %v4469
    %v4471 = vpop.xlane.xlu0 %4470
    %v4472 = vsel %vm3127, %v4466, -inf
    %4473 = vmax.xlane.f32.xlu0 %v4472
    %v4474 = vpop.xlane.xlu0 %4473
    %v4475 = vsub.f32 %v4453, %v4471
    %v4476 = vsub.f32 %v4466, %v4474
    %v4477 = vmul.f32 %v4475, 1.442695
    %v4478 = vpow.pop %v4477
    %v4479 = vmul.f32 %v4476, 1.442695
    %v4480 = vpow.pop %v4479
    %v4481 = vsel %vm3127, %v4478, 0.0
    %4482 = vadd.xlane.f32.xlu0 %v4481
    %v4483 = vpop.xlane.xlu0 %4482
    %v4484 = vsel %vm3127, %v4480, 0.0
    %4485 = vadd.xlane.f32.xlu0 %v4484
    %v4486 = vpop.xlane.xlu0 %4485
    %v4487 = vrcp.pop %v4483
    %v4488 = vrcp.pop %v4486
    %v4489 = vmul.f32 %v4478, %v4487
    %v4490 = vmul.f32 %v4480, %v4488
    %v4491 = vpack.c.bf16 %v4489, %v4489
    %v4492 = vpack.c.bf16 %v4490, %v4490
    %v4494 = vsel %vm3127, %v4491, 0
    %v4497 = vsel %vm3155, %v4441, 0
    %4499 = vmatpush.bf16.msra.mxu0 0
    %4500 = vmatpush.bf16.msra.mxu0 0
    %4501 = vmatpush.bf16.msra.mxu0 0
    %4502 = vmatpush.bf16.msra.mxu0 0
    %4503 = vmatpush.bf16.msra.mxu0 0
    %4504 = vmatpush.bf16.msra.mxu0 0
    %4505 = vmatpush.bf16.msra.mxu0 0
    %4506 = vmatpush.bf16.msra.mxu0 %v4497
    %4507 = vmatmul.bf16.gmra.mxu0 %v4494
    %v4508 = vpop.f32.mrf.mxu0
    %v4509 = vadd.f32 0.0, %v4508
    %v4510 = vpop.f32.mrf.mxu0
    %4511 = vdwg.mxu0
    %v4513 = vsel %vm3127, %v4492, 0
    %v4516 = vsel %vm3155, %v4442, 0
    %4518 = vmatpush.bf16.msra.mxu0 0
    %4519 = vmatpush.bf16.msra.mxu0 0
    %4520 = vmatpush.bf16.msra.mxu0 0
    %4521 = vmatpush.bf16.msra.mxu0 0
    %4522 = vmatpush.bf16.msra.mxu0 0
    %4523 = vmatpush.bf16.msra.mxu0 0
    %4524 = vmatpush.bf16.msra.mxu0 0
    %4525 = vmatpush.bf16.msra.mxu0 %v4516
    %4526 = vmatmul.bf16.gmra.mxu0 %v4513
    %v4527 = vpop.f32.mrf.mxu0
    %v4528 = vadd.f32 0.0, %v4527
    %v4529 = vpop.f32.mrf.mxu0
    %4530 = vdwg.mxu0
    %v4531 = vpack.c.bf16 %v4528, %v4509
    %v4532 = vld [vmem:[%s6 + $0xc0] sm:$0xf]
    %v4533 = vld [vmem:[%s6 + $0xc4] sm:$0xf]
    %v4534 = vld [vmem:[%s6 + $0xc8] sm:$0xf]
    %v4535 = vld [vmem:[%s6 + $0xcc] sm:$0xf]
    %v4536 = vld [vmem:[%s6 + $0xd0] sm:$0xf]
    %v4537 = vld [vmem:[%s6 + $0xd4] sm:$0xf]
    %v4538 = vld [vmem:[%s6 + $0xd8] sm:$0xf]
    %v4539 = vld [vmem:[%s6 + $0xdc] sm:$0xf]
    %v4540 = vld [vmem:[%s6 + $0xe0] sm:$0xf]
    %v4541 = vld [vmem:[%s6 + $0xe4] sm:$0xf]
    %v4542 = vld [vmem:[%s6 + $0xe8] sm:$0xf]
    %v4543 = vld [vmem:[%s6 + $0xec] sm:$0xf]
    %v4544 = vld [vmem:[%s6 + $0xf0] sm:$0xf]
    %v4545 = vld [vmem:[%s6 + $0xf4] sm:$0xf]
    %v4546 = vld [vmem:[%s6 + $0xf8] sm:$0xf]
    %v4547 = vld [vmem:[%s6 + $0xfc] sm:$0xf]
    %v4564 = vunpack.c.l.b16 %v4532
    %v4565 = vunpack.c.l.b16 %v4533
    %v4566 = vunpack.c.l.b16 %v4534
    %v4567 = vunpack.c.l.b16 %v4535
    %v4568 = vunpack.c.l.b16 %v4536
    %v4569 = vunpack.c.l.b16 %v4537
    %v4570 = vunpack.c.l.b16 %v4538
    %v4571 = vunpack.c.l.b16 %v4539
    %v4572 = vunpack.c.l.b16 %v4540
    %v4573 = vunpack.c.l.b16 %v4541
    %v4574 = vunpack.c.l.b16 %v4542
    %v4575 = vunpack.c.l.b16 %v4543
    %v4576 = vunpack.c.l.b16 %v4544
    %v4577 = vunpack.c.l.b16 %v4545
    %v4578 = vunpack.c.l.b16 %v4546
    %v4579 = vunpack.c.l.b16 %v4547
    %v4580 = vpack.c.b16 %v4565, %v4564
    %v4581 = vpack.c.b16 %v4567, %v4566
    %v4582 = vpack.c.b16 %v4569, %v4568
    %v4583 = vpack.c.b16 %v4571, %v4570
    %v4584 = vpack.c.b16 %v4573, %v4572
    %v4585 = vpack.c.b16 %v4575, %v4574
    %v4586 = vpack.c.b16 %v4577, %v4576
    %v4587 = vpack.c.b16 %v4579, %v4578
    %4596 = vmatpush.bf16.msra.mxu0 %v4587
    %4597 = vmatpush.bf16.msra.mxu0 %v4586
    %4598 = vmatpush.bf16.msra.mxu0 %v4585
    %4599 = vmatpush.bf16.msra.mxu0 %v4584
    %4600 = vmatpush.bf16.msra.mxu0 %v4583
    %4601 = vmatpush.bf16.msra.mxu0 %v4582
    %4602 = vmatpush.bf16.msra.mxu0 %v4581
    %4603 = vmatpush.bf16.msra.mxu0 %v4580
    %4604 = vmatmul.bf16.gmra.mxu0 %v4531
    %v4605 = vpop.f32.mrf.mxu0
    %v4606 = vadd.f32 0.0, %v4605
    %v4607 = vpop.f32.mrf.mxu0
    %v4608 = vadd.f32 0.0, %v4607
    %4609 = vdwg.mxu0
    %v4610 = vadd.f32 %v4162, %v4606
    %v4611 = vadd.f32 %v4163, %v4608
    %v4612 = vrot.slane %v4509, 4
    %v4613 = vadd.f32 %v4509, %v4612
    %v4614 = vrot.slane %v4613, 2
    %v4615 = vadd.f32 %v4613, %v4614
    %v4616 = vrot.slane %v4615, 1
    %v4617 = vadd.f32 %v4615, %v4616
    %v4618 = vrot.slane %v4528, 4
    %v4619 = vadd.f32 %v4528, %v4618
    %v4620 = vrot.slane %v4619, 2
    %v4621 = vadd.f32 %v4619, %v4620
    %v4622 = vrot.slane %v4621, 1
    %v4623 = vadd.f32 %v4621, %v4622
    %v4624 = vmul.f32 %v4617, %v3226
    %v4625 = vmul.f32 %v4623, %v3226
    %v4626 = vpack.c.bf16 %v4624, %v4624
    %v4627 = vpack.c.bf16 %v4625, %v4625
    %v4628 = vld [vmem:[%s4 + $0x300] sm:$0xff]
    %v4629 = vld [vmem:[%s4 + $0x308] sm:$0xff]
    %v4630 = vld [vmem:[%s4 + $0x310] sm:$0xff]
    %v4631 = vld [vmem:[%s4 + $0x318] sm:$0xff]
    %v4632 = vld [vmem:[%s4 + $0x320] sm:$0xff]
    %v4633 = vld [vmem:[%s4 + $0x328] sm:$0xff]
    %v4634 = vld [vmem:[%s4 + $0x330] sm:$0xff]
    %v4635 = vld [vmem:[%s4 + $0x338] sm:$0xff]
    %v4636 = vld [vmem:[%s4 + $0x340] sm:$0xff]
    %v4637 = vld [vmem:[%s4 + $0x348] sm:$0xff]
    %v4638 = vld [vmem:[%s4 + $0x350] sm:$0xff]
    %v4639 = vld [vmem:[%s4 + $0x358] sm:$0xff]
    %v4640 = vld [vmem:[%s4 + $0x360] sm:$0xff]
    %v4641 = vld [vmem:[%s4 + $0x368] sm:$0xff]
    %v4642 = vld [vmem:[%s4 + $0x370] sm:$0xff]
    %v4643 = vld [vmem:[%s4 + $0x378] sm:$0xff]
    %v4644 = vld [vmem:[%s4 + $0x380] sm:$0xff]
    %v4645 = vld [vmem:[%s4 + $0x388] sm:$0xff]
    %v4646 = vld [vmem:[%s4 + $0x390] sm:$0xff]
    %v4647 = vld [vmem:[%s4 + $0x398] sm:$0xff]
    %v4648 = vld [vmem:[%s4 + $0x3a0] sm:$0xff]
    %v4649 = vld [vmem:[%s4 + $0x3a8] sm:$0xff]
    %v4650 = vld [vmem:[%s4 + $0x3b0] sm:$0xff]
    %v4651 = vld [vmem:[%s4 + $0x3b8] sm:$0xff]
    %v4652 = vld [vmem:[%s4 + $0x3c0] sm:$0xff]
    %v4653 = vld [vmem:[%s4 + $0x3c8] sm:$0xff]
    %v4654 = vld [vmem:[%s4 + $0x3d0] sm:$0xff]
    %v4655 = vld [vmem:[%s4 + $0x3d8] sm:$0xff]
    %v4656 = vld [vmem:[%s4 + $0x3e0] sm:$0xff]
    %v4657 = vld [vmem:[%s4 + $0x3e8] sm:$0xff]
    %v4658 = vld [vmem:[%s4 + $0x3f0] sm:$0xff]
    %v4659 = vld [vmem:[%s4 + $0x3f8] sm:$0xff]
    %v4662 = vunpack.c.l.b16 %v4626
    %v4663 = vunpack.c.l.b16 %v4627
    %v4664 = vsel %vm3552, %v4663, %v4662
    %v4665 = vpack.c.b16 %v4664, %v4664
    %v4699 = vunpack.c.l.b16 %v4628
    %v4700 = vunpack.c.h.b16 %v4628
    %v4701 = vunpack.c.l.b16 %v4629
    %v4702 = vunpack.c.h.b16 %v4629
    %v4703 = vunpack.c.l.b16 %v4630
    %v4704 = vunpack.c.h.b16 %v4630
    %v4705 = vunpack.c.l.b16 %v4631
    %v4706 = vunpack.c.h.b16 %v4631
    %v4707 = vunpack.c.l.b16 %v4632
    %v4708 = vunpack.c.h.b16 %v4632
    %v4709 = vunpack.c.l.b16 %v4633
    %v4710 = vunpack.c.h.b16 %v4633
    %v4711 = vunpack.c.l.b16 %v4634
    %v4712 = vunpack.c.h.b16 %v4634
    %v4713 = vunpack.c.l.b16 %v4635
    %v4714 = vunpack.c.h.b16 %v4635
    %v4715 = vunpack.c.l.b16 %v4636
    %v4716 = vunpack.c.h.b16 %v4636
    %v4717 = vunpack.c.l.b16 %v4637
    %v4718 = vunpack.c.h.b16 %v4637
    %v4719 = vunpack.c.l.b16 %v4638
    %v4720 = vunpack.c.h.b16 %v4638
    %v4721 = vunpack.c.l.b16 %v4639
    %v4722 = vunpack.c.h.b16 %v4639
    %v4723 = vunpack.c.l.b16 %v4640
    %v4724 = vunpack.c.h.b16 %v4640
    %v4725 = vunpack.c.l.b16 %v4641
    %v4726 = vunpack.c.h.b16 %v4641
    %v4727 = vunpack.c.l.b16 %v4642
    %v4728 = vunpack.c.h.b16 %v4642
    %v4729 = vunpack.c.l.b16 %v4643
    %v4730 = vunpack.c.h.b16 %v4643
    %v4731 = vunpack.c.l.b16 %v4644
    %v4732 = vunpack.c.h.b16 %v4644
    %v4733 = vunpack.c.l.b16 %v4645
    %v4734 = vunpack.c.h.b16 %v4645
    %v4735 = vunpack.c.l.b16 %v4646
    %v4736 = vunpack.c.h.b16 %v4646
    %v4737 = vunpack.c.l.b16 %v4647
    %v4738 = vunpack.c.h.b16 %v4647
    %v4739 = vunpack.c.l.b16 %v4648
    %v4740 = vunpack.c.h.b16 %v4648
    %v4741 = vunpack.c.l.b16 %v4649
    %v4742 = vunpack.c.h.b16 %v4649
    %v4743 = vunpack.c.l.b16 %v4650
    %v4744 = vunpack.c.h.b16 %v4650
    %v4745 = vunpack.c.l.b16 %v4651
    %v4746 = vunpack.c.h.b16 %v4651
    %v4747 = vunpack.c.l.b16 %v4652
    %v4748 = vunpack.c.h.b16 %v4652
    %v4749 = vunpack.c.l.b16 %v4653
    %v4750 = vunpack.c.h.b16 %v4653
    %v4751 = vunpack.c.l.b16 %v4654
    %v4752 = vunpack.c.h.b16 %v4654
    %v4753 = vunpack.c.l.b16 %v4655
    %v4754 = vunpack.c.h.b16 %v4655
    %v4755 = vunpack.c.l.b16 %v4656
    %v4756 = vunpack.c.h.b16 %v4656
    %v4757 = vunpack.c.l.b16 %v4657
    %v4758 = vunpack.c.h.b16 %v4657
    %v4759 = vunpack.c.l.b16 %v4658
    %v4760 = vunpack.c.h.b16 %v4658
    %v4761 = vunpack.c.l.b16 %v4659
    %v4762 = vunpack.c.h.b16 %v4659
    %v4763 = vpack.c.b16 %v4703, %v4699
    %v4764 = vpack.c.b16 %v4704, %v4700
    %v4765 = vpack.c.b16 %v4705, %v4701
    %v4766 = vpack.c.b16 %v4706, %v4702
    %v4767 = vpack.c.b16 %v4711, %v4707
    %v4768 = vpack.c.b16 %v4712, %v4708
    %v4769 = vpack.c.b16 %v4713, %v4709
    %v4770 = vpack.c.b16 %v4714, %v4710
    %v4771 = vpack.c.b16 %v4719, %v4715
    %v4772 = vpack.c.b16 %v4720, %v4716
    %v4773 = vpack.c.b16 %v4721, %v4717
    %v4774 = vpack.c.b16 %v4722, %v4718
    %v4775 = vpack.c.b16 %v4727, %v4723
    %v4776 = vpack.c.b16 %v4728, %v4724
    %v4777 = vpack.c.b16 %v4729, %v4725
    %v4778 = vpack.c.b16 %v4730, %v4726
    %v4779 = vpack.c.b16 %v4735, %v4731
    %v4780 = vpack.c.b16 %v4736, %v4732
    %v4781 = vpack.c.b16 %v4737, %v4733
    %v4782 = vpack.c.b16 %v4738, %v4734
    %v4783 = vpack.c.b16 %v4743, %v4739
    %v4784 = vpack.c.b16 %v4744, %v4740
    %v4785 = vpack.c.b16 %v4745, %v4741
    %v4786 = vpack.c.b16 %v4746, %v4742
    %v4787 = vpack.c.b16 %v4751, %v4747
    %v4788 = vpack.c.b16 %v4752, %v4748
    %v4789 = vpack.c.b16 %v4753, %v4749
    %v4790 = vpack.c.b16 %v4754, %v4750
    %v4791 = vpack.c.b16 %v4759, %v4755
    %v4792 = vpack.c.b16 %v4760, %v4756
    %v4793 = vpack.c.b16 %v4761, %v4757
    %v4794 = vpack.c.b16 %v4762, %v4758
    %4827 = vmatpush.bf16.msra.mxu0 %v4791
    %4828 = vmatpush.bf16.msra.mxu0 %v4787
    %4829 = vmatpush.bf16.msra.mxu0 %v4783
    %4830 = vmatpush.bf16.msra.mxu0 %v4779
    %4831 = vmatpush.bf16.msra.mxu0 %v4775
    %4832 = vmatpush.bf16.msra.mxu0 %v4771
    %4833 = vmatpush.bf16.msra.mxu0 %v4767
    %4834 = vmatpush.bf16.msra.mxu0 %v4763
    %4835 = vmatmul.bf16.gmra.mxu0 %v4665
    %v4836 = vpop.f32.mrf.mxu0
    %v4837 = vadd.f32 0.0, %v4836
    %v4838 = vpop.f32.mrf.mxu0
    %4839 = vdwg.mxu0
    %4840 = vmatpush.bf16.msra.mxu0 %v4792
    %4841 = vmatpush.bf16.msra.mxu0 %v4788
    %4842 = vmatpush.bf16.msra.mxu0 %v4784
    %4843 = vmatpush.bf16.msra.mxu0 %v4780
    %4844 = vmatpush.bf16.msra.mxu0 %v4776
    %4845 = vmatpush.bf16.msra.mxu0 %v4772
    %4846 = vmatpush.bf16.msra.mxu0 %v4768
    %4847 = vmatpush.bf16.msra.mxu0 %v4764
    %4848 = vmatmul.bf16.gmra.mxu0 %v4665
    %v4849 = vpop.f32.mrf.mxu0
    %v4850 = vadd.f32 0.0, %v4849
    %v4851 = vpop.f32.mrf.mxu0
    %4852 = vdwg.mxu0
    %4853 = vmatpush.bf16.msra.mxu0 %v4793
    %4854 = vmatpush.bf16.msra.mxu0 %v4789
    %4855 = vmatpush.bf16.msra.mxu0 %v4785
    %4856 = vmatpush.bf16.msra.mxu0 %v4781
    %4857 = vmatpush.bf16.msra.mxu0 %v4777
    %4858 = vmatpush.bf16.msra.mxu0 %v4773
    %4859 = vmatpush.bf16.msra.mxu0 %v4769
    %4860 = vmatpush.bf16.msra.mxu0 %v4765
    %4861 = vmatmul.bf16.gmra.mxu0 %v4665
    %v4862 = vpop.f32.mrf.mxu0
    %v4863 = vadd.f32 0.0, %v4862
    %v4864 = vpop.f32.mrf.mxu0
    %4865 = vdwg.mxu0
    %4866 = vmatpush.bf16.msra.mxu0 %v4794
    %4867 = vmatpush.bf16.msra.mxu0 %v4790
    %4868 = vmatpush.bf16.msra.mxu0 %v4786
    %4869 = vmatpush.bf16.msra.mxu0 %v4782
    %4870 = vmatpush.bf16.msra.mxu0 %v4778
    %4871 = vmatpush.bf16.msra.mxu0 %v4774
    %4872 = vmatpush.bf16.msra.mxu0 %v4770
    %4873 = vmatpush.bf16.msra.mxu0 %v4766
    %4874 = vmatmul.bf16.gmra.mxu0 %v4665
    %v4875 = vpop.f32.mrf.mxu0
    %v4876 = vadd.f32 0.0, %v4875
    %v4877 = vpop.f32.mrf.mxu0
    %4878 = vdwg.mxu0
    %v4879 = vadd.f32 %v4431, %v4837
    %v4880 = vadd.f32 %v4432, %v4850
    %v4881 = vadd.f32 %v4433, %v4863
    %v4882 = vadd.f32 %v4434, %v4876
    %v4883 = vld [vmem:[%s5] sm:$0xf]
    %v4885 = vperm.slane %v4883, 0
    %v4886 = vperm.slane %v4883, 1
    %v4887 = vperm.slane %v4883, 2
    %v4888 = vperm.slane %v4883, 3
    %v4893 = vadd.f32 %v4879, %v4885
    %v4894 = vadd.f32 %v4880, %v4886
    %v4895 = vadd.f32 %v4881, %v4887
    %v4896 = vadd.f32 %v4882, %v4888
    %v4901 = vrot.slane %v4894, 6
    %v4902 = vrot.slane %v4895, 4
    %v4903 = vrot.slane %v4896, 2
    %vm4904 = vcmask 1041408
    %v4905 = vsel %vm4904, %v4893, %v4901
    %vm4906 = vcmask 1045508
    %v4907 = vsel %vm4906, %v4902, %v4903
    %v4908 = vsel %vm3155, %v4905, %v4907
    %4910 = vst [vmem:[#allocation5] sm:$0xff] %v4908
    %v4911 = vld [vmem:[%s7] sm:$0x1]
    %v4913 = vperm.slane %v4911, 0
    %v4915 = vadd.f32 %v4610, %v4913
    %v4916 = vadd.f32 %v4611, %v4913
    %v4917 = vrot.slane %v4915, 4
    %v4918 = vadd.f32 %v4915, %v4917
    %v4919 = vrot.slane %v4918, 2
    %v4920 = vadd.f32 %v4918, %v4919
    %v4921 = vrot.slane %v4920, 1
    %v4922 = vadd.f32 %v4920, %v4921
    %v4923 = vrot.slane %v4916, 4
    %v4924 = vadd.f32 %v4916, %v4923
    %v4925 = vrot.slane %v4924, 2
    %v4926 = vadd.f32 %v4924, %v4925
    %v4927 = vrot.slane %v4926, 1
    %v4928 = vadd.f32 %v4926, %v4927
    %v4929 = vmul.f32 %v4922, %v3226
    %v4930 = vmul.f32 %v4928, %v3226
    %v4933 = vsel %vm3552, %v4930, %v4929
    %4935 = vst [vmem:[#allocation7] sm:$0x3] %v4933
    %v4936 = vpack.c.bf16 %v4916, %v4915
    %v4937 = vld [vmem:[%s8] sm:$0xf]
    %v4938 = vld [vmem:[%s8 + $0x4] sm:$0xf]
    %v4939 = vld [vmem:[%s8 + $0x8] sm:$0xf]
    %v4940 = vld [vmem:[%s8 + $0xc] sm:$0xf]
    %v4941 = vld [vmem:[%s8 + $0x10] sm:$0xf]
    %v4942 = vld [vmem:[%s8 + $0x14] sm:$0xf]
    %v4943 = vld [vmem:[%s8 + $0x18] sm:$0xf]
    %v4944 = vld [vmem:[%s8 + $0x1c] sm:$0xf]
    %v4945 = vld [vmem:[%s8 + $0x20] sm:$0xf]
    %v4946 = vld [vmem:[%s8 + $0x24] sm:$0xf]
    %v4947 = vld [vmem:[%s8 + $0x28] sm:$0xf]
    %v4948 = vld [vmem:[%s8 + $0x2c] sm:$0xf]
    %v4949 = vld [vmem:[%s8 + $0x30] sm:$0xf]
    %v4950 = vld [vmem:[%s8 + $0x34] sm:$0xf]
    %v4951 = vld [vmem:[%s8 + $0x38] sm:$0xf]
    %v4952 = vld [vmem:[%s8 + $0x3c] sm:$0xf]
    %v4953 = vld [vmem:[%s9] sm:$0x1]
    %v4955 = vperm.slane %v4953, 0
    %v4973 = vunpack.c.l.b16 %v4937
    %v4974 = vunpack.c.l.b16 %v4938
    %v4975 = vunpack.c.l.b16 %v4939
    %v4976 = vunpack.c.l.b16 %v4940
    %v4977 = vunpack.c.l.b16 %v4941
    %v4978 = vunpack.c.l.b16 %v4942
    %v4979 = vunpack.c.l.b16 %v4943
    %v4980 = vunpack.c.l.b16 %v4944
    %v4981 = vunpack.c.l.b16 %v4945
    %v4982 = vunpack.c.l.b16 %v4946
    %v4983 = vunpack.c.l.b16 %v4947
    %v4984 = vunpack.c.l.b16 %v4948
    %v4985 = vunpack.c.l.b16 %v4949
    %v4986 = vunpack.c.l.b16 %v4950
    %v4987 = vunpack.c.l.b16 %v4951
    %v4988 = vunpack.c.l.b16 %v4952
    %v4989 = vpack.c.b16 %v4974, %v4973
    %v4990 = vpack.c.b16 %v4976, %v4975
    %v4991 = vpack.c.b16 %v4978, %v4977
    %v4992 = vpack.c.b16 %v4980, %v4979
    %v4993 = vpack.c.b16 %v4982, %v4981
    %v4994 = vpack.c.b16 %v4984, %v4983
    %v4995 = vpack.c.b16 %v4986, %v4985
    %v4996 = vpack.c.b16 %v4988, %v4987
    %5005 = vmatpush.bf16.msra.mxu0 %v4996
    %5006 = vmatpush.bf16.msra.mxu0 %v4995
    %5007 = vmatpush.bf16.msra.mxu0 %v4994
    %5008 = vmatpush.bf16.msra.mxu0 %v4993
    %5009 = vmatpush.bf16.msra.mxu0 %v4992
    %5010 = vmatpush.bf16.msra.mxu0 %v4991
    %5011 = vmatpush.bf16.msra.mxu0 %v4990
    %5012 = vmatpush.bf16.msra.mxu0 %v4989
    %5013 = vmatmul.bf16.gmra.mxu0 %v4936
    %v5014 = vpop.f32.mrf.mxu0
    %v5015 = vadd.f32 %v4955, %v5014
    %v5016 = vpop.f32.mrf.mxu0
    %v5017 = vadd.f32 %v4955, %v5016
    %5018 = vdwg.mxu0
    %v5019 = vmax.f32 %v5015, 0.0
    %v5020 = vmax.f32 %v5017, 0.0
    %v5021 = vld [vmem:[%s10] sm:$0x1]
    %v5023 = vperm.slane %v5021, 0
    %v5025 = vmul.f32 %v5019, %v5023
    %v5026 = vmul.f32 %v5020, %v5023
    %5027 = vadd.xlane.f32.xlu0 %v5025
    %v5028 = vpop.xlane.xlu0 %5027
    %5029 = vadd.xlane.f32.xlu0 %v5026
    %v5030 = vpop.xlane.xlu0 %5029
    %v5031 = vld [vmem:[#allocation2] sm:$0x1]
    %v5033 = vperm.slane %v5031, 0
    %5034 = vset.pattern.permute.xlu0 0
    %5035 = vperm.xlu0 %5034, %v5033
    %v5036 = vpop.permute.xlu0 %5035
    %v5038 = vadd.f32 %v5028, %v5036
    %v5039 = vadd.f32 %v5030, %v5036
    %v5042 = vlaneseq
    %v5043 = vand.u32 %v5042, 127
    %v5044 = vperm.slane %v5038, %v5043
    %v5045 = vperm.slane %v5039, %v5043
    %v5046 = vsel %vm3552, %v5045, %v5044
    %vm5048 = vcmask 58368
    %v5049 = vsel %vm5048, %v5046, -inf
    %5050 = vmax.xlane.f32.xlu0 %v5049
    %v5051 = vpop.xlane.xlu0 %5050
    %v5053 = vperm.slane %v5051, 0
    %v5054 = vperm.slane %v5051, 1
    %v5057 = vsub.f32 %v5038, %v5053
    %v5058 = vsub.f32 %v5039, %v5054
    %v5059 = vmul.f32 %v5057, 1.442695
    %v5060 = vpow.pop %v5059
    %v5061 = vmul.f32 %v5058, 1.442695
    %v5062 = vpow.pop %v5061
    %5065 = vset.pattern.permute.xlu0 0
    %5066 = vperm.xlu0 %5065, %v5060
    %v5067 = vpop.permute.xlu0 %5066
    %5068 = vset.pattern.permute.xlu0 0
    %5069 = vperm.xlu0 %5068, %v5062
    %v5070 = vpop.permute.xlu0 %5069
    %v5071 = vperm.slane %v5067, %v5043
    %v5072 = vperm.slane %v5070, %v5043
    %v5073 = vsel %vm3552, %v5072, %v5071
    %v5075 = vsel %vm5048, %v5073, 0.0
    %5076 = vadd.xlane.f32.xlu0 %v5075
    %v5077 = vpop.xlane.xlu0 %5076
    %v5078 = vrcp.pop %v5077
    %v5080 = vperm.slane %v5078, 0
    %v5081 = vperm.slane %v5078, 1
    %v5084 = vmul.f32 %v5060, %v5080
    %v5085 = vmul.f32 %v5062, %v5081
    %5088 = vset.pattern.permute.xlu0 0
    %5089 = vperm.xlu0 %5088, %v5084
    %v5090 = vpop.permute.xlu0 %5089
    %5091 = vset.pattern.permute.xlu0 0
    %5092 = vperm.xlu0 %5091, %v5085
    %v5093 = vpop.permute.xlu0 %5092
    %v5094 = vperm.slane %v5090, %v5043
    %v5095 = vperm.slane %v5093, %v5043
    %v5096 = vsel %vm3552, %v5095, %v5094
    %5098 = vst.msk [vmem:[#allocation10] sm:$0x3] %vm5048, %v5096
    %v5101 = vmul.f32 %v4915, %v5090
    %v5102 = vmul.f32 %v4916, %v5093
    %v5103 = vrot.slane %v5101, 4
    %v5104 = vadd.f32 %v5101, %v5103
    %v5105 = vrot.slane %v5104, 2
    %v5106 = vadd.f32 %v5104, %v5105
    %v5107 = vrot.slane %v5106, 1
    %v5108 = vadd.f32 %v5106, %v5107
    %v5109 = vrot.slane %v5102, 4
    %v5110 = vadd.f32 %v5102, %v5109
    %v5111 = vrot.slane %v5110, 2
    %v5112 = vadd.f32 %v5110, %v5111
    %v5113 = vrot.slane %v5112, 1
    %v5114 = vadd.f32 %v5112, %v5113
    %v5117 = vsel %vm3552, %v5114, %v5108
    %5119 = vst [vmem:[#allocation8] sm:$0x3] %v5117
    %v5120 = vld [vmem:[%s12] sm:$0xff]
    %v5121 = vld [vmem:[%s12 + $0x8] sm:$0xff]
    %v5122 = vld [vmem:[%s12 + $0x10] sm:$0xff]
    %v5123 = vld [vmem:[%s12 + $0x18] sm:$0xff]
    %v5124 = vld [vmem:[%s12 + $0x20] sm:$0xff]
    %v5125 = vld [vmem:[%s12 + $0x28] sm:$0xff]
    %v5126 = vld [vmem:[%s12 + $0x30] sm:$0xff]
    %v5127 = vld [vmem:[%s12 + $0x38] sm:$0xff]
    %v5128 = vld [vmem:[%s12 + $0x40] sm:$0xff]
    %v5129 = vld [vmem:[%s12 + $0x48] sm:$0xff]
    %v5130 = vld [vmem:[%s12 + $0x50] sm:$0xff]
    %v5131 = vld [vmem:[%s12 + $0x58] sm:$0xff]
    %v5132 = vld [vmem:[%s12 + $0x60] sm:$0xff]
    %v5133 = vld [vmem:[%s12 + $0x68] sm:$0xff]
    %v5134 = vld [vmem:[%s12 + $0x70] sm:$0xff]
    %v5135 = vld [vmem:[%s12 + $0x78] sm:$0xff]
    %v5136 = vld [vmem:[%s13] sm:$0x1]
    %v5138 = vperm.slane %v5136, 0
    %5140 = vmatpush.msra.mxu0 %v5135
    %5141 = vmatpush.msra.mxu0 %v5134
    %5142 = vmatpush.msra.mxu0 %v5133
    %5143 = vmatpush.msra.mxu0 %v5132
    %5144 = vmatpush.msra.mxu0 %v5131
    %5145 = vmatpush.msra.mxu0 %v5130
    %5146 = vmatpush.msra.mxu0 %v5129
    %5147 = vmatpush.msra.mxu0 %v5128
    %5148 = vmatpush.msra.mxu0 %v5127
    %5149 = vmatpush.msra.mxu0 %v5126
    %5150 = vmatpush.msra.mxu0 %v5125
    %5151 = vmatpush.msra.mxu0 %v5124
    %5152 = vmatpush.msra.mxu0 %v5123
    %5153 = vmatpush.msra.mxu0 %v5122
    %5154 = vmatpush.msra.mxu0 %v5121
    %5155 = vmatpush.msra.mxu0 %v5120
    %5156 = vmatmul.f32.gmra.mxu0 %v5117
    %v5157 = vpop.f32.mrf.mxu0
    %v5158 = vadd.f32 %v5138, %v5157
    %5159 = vdwg.mxu0
    %vm5160 = vcmask 74752
    %5161 = vst.msk [vmem:[#allocation3] sm:$0x3] %vm5160, %v5158
    // Predicated region
    $region58: #{classifier_forward.1} parent=1 // pred_check
      _
    $region59: #{classifier_forward.1} parent=1 // pred_check_branch
      %5163 = sbr.rel (0) target = $region61
    $region60: #{classifier_forward.1} parent=1 // pred_region
      %5165 = vsyncadd [#allocation4], 0
      %s5167 = sshll.u32 [#allocation3], 4
      %s5168 = int_to_ptr.vmem [resolvable:$true] %s5167
      %s5169 = sshll.u32 %s14, 4
      %s5170 = int_to_ptr.hbm [resolvable:$true] %s5169
      %5172 = dma.vmem_to_hbm [thread:$0]  %s5168, 32, %s5170, [#allocation4]
    $region61: #{classifier_forward.1} parent=1 // pred_fallthru
      _
    // Predicated region
    $region62: #{classifier_forward.1} parent=1 // pred_check
      _
    $region63: #{classifier_forward.1} parent=1 // pred_check_branch
      %5174 = sbr.rel (0) target = $region65
    $region64: #{classifier_forward.1} parent=1 // pred_region
      %5176 = vsyncadd [#allocation6], 0
      %s5178 = sshll.u32 [#allocation5], 4
      %s5179 = int_to_ptr.vmem [resolvable:$true] %s5178
      %s5180 = sshll.u32 %s15, 4
      %s5181 = int_to_ptr.hbm [resolvable:$true] %s5180
      %5183 = dma.vmem_to_hbm [thread:$0]  %s5179, 128, %s5181, [#allocation6]
    $region65: #{classifier_forward.1} parent=1 // pred_fallthru
      _
    // Predicated region
    $region66: #{classifier_forward.1} parent=1 // pred_check
      _
    $region67: #{classifier_forward.1} parent=1 // pred_check_branch
      %5185 = sbr.rel (0) target = $region69
    $region68: #{classifier_forward.1} parent=1 // pred_region
      %5187 = vsyncadd [#allocation6], 0
      %s5189 = sshll.u32 [#allocation7], 4
      %s5190 = int_to_ptr.vmem [resolvable:$true] %s5189
      %s5191 = sshll.u32 %s16, 4
      %s5192 = int_to_ptr.hbm [resolvable:$true] %s5191
      %5194 = dma.vmem_to_hbm [thread:$0]  %s5190, 32, %s5192, [#allocation6]
    $region69: #{classifier_forward.1} parent=1 // pred_fallthru
      _
    // Predicated region
    $region70: #{classifier_forward.1} parent=1 // pred_check
      _
    $region71: #{classifier_forward.1} parent=1 // pred_check_branch
      %5196 = sbr.rel (0) target = $region73
    $region72: #{classifier_forward.1} parent=1 // pred_region
      %5198 = vsyncadd [#allocation9], 0
      %s5200 = sshll.u32 [#allocation8], 4
      %s5201 = int_to_ptr.vmem [resolvable:$true] %s5200
      %s5202 = sshll.u32 %s17, 4
      %s5203 = int_to_ptr.hbm [resolvable:$true] %s5202
      %5205 = dma.vmem_to_hbm [thread:$0]  %s5201, 32, %s5203, [#allocation9]
    $region73: #{classifier_forward.1} parent=1 // pred_fallthru
      _
    // Predicated region
    $region74: #{classifier_forward.1} parent=1 // pred_check
      _
    $region75: #{classifier_forward.1} parent=1 // pred_check_branch
      %5207 = sbr.rel (0) target = $region77
    $region76: #{classifier_forward.1} parent=1 // pred_region
      %5209 = vsyncadd [#allocation9], 0
      %s5211 = sshll.u32 [#allocation10], 4
      %s5212 = int_to_ptr.vmem [resolvable:$true] %s5211
      %s5213 = sshll.u32 %s18, 4
      %s5214 = int_to_ptr.hbm [resolvable:$true] %s5213
      %5216 = dma.vmem_to_hbm [thread:$0]  %s5212, 32, %s5214, [#allocation9]
    $region77: #{classifier_forward.1} parent=1 // pred_fallthru
      _
    // Predicated region
    $region78: #{classifier_forward.1} parent=1 // pred_check
      _
    $region79: #{classifier_forward.1} parent=1 // pred_check_branch
      %5218 = sbr.rel (0) target = $region81
    $region80: #{classifier_forward.1} parent=1 // pred_region
      %5220 = dma.done [#allocation4], 32
    $region81: #{classifier_forward.1} parent=1 // pred_fallthru
      _
    // Predicated region
    $region82: #{classifier_forward.1} parent=1 // pred_check
      _
    $region83: #{classifier_forward.1} parent=1 // pred_check_branch
      %5222 = sbr.rel (0) target = $region85
    $region84: #{classifier_forward.1} parent=1 // pred_region
      %5224 = dma.done [#allocation6], 128
    $region85: #{classifier_forward.1} parent=1 // pred_fallthru
      _
    // Predicated region
    $region86: #{classifier_forward.1} parent=1 // pred_check
      _
    $region87: #{classifier_forward.1} parent=1 // pred_check_branch
      %5226 = sbr.rel (0) target = $region89
    $region88: #{classifier_forward.1} parent=1 // pred_region
      %5228 = dma.done [#allocation6], 32
    $region89: #{classifier_forward.1} parent=1 // pred_fallthru
      _
    // Predicated region
    $region90: #{classifier_forward.1} parent=1 // pred_check
      _
    $region91: #{classifier_forward.1} parent=1 // pred_check_branch
      %5230 = sbr.rel (0) target = $region93
    $region92: #{classifier_forward.1} parent=1 // pred_region
      %5232 = dma.done [#allocation9], 32
    $region93: #{classifier_forward.1} parent=1 // pred_fallthru
      _
    // Predicated region
    $region94: #{classifier_forward.1} parent=1 // pred_check
      _
    $region95: #{classifier_forward.1} parent=1 // pred_check_branch
      %5234 = sbr.rel (0) target = $region97
    $region96: #{classifier_forward.1} parent=1 // pred_region
      %5236 = dma.done [#allocation9], 32
    $region97: #{classifier_forward.1} parent=1 // pred_fallthru
      _
    %5237 = vsyncpa [#allocation4], 1
    %5238 = vsyncpa [#allocation6], 1
    %5239 = vsyncpa [#allocation9], 1

</llo_original>
